<compile_context>
chip_gen: v6e
topology: v6e:2x2x1
jax: 0.10.0
libtpu: 0.0.40
codegen_flags: <defaults>
</compile_context>

<pallas_src>
import jax
import jax.numpy as jnp
from jax.experimental import pallas as pl
from jax.experimental.pallas import tpu as pltpu


def _bottleneck_kernel(x_ref, w1_ref, bn1_ref, w3_ref,
                       fc1w_ref, fc1b_ref, fc2w_ref, fc2b_ref,
                       f1g_ref, f1c_ref, f1b_ref, f2w_ref, f2b_ref,
                       wc3_ref, bn2_ref, bn3_ref,
                       out_ref, pad_ref):
    # x_ref   : (1, H*W, Cin) f32   input tile (also the residual)
    # w1_ref  : (Cin, Cw) bf16      conv1 (1x1)
    # bn*_ref : (2, C)   f32        folded BN [scale; bias]
    # w3_ref  : (9, Cw, Cw) bf16    conv3x3 taps, index ky*3+kx, (in, out)
    # fc1/fc2 : (Cw, Cw) + (1, Cw) f32   SE 1x1 convs (tiny, stay f32)
    # f1g     : (Cw, Cw) f32        fusion_conv1, gap half of the concat
    # f1c     : (Cw, Cw) bf16       fusion_conv1, conv3x3 half
    # f2w     : (Cw, Cw) bf16       fusion_conv2 ; f1b/f2b: (1, Cw) f32
    # wc3     : (Cw, Cout) bf16     conv3 (1x1)
    # out_ref : (1, H*W, Cout) f32
    # pad_ref : (HP, WP, Cw) f32 scratch; HP = H+3, WP = round_up(W+2, 8)
    HW = out_ref.shape[1]
    Cw = w1_ref.shape[1]
    HP, WP, _ = pad_ref.shape
    H = HP - 3
    W = HW // H
    L = H * WP                                     # accumulator rows (junk cols kept)

    x = x_ref[0]                                   # (H*W, Cin) f32

    # ---- conv1 (1x1) -> bn1 -> relu --------------------------------------
    h = jnp.dot(x.astype(jnp.bfloat16), w1_ref[...],
                preferred_element_type=jnp.float32)
    h = jnp.maximum(h * bn1_ref[0:1, :] + bn1_ref[1:2, :], 0.0)

    # ---- write h into the zero-padded scratch, take a flat view ----------
    pad_ref[...] = jnp.zeros_like(pad_ref)
    pad_ref[1:1 + H, 1:1 + W, :] = h.reshape(H, W, Cw)
    xp = pad_ref[...].reshape(HP * WP, Cw)         # WP % 8 == 0 -> free reshape

    # ---- conv3x3: 9 contiguous-offset taps, bf16 MXU, f32 accumulation ---
    acc = jnp.zeros((L, Cw), jnp.float32)
    for ky in range(3):
        for kx in range(3):
            off = ky * WP + kx
            tap = xp[off:off + L, :].astype(jnp.bfloat16)
            acc = acc + jnp.dot(tap, w3_ref[ky * 3 + kx],
                                preferred_element_type=jnp.float32)
    # drop the wrapped/padded columns once
    c3 = acc.reshape(H, WP, Cw)[:, :W, :].reshape(HW, Cw)        # (H*W, Cw) f32

    # ---- SE branch (spatially constant): gap -> fc1 -> relu -> fc2 -------
    gap = jnp.sum(c3, axis=0, keepdims=True) * (1.0 / HW)        # (1, Cw)
    g = jnp.maximum(
        jnp.dot(gap, fc1w_ref[...], preferred_element_type=jnp.float32)
        + fc1b_ref[...], 0.0)
    g = (jnp.dot(g, fc2w_ref[...], preferred_element_type=jnp.float32)
         + fc2b_ref[...])                                        # (1, Cw)

    # ---- pixel-aware gate: fusion1(cat[g, c3]) -> relu -> fusion2 -> sigmoid
    t_const = (jnp.dot(g, f1g_ref[...], preferred_element_type=jnp.float32)
               + f1b_ref[...])
    t = jnp.dot(c3.astype(jnp.bfloat16), f1c_ref[...],
                preferred_element_type=jnp.float32)
    t = jnp.maximum(t + t_const, 0.0)
    gate = jnp.dot(t.astype(jnp.bfloat16), f2w_ref[...],
                   preferred_element_type=jnp.float32)
    gate = jax.nn.sigmoid(gate + f2b_ref[...])

    # ---- c3 + g*gate -> bn2 -> relu -> conv3 -> bn3 -> + identity -> relu -
    mid = c3 + g * gate
    mid = jnp.maximum(mid * bn2_ref[0:1, :] + bn2_ref[1:2, :], 0.0)
    y = jnp.dot(mid.astype(jnp.bfloat16), wc3_ref[...],
                preferred_element_type=jnp.float32)
    y = y * bn3_ref[0:1, :] + bn3_ref[1:2, :]
    out_ref[0] = jnp.maximum(y + x, 0.0).astype(out_ref.dtype)


def _fold_bn(gamma, beta, mean, var, eps=1e-5):
    scale = gamma / jnp.sqrt(var + eps)
    return jnp.stack([scale, beta - mean * scale]).astype(jnp.float32)   # (2, C)


def pixel_aware_adaptive_bottleneck(x_nchw, params, eps=1e-5):
    """x_nchw: (N, Cin, H, W) f32 -> (N, Cout, H, W) f32. Cout == Cin (downsample=None)."""
    N, Cin, H, W = x_nchw.shape
    Cw = params["conv1_w"].shape[0]
    Cout = params["conv3_w"].shape[0]
    assert Cin == Cout, "downsample=None requires inplanes == planes*expansion"
    assert W % 8 == 0, "kernel assumes W is a multiple of 8 (cheap reshapes)"

    HW = H * W
    WP = ((W + 2 + 7) // 8) * 8        # padded width, multiple of 8 -> free flat view
    HP = H + 3                         # 1 top + 2 bottom pad rows (offset-slice overrun)

    # --- layout plumbing (plain JAX glue) ---
    x_flat = jnp.transpose(x_nchw, (0, 2, 3, 1)).reshape(N, HW, Cin).astype(jnp.float32)

    bf16 = jnp.bfloat16
    f32 = jnp.float32
    w1 = params["conv1_w"][:, :, 0, 0].T.astype(bf16)                       # (Cin, Cw)
    w3 = jnp.transpose(params["conv2_w"], (2, 3, 1, 0)).reshape(9, Cw, Cw).astype(bf16)
    fc1w = params["fc1_w"][:, :, 0, 0].T.astype(f32)
    fc1b = params["fc1_b"].reshape(1, Cw).astype(f32)
    fc2w = params["fc2_w"][:, :, 0, 0].T.astype(f32)
    fc2b = params["fc2_b"].reshape(1, Cw).astype(f32)
    f1io = params["fus1_w"][:, :, 0, 0].T                                   # (2Cw, Cw)
    f1g = f1io[:Cw].astype(f32)            # gap channels come first in the concat
    f1c = f1io[Cw:].astype(bf16)
    f1b = params["fus1_b"].reshape(1, Cw).astype(f32)
    f2w = params["fus2_w"][:, :, 0, 0].T.astype(bf16)
    f2b = params["fus2_b"].reshape(1, Cw).astype(f32)
    wc3 = params["conv3_w"][:, :, 0, 0].T.astype(bf16)                      # (Cw, Cout)
    bn1 = _fold_bn(*params["bn1"], eps)
    bn2 = _fold_bn(*params["bn2"], eps)
    bn3 = _fold_bn(*params["bn3"], eps)

    def rep(shape):                       # replicated (grid-invariant) operand
        return pl.BlockSpec(shape, lambda n, _s=len(shape): (0,) * _s)

    out_flat = pl.pallas_call(
        _bottleneck_kernel,
        out_shape=jax.ShapeDtypeStruct((N, HW, Cout), jnp.float32),
        grid_spec=pltpu.PrefetchScalarGridSpec(
            num_scalar_prefetch=0,
            grid=(N,),
            in_specs=[
                pl.BlockSpec((1, HW, Cin), lambda n: (n, 0, 0)),
                rep((Cin, Cw)), rep((2, Cw)), rep((9, Cw, Cw)),
                rep((Cw, Cw)), rep((1, Cw)), rep((Cw, Cw)), rep((1, Cw)),
                rep((Cw, Cw)), rep((Cw, Cw)), rep((1, Cw)),
                rep((Cw, Cw)), rep((1, Cw)),
                rep((Cw, Cout)), rep((2, Cw)), rep((2, Cout)),
            ],
            out_specs=pl.BlockSpec((1, HW, Cout), lambda n: (n, 0, 0)),
            scratch_shapes=[pltpu.VMEM((HP, WP, Cw), jnp.float32)],
        ),
        compiler_params=pltpu.CompilerParams(
            dimension_semantics=("parallel",)),
    )(x_flat, w1, bn1, w3, fc1w, fc1b, fc2w, fc2b,
      f1g, f1c, f1b, f2w, f2b, wc3, bn2, bn3)

    return jnp.transpose(out_flat.reshape(N, H, W, Cout), (0, 3, 1, 2))


def _reference(x, params, eps=1e-5):
    """Plain-JAX f32 reference of the module's forward (eval-mode BN)."""
    def bnorm(h, p):
        g, b, m, v = p
        s = (g / jnp.sqrt(v + eps)).reshape(1, -1, 1, 1)
        return (h - m.reshape(1, -1, 1, 1)) * s + b.reshape(1, -1, 1, 1)

    def c1x1(h, w):                                  # w: (O, I, 1, 1), NCHW
        return jnp.einsum('nihw,oi->nohw', h, w[:, :, 0, 0])

    h = jax.nn.relu(bnorm(c1x1(x, params["conv1_w"]), params["bn1"]))
    c3 = jax.lax.conv_general_dilated(
        h, params["conv2_w"], window_strides=(1, 1), padding=((1, 1), (1, 1)),
        dimension_numbers=("NCHW", "OIHW", "NCHW"))
    gap = jnp.mean(c3, axis=(2, 3), keepdims=True)
    g = jax.nn.relu(c1x1(gap, params["fc1_w"]) + params["fc1_b"].reshape(1, -1, 1, 1))
    g = c1x1(g, params["fc2_w"]) + params["fc2_b"].reshape(1, -1, 1, 1)
    g_up = jnp.broadcast_to(g, c3.shape)   # bilinear 1x1->HxW, align_corners=True
    cat = jnp.concatenate([g_up, c3], axis=1)
    t = jax.nn.relu(c1x1(cat, params["fus1_w"]) + params["fus1_b"].reshape(1, -1, 1, 1))
    gate = jax.nn.sigmoid(c1x1(t, params["fus2_w"]) + params["fus2_b"].reshape(1, -1, 1, 1))
    out = c3 + g_up * gate
    out = jax.nn.relu(bnorm(out, params["bn2"]))
    out = bnorm(c1x1(out, params["conv3_w"]), params["bn3"])
    return jax.nn.relu(out + x)


if __name__ == "__main__":
    # PixelAwareAdaptiveBottleneck(inplanes=16, planes=4): width=4, out=planes*4=16
    N, H, W = 2, 16, 16
    planes, expansion, base_width, groups = 4, 4, 64, 1
    width = int(planes * (base_width / 64.0)) * groups     # 4
    Cin = planes * expansion                               # 16 (so identity add works)
    Cout = planes * expansion                              # 16

    key = jax.random.PRNGKey(0)
    ks = iter(jax.random.split(key, 32))
    nrm = lambda shape, s=0.1: s * jax.random.normal(next(ks), shape, jnp.float32)

    def bn_params(c):
        return (1.0 + nrm((c,)), nrm((c,)), nrm((c,)),
                1.0 + 0.5 * jax.random.uniform(next(ks), (c,), jnp.float32))

    params = dict(
        conv1_w=nrm((width, Cin, 1, 1)),
        bn1=bn_params(width),
        conv2_w=nrm((width, width, 3, 3)),
        bn2=bn_params(width),
        fc1_w=nrm((width, width, 1, 1)), fc1_b=nrm((width,)),
        fc2_w=nrm((width, width, 1, 1)), fc2_b=nrm((width,)),
        fus1_w=nrm((width, 2 * width, 1, 1)), fus1_b=nrm((width,)),
        fus2_w=nrm((width, width, 1, 1)), fus2_b=nrm((width,)),
        conv3_w=nrm((Cout, width, 1, 1)),
        bn3=bn_params(Cout),
    )

    x = jax.random.normal(next(ks), (N, Cin, H, W), jnp.float32)

    out = pixel_aware_adaptive_bottleneck(x, params)
    out = jax.block_until_ready(out)

    ref = _reference(x, params)
    assert out.shape == (N, Cout, H, W)
    max_err = jnp.max(jnp.abs(out - ref))
    assert jnp.allclose(out, ref, atol=2e-2, rtol=2e-2), f"max abs err {max_err}"

    print("KERNEL_OK")
</pallas_src>

<mosaic_0001>
module attributes {stable_mosaic.version = 11 : i64} {
  func.func @_bottleneck_kernel(%arg0: i32, %arg1: memref<1x256x16xf32, #tpu.memory_space<vmem>>, %arg2: memref<16x4xbf16, #tpu.memory_space<vmem>>, %arg3: memref<2x4xf32, #tpu.memory_space<vmem>>, %arg4: memref<9x4x4xbf16, #tpu.memory_space<vmem>>, %arg5: memref<4x4xf32, #tpu.memory_space<vmem>>, %arg6: memref<1x4xf32, #tpu.memory_space<vmem>>, %arg7: memref<4x4xf32, #tpu.memory_space<vmem>>, %arg8: memref<1x4xf32, #tpu.memory_space<vmem>>, %arg9: memref<4x4xf32, #tpu.memory_space<vmem>>, %arg10: memref<4x4xbf16, #tpu.memory_space<vmem>>, %arg11: memref<1x4xf32, #tpu.memory_space<vmem>>, %arg12: memref<4x4xbf16, #tpu.memory_space<vmem>>, %arg13: memref<1x4xf32, #tpu.memory_space<vmem>>, %arg14: memref<4x16xbf16, #tpu.memory_space<vmem>>, %arg15: memref<2x4xf32, #tpu.memory_space<vmem>>, %arg16: memref<2x16xf32, #tpu.memory_space<vmem>>, %arg17: memref<1x256x16xf32, #tpu.memory_space<vmem>>, %arg18: memref<19x24x4xf32, #tpu.memory_space<vmem>>) attributes {dimension_semantics = [#tpu.dimension_semantics<parallel>], iteration_bounds = array<i64: 2>, scalar_prefetch = 0 : i64, scratch_operands = 1 : i64, tpu.core_type = #tpu.core_type<tc>, window_params = [{transform_indices = @transform_0, window_bounds = array<i64: 1, 256, 16>}, {pipeline_mode = #tpu.pipeline_mode<synchronous>, transform_indices = @transform_1, window_bounds = array<i64: 16, 4>}, {pipeline_mode = #tpu.pipeline_mode<synchronous>, transform_indices = @transform_2, window_bounds = array<i64: 2, 4>}, {pipeline_mode = #tpu.pipeline_mode<synchronous>, transform_indices = @transform_3, window_bounds = array<i64: 9, 4, 4>}, {pipeline_mode = #tpu.pipeline_mode<synchronous>, transform_indices = @transform_4, window_bounds = array<i64: 4, 4>}, {pipeline_mode = #tpu.pipeline_mode<synchronous>, transform_indices = @transform_5, window_bounds = array<i64: 1, 4>}, {pipeline_mode = #tpu.pipeline_mode<synchronous>, transform_indices = @transform_6, window_bounds = array<i64: 4, 4>}, {pipeline_mode = #tpu.pipeline_mode<synchronous>, transform_indices = @transform_7, window_bounds = array<i64: 1, 4>}, {pipeline_mode = #tpu.pipeline_mode<synchronous>, transform_indices = @transform_8, window_bounds = array<i64: 4, 4>}, {pipeline_mode = #tpu.pipeline_mode<synchronous>, transform_indices = @transform_9, window_bounds = array<i64: 4, 4>}, {pipeline_mode = #tpu.pipeline_mode<synchronous>, transform_indices = @transform_10, window_bounds = array<i64: 1, 4>}, {pipeline_mode = #tpu.pipeline_mode<synchronous>, transform_indices = @transform_11, window_bounds = array<i64: 4, 4>}, {pipeline_mode = #tpu.pipeline_mode<synchronous>, transform_indices = @transform_12, window_bounds = array<i64: 1, 4>}, {pipeline_mode = #tpu.pipeline_mode<synchronous>, transform_indices = @transform_13, window_bounds = array<i64: 4, 16>}, {pipeline_mode = #tpu.pipeline_mode<synchronous>, transform_indices = @transform_14, window_bounds = array<i64: 2, 4>}, {pipeline_mode = #tpu.pipeline_mode<synchronous>, transform_indices = @transform_15, window_bounds = array<i64: 2, 16>}, {transform_indices = @transform_16, window_bounds = array<i64: 1, 256, 16>}]} {
    %c0 = arith.constant 0 : index
    %c0_0 = arith.constant 0 : index
    %c0_1 = arith.constant 0 : index
    %0 = vector.load %arg1[%c0, %c0_0, %c0_1] : memref<1x256x16xf32, #tpu.memory_space<vmem>>, vector<1x256x16xf32>
    %1 = vector.shape_cast %0 : vector<1x256x16xf32> to vector<256x16xf32>
    %2 = arith.truncf %1 : vector<256x16xf32> to vector<256x16xbf16>
    %c0_2 = arith.constant 0 : index
    %c0_3 = arith.constant 0 : index
    %3 = vector.load %arg2[%c0_2, %c0_3] : memref<16x4xbf16, #tpu.memory_space<vmem>>, vector<16x4xbf16>
    %cst = arith.constant dense<0.000000e+00> : vector<256x4xf32>
    %4 = tpu.matmul %2, %3, %cst {dimension_numbers = #tpu.dot_dimension_numbers<[1], [0], [0], [1], [0, 0, 1, 1], [], []>} : vector<256x16xbf16>, vector<16x4xbf16>, vector<256x4xf32> -> vector<256x4xf32>
    %c0_4 = arith.constant 0 : index
    %c0_5 = arith.constant 0 : index
    %5 = vector.load %arg3[%c0_4, %c0_5] : memref<2x4xf32, #tpu.memory_space<vmem>>, vector<1x4xf32>
    %6 = vector.broadcast %5 : vector<1x4xf32> to vector<256x4xf32>
    %7 = arith.mulf %4, %6 : vector<256x4xf32>
    %c1 = arith.constant 1 : index
    %c0_6 = arith.constant 0 : index
    %8 = vector.load %arg3[%c1, %c0_6] : memref<2x4xf32, #tpu.memory_space<vmem>>, vector<1x4xf32>
    %9 = vector.broadcast %8 : vector<1x4xf32> to vector<256x4xf32>
    %10 = arith.addf %7, %9 : vector<256x4xf32>
    %cst_7 = arith.constant 0.000000e+00 : f32
    %11 = vector.broadcast %cst_7 : f32 to vector<256x4xf32>
    %12 = arith.maximumf %10, %11 : vector<256x4xf32>
    %cst_8 = arith.constant 0.000000e+00 : f32
    %13 = vector.broadcast %cst_8 : f32 to vector<19x24x4xf32>
    %c0_9 = arith.constant 0 : index
    %c0_10 = arith.constant 0 : index
    %c0_11 = arith.constant 0 : index
    %14 = vector.load %arg18[%c0_9, %c0_10, %c0_11] : memref<19x24x4xf32, #tpu.memory_space<vmem>>, vector<19x24x4xf32>
    tpu.vector_store %arg18[%c0_9, %c0_10, %c0_11], %13 {strides = array<i32>} : memref<19x24x4xf32, #tpu.memory_space<vmem>>, vector<19x24x4xf32>,
    %15 = vector.shape_cast %12 : vector<256x4xf32> to vector<16x16x4xf32>
    %c1_12 = arith.constant 1 : index
    %c1_13 = arith.constant 1 : index
    %c0_14 = arith.constant 0 : index
    %16 = vector.load %arg18[%c1_12, %c1_13, %c0_14] : memref<19x24x4xf32, #tpu.memory_space<vmem>>, vector<16x16x4xf32>
    tpu.vector_store %arg18[%c1_12, %c1_13, %c0_14], %15 {strides = array<i32>} : memref<19x24x4xf32, #tpu.memory_space<vmem>>, vector<16x16x4xf32>,
    %c0_15 = arith.constant 0 : index
    %c0_16 = arith.constant 0 : index
    %c0_17 = arith.constant 0 : index
    %17 = vector.load %arg18[%c0_15, %c0_16, %c0_17] : memref<19x24x4xf32, #tpu.memory_space<vmem>>, vector<19x24x4xf32>
    %18 = vector.shape_cast %17 : vector<19x24x4xf32> to vector<456x4xf32>
    %cst_18 = arith.constant 0.000000e+00 : f32
    %19 = vector.broadcast %cst_18 : f32 to vector<384x4xf32>
    %20 = vector.extract_strided_slice %18 {offsets = [0, 0], sizes = [384, 4], strides = [1, 1]} : vector<456x4xf32> to vector<384x4xf32>
    %21 = arith.truncf %20 : vector<384x4xf32> to vector<384x4xbf16>
    %c0_19 = arith.constant 0 : index
    %c0_20 = arith.constant 0 : index
    %c0_21 = arith.constant 0 : index
    %22 = vector.load %arg4[%c0_19, %c0_20, %c0_21] : memref<9x4x4xbf16, #tpu.memory_space<vmem>>, vector<1x4x4xbf16>
    %23 = vector.shape_cast %22 : vector<1x4x4xbf16> to vector<4x4xbf16>
    %cst_22 = arith.constant dense<0.000000e+00> : vector<384x4xf32>
    %24 = tpu.matmul %21, %23, %cst_22 {dimension_numbers = #tpu.dot_dimension_numbers<[1], [0], [0], [1], [0, 0, 1, 1], [], []>} : vector<384x4xbf16>, vector<4x4xbf16>, vector<384x4xf32> -> vector<384x4xf32>
    %25 = arith.addf %19, %24 : vector<384x4xf32>
    %26 = vector.extract_strided_slice %18 {offsets = [1, 0], sizes = [384, 4], strides = [1, 1]} : vector<456x4xf32> to vector<384x4xf32>
    %27 = arith.truncf %26 : vector<384x4xf32> to vector<384x4xbf16>
    %c1_23 = arith.constant 1 : index
    %c0_24 = arith.constant 0 : index
    %c0_25 = arith.constant 0 : index
    %28 = vector.load %arg4[%c1_23, %c0_24, %c0_25] : memref<9x4x4xbf16, #tpu.memory_space<vmem>>, vector<1x4x4xbf16>
    %29 = vector.shape_cast %28 : vector<1x4x4xbf16> to vector<4x4xbf16>
    %cst_26 = arith.constant dense<0.000000e+00> : vector<384x4xf32>
    %30 = tpu.matmul %27, %29, %cst_26 {dimension_numbers = #tpu.dot_dimension_numbers<[1], [0], [0], [1], [0, 0, 1, 1], [], []>} : vector<384x4xbf16>, vector<4x4xbf16>, vector<384x4xf32> -> vector<384x4xf32>
    %31 = arith.addf %25, %30 : vector<384x4xf32>
    %32 = vector.extract_strided_slice %18 {offsets = [2, 0], sizes = [384, 4], strides = [1, 1]} : vector<456x4xf32> to vector<384x4xf32>
    %33 = arith.truncf %32 : vector<384x4xf32> to vector<384x4xbf16>
    %c2 = arith.constant 2 : index
    %c0_27 = arith.constant 0 : index
    %c0_28 = arith.constant 0 : index
    %34 = vector.load %arg4[%c2, %c0_27, %c0_28] : memref<9x4x4xbf16, #tpu.memory_space<vmem>>, vector<1x4x4xbf16>
    %35 = vector.shape_cast %34 : vector<1x4x4xbf16> to vector<4x4xbf16>
    %cst_29 = arith.constant dense<0.000000e+00> : vector<384x4xf32>
    %36 = tpu.matmul %33, %35, %cst_29 {dimension_numbers = #tpu.dot_dimension_numbers<[1], [0], [0], [1], [0, 0, 1, 1], [], []>} : vector<384x4xbf16>, vector<4x4xbf16>, vector<384x4xf32> -> vector<384x4xf32>
    %37 = arith.addf %31, %36 : vector<384x4xf32>
    %38 = vector.extract_strided_slice %18 {offsets = [24, 0], sizes = [384, 4], strides = [1, 1]} : vector<456x4xf32> to vector<384x4xf32>
    %39 = arith.truncf %38 : vector<384x4xf32> to vector<384x4xbf16>
    %c3 = arith.constant 3 : index
    %c0_30 = arith.constant 0 : index
    %c0_31 = arith.constant 0 : index
    %40 = vector.load %arg4[%c3, %c0_30, %c0_31] : memref<9x4x4xbf16, #tpu.memory_space<vmem>>, vector<1x4x4xbf16>
    %41 = vector.shape_cast %40 : vector<1x4x4xbf16> to vector<4x4xbf16>
    %cst_32 = arith.constant dense<0.000000e+00> : vector<384x4xf32>
    %42 = tpu.matmul %39, %41, %cst_32 {dimension_numbers = #tpu.dot_dimension_numbers<[1], [0], [0], [1], [0, 0, 1, 1], [], []>} : vector<384x4xbf16>, vector<4x4xbf16>, vector<384x4xf32> -> vector<384x4xf32>
    %43 = arith.addf %37, %42 : vector<384x4xf32>
    %44 = vector.extract_strided_slice %18 {offsets = [25, 0], sizes = [384, 4], strides = [1, 1]} : vector<456x4xf32> to vector<384x4xf32>
    %45 = arith.truncf %44 : vector<384x4xf32> to vector<384x4xbf16>
    %c4 = arith.constant 4 : index
    %c0_33 = arith.constant 0 : index
    %c0_34 = arith.constant 0 : index
    %46 = vector.load %arg4[%c4, %c0_33, %c0_34] : memref<9x4x4xbf16, #tpu.memory_space<vmem>>, vector<1x4x4xbf16>
    %47 = vector.shape_cast %46 : vector<1x4x4xbf16> to vector<4x4xbf16>
    %cst_35 = arith.constant dense<0.000000e+00> : vector<384x4xf32>
    %48 = tpu.matmul %45, %47, %cst_35 {dimension_numbers = #tpu.dot_dimension_numbers<[1], [0], [0], [1], [0, 0, 1, 1], [], []>} : vector<384x4xbf16>, vector<4x4xbf16>, vector<384x4xf32> -> vector<384x4xf32>
    %49 = arith.addf %43, %48 : vector<384x4xf32>
    %50 = vector.extract_strided_slice %18 {offsets = [26, 0], sizes = [384, 4], strides = [1, 1]} : vector<456x4xf32> to vector<384x4xf32>
    %51 = arith.truncf %50 : vector<384x4xf32> to vector<384x4xbf16>
    %c5 = arith.constant 5 : index
    %c0_36 = arith.constant 0 : index
    %c0_37 = arith.constant 0 : index
    %52 = vector.load %arg4[%c5, %c0_36, %c0_37] : memref<9x4x4xbf16, #tpu.memory_space<vmem>>, vector<1x4x4xbf16>
    %53 = vector.shape_cast %52 : vector<1x4x4xbf16> to vector<4x4xbf16>
    %cst_38 = arith.constant dense<0.000000e+00> : vector<384x4xf32>
    %54 = tpu.matmul %51, %53, %cst_38 {dimension_numbers = #tpu.dot_dimension_numbers<[1], [0], [0], [1], [0, 0, 1, 1], [], []>} : vector<384x4xbf16>, vector<4x4xbf16>, vector<384x4xf32> -> vector<384x4xf32>
    %55 = arith.addf %49, %54 : vector<384x4xf32>
    %56 = vector.extract_strided_slice %18 {offsets = [48, 0], sizes = [384, 4], strides = [1, 1]} : vector<456x4xf32> to vector<384x4xf32>
    %57 = arith.truncf %56 : vector<384x4xf32> to vector<384x4xbf16>
    %c6 = arith.constant 6 : index
    %c0_39 = arith.constant 0 : index
    %c0_40 = arith.constant 0 : index
    %58 = vector.load %arg4[%c6, %c0_39, %c0_40] : memref<9x4x4xbf16, #tpu.memory_space<vmem>>, vector<1x4x4xbf16>
    %59 = vector.shape_cast %58 : vector<1x4x4xbf16> to vector<4x4xbf16>
    %cst_41 = arith.constant dense<0.000000e+00> : vector<384x4xf32>
    %60 = tpu.matmul %57, %59, %cst_41 {dimension_numbers = #tpu.dot_dimension_numbers<[1], [0], [0], [1], [0, 0, 1, 1], [], []>} : vector<384x4xbf16>, vector<4x4xbf16>, vector<384x4xf32> -> vector<384x4xf32>
    %61 = arith.addf %55, %60 : vector<384x4xf32>
    %62 = vector.extract_strided_slice %18 {offsets = [49, 0], sizes = [384, 4], strides = [1, 1]} : vector<456x4xf32> to vector<384x4xf32>
    %63 = arith.truncf %62 : vector<384x4xf32> to vector<384x4xbf16>
    %c7 = arith.constant 7 : index
    %c0_42 = arith.constant 0 : index
    %c0_43 = arith.constant 0 : index
    %64 = vector.load %arg4[%c7, %c0_42, %c0_43] : memref<9x4x4xbf16, #tpu.memory_space<vmem>>, vector<1x4x4xbf16>
    %65 = vector.shape_cast %64 : vector<1x4x4xbf16> to vector<4x4xbf16>
    %cst_44 = arith.constant dense<0.000000e+00> : vector<384x4xf32>
    %66 = tpu.matmul %63, %65, %cst_44 {dimension_numbers = #tpu.dot_dimension_numbers<[1], [0], [0], [1], [0, 0, 1, 1], [], []>} : vector<384x4xbf16>, vector<4x4xbf16>, vector<384x4xf32> -> vector<384x4xf32>
    %67 = arith.addf %61, %66 : vector<384x4xf32>
    %68 = vector.extract_strided_slice %18 {offsets = [50, 0], sizes = [384, 4], strides = [1, 1]} : vector<456x4xf32> to vector<384x4xf32>
    %69 = arith.truncf %68 : vector<384x4xf32> to vector<384x4xbf16>
    %c8 = arith.constant 8 : index
    %c0_45 = arith.constant 0 : index
    %c0_46 = arith.constant 0 : index
    %70 = vector.load %arg4[%c8, %c0_45, %c0_46] : memref<9x4x4xbf16, #tpu.memory_space<vmem>>, vector<1x4x4xbf16>
    %71 = vector.shape_cast %70 : vector<1x4x4xbf16> to vector<4x4xbf16>
    %cst_47 = arith.constant dense<0.000000e+00> : vector<384x4xf32>
    %72 = tpu.matmul %69, %71, %cst_47 {dimension_numbers = #tpu.dot_dimension_numbers<[1], [0], [0], [1], [0, 0, 1, 1], [], []>} : vector<384x4xbf16>, vector<4x4xbf16>, vector<384x4xf32> -> vector<384x4xf32>
    %73 = arith.addf %67, %72 : vector<384x4xf32>
    %74 = vector.shape_cast %73 : vector<384x4xf32> to vector<16x24x4xf32>
    %75 = vector.extract_strided_slice %74 {offsets = [0, 0, 0], sizes = [16, 16, 4], strides = [1, 1, 1]} : vector<16x24x4xf32> to vector<16x16x4xf32>
    %76 = vector.shape_cast %75 : vector<16x16x4xf32> to vector<256x4xf32>
    %cst_48 = arith.constant dense<0.000000e+00> : vector<4xf32>
    %77 = vector.multi_reduction <add>, %76, %cst_48 [0] : vector<256x4xf32> to vector<4xf32>
    %78 = vector.shape_cast %77 : vector<4xf32> to vector<1x4xf32>
    %cst_49 = arith.constant 3.906250e-03 : f32
    %79 = vector.broadcast %cst_49 : f32 to vector<1x4xf32>
    %80 = arith.mulf %78, %79 : vector<1x4xf32>
    %c0_50 = arith.constant 0 : index
    %c0_51 = arith.constant 0 : index
    %81 = vector.load %arg5[%c0_50, %c0_51] : memref<4x4xf32, #tpu.memory_space<vmem>>, vector<4x4xf32>
    %cst_52 = arith.constant dense<0.000000e+00> : vector<1x4xf32>
    %82 = tpu.matmul %80, %81, %cst_52 {dimension_numbers = #tpu.dot_dimension_numbers<[1], [0], [0], [1], [0, 0, 1, 1], [], []>} : vector<1x4xf32>, vector<4x4xf32>, vector<1x4xf32> -> vector<1x4xf32>
    %c0_53 = arith.constant 0 : index
    %c0_54 = arith.constant 0 : index
    %83 = vector.load %arg6[%c0_53, %c0_54] : memref<1x4xf32, #tpu.memory_space<vmem>>, vector<1x4xf32>
    %84 = arith.addf %82, %83 : vector<1x4xf32>
    %cst_55 = arith.constant 0.000000e+00 : f32
    %85 = vector.broadcast %cst_55 : f32 to vector<1x4xf32>
    %86 = arith.maximumf %84, %85 : vector<1x4xf32>
    %c0_56 = arith.constant 0 : index
    %c0_57 = arith.constant 0 : index
    %87 = vector.load %arg7[%c0_56, %c0_57] : memref<4x4xf32, #tpu.memory_space<vmem>>, vector<4x4xf32>
    %cst_58 = arith.constant dense<0.000000e+00> : vector<1x4xf32>
    %88 = tpu.matmul %86, %87, %cst_58 {dimension_numbers = #tpu.dot_dimension_numbers<[1], [0], [0], [1], [0, 0, 1, 1], [], []>} : vector<1x4xf32>, vector<4x4xf32>, vector<1x4xf32> -> vector<1x4xf32>
    %c0_59 = arith.constant 0 : index
    %c0_60 = arith.constant 0 : index
    %89 = vector.load %arg8[%c0_59, %c0_60] : memref<1x4xf32, #tpu.memory_space<vmem>>, vector<1x4xf32>
    %90 = arith.addf %88, %89 : vector<1x4xf32>
    %c0_61 = arith.constant 0 : index
    %c0_62 = arith.constant 0 : index
    %91 = vector.load %arg9[%c0_61, %c0_62] : memref<4x4xf32, #tpu.memory_space<vmem>>, vector<4x4xf32>
    %cst_63 = arith.constant dense<0.000000e+00> : vector<1x4xf32>
    %92 = tpu.matmul %90, %91, %cst_63 {dimension_numbers = #tpu.dot_dimension_numbers<[1], [0], [0], [1], [0, 0, 1, 1], [], []>} : vector<1x4xf32>, vector<4x4xf32>, vector<1x4xf32> -> vector<1x4xf32>
    %c0_64 = arith.constant 0 : index
    %c0_65 = arith.constant 0 : index
    %93 = vector.load %arg11[%c0_64, %c0_65] : memref<1x4xf32, #tpu.memory_space<vmem>>, vector<1x4xf32>
    %94 = arith.addf %92, %93 : vector<1x4xf32>
    %95 = arith.truncf %76 : vector<256x4xf32> to vector<256x4xbf16>
    %c0_66 = arith.constant 0 : index
    %c0_67 = arith.constant 0 : index
    %96 = vector.load %arg10[%c0_66, %c0_67] : memref<4x4xbf16, #tpu.memory_space<vmem>>, vector<4x4xbf16>
    %cst_68 = arith.constant dense<0.000000e+00> : vector<256x4xf32>
    %97 = tpu.matmul %95, %96, %cst_68 {dimension_numbers = #tpu.dot_dimension_numbers<[1], [0], [0], [1], [0, 0, 1, 1], [], []>} : vector<256x4xbf16>, vector<4x4xbf16>, vector<256x4xf32> -> vector<256x4xf32>
    %98 = vector.broadcast %94 : vector<1x4xf32> to vector<256x4xf32>
    %99 = arith.addf %97, %98 : vector<256x4xf32>
    %cst_69 = arith.constant 0.000000e+00 : f32
    %100 = vector.broadcast %cst_69 : f32 to vector<256x4xf32>
    %101 = arith.maximumf %99, %100 : vector<256x4xf32>
    %102 = arith.truncf %101 : vector<256x4xf32> to vector<256x4xbf16>
    %c0_70 = arith.constant 0 : index
    %c0_71 = arith.constant 0 : index
    %103 = vector.load %arg12[%c0_70, %c0_71] : memref<4x4xbf16, #tpu.memory_space<vmem>>, vector<4x4xbf16>
    %cst_72 = arith.constant dense<0.000000e+00> : vector<256x4xf32>
    %104 = tpu.matmul %102, %103, %cst_72 {dimension_numbers = #tpu.dot_dimension_numbers<[1], [0], [0], [1], [0, 0, 1, 1], [], []>} : vector<256x4xbf16>, vector<4x4xbf16>, vector<256x4xf32> -> vector<256x4xf32>
    %c0_73 = arith.constant 0 : index
    %c0_74 = arith.constant 0 : index
    %105 = vector.load %arg13[%c0_73, %c0_74] : memref<1x4xf32, #tpu.memory_space<vmem>>, vector<1x4xf32>
    %106 = vector.broadcast %105 : vector<1x4xf32> to vector<256x4xf32>
    %107 = arith.addf %104, %106 : vector<256x4xf32>
    %108 = arith.negf %107 : vector<256x4xf32>
    %109 = math.exp %108 : vector<256x4xf32>
    %cst_75 = arith.constant 1.000000e+00 : f32
    %110 = vector.broadcast %cst_75 : f32 to vector<256x4xf32>
    %111 = arith.addf %110, %109 : vector<256x4xf32>
    %112 = arith.divf %110, %111 : vector<256x4xf32>
    %113 = vector.broadcast %90 : vector<1x4xf32> to vector<256x4xf32>
    %114 = arith.mulf %113, %112 : vector<256x4xf32>
    %115 = arith.addf %76, %114 : vector<256x4xf32>
    %c0_76 = arith.constant 0 : index
    %c0_77 = arith.constant 0 : index
    %116 = vector.load %arg15[%c0_76, %c0_77] : memref<2x4xf32, #tpu.memory_space<vmem>>, vector<1x4xf32>
    %117 = vector.broadcast %116 : vector<1x4xf32> to vector<256x4xf32>
    %118 = arith.mulf %115, %117 : vector<256x4xf32>
    %c1_78 = arith.constant 1 : index
    %c0_79 = arith.constant 0 : index
    %119 = vector.load %arg15[%c1_78, %c0_79] : memref<2x4xf32, #tpu.memory_space<vmem>>, vector<1x4xf32>
    %120 = vector.broadcast %119 : vector<1x4xf32> to vector<256x4xf32>
    %121 = arith.addf %118, %120 : vector<256x4xf32>
    %cst_80 = arith.constant 0.000000e+00 : f32
    %122 = vector.broadcast %cst_80 : f32 to vector<256x4xf32>
    %123 = arith.maximumf %121, %122 : vector<256x4xf32>
    %124 = arith.truncf %123 : vector<256x4xf32> to vector<256x4xbf16>
    %c0_81 = arith.constant 0 : index
    %c0_82 = arith.constant 0 : index
    %125 = vector.load %arg14[%c0_81, %c0_82] : memref<4x16xbf16, #tpu.memory_space<vmem>>, vector<4x16xbf16>
    %cst_83 = arith.constant dense<0.000000e+00> : vector<256x16xf32>
    %126 = tpu.matmul %124, %125, %cst_83 {dimension_numbers = #tpu.dot_dimension_numbers<[1], [0], [0], [1], [0, 0, 1, 1], [], []>} : vector<256x4xbf16>, vector<4x16xbf16>, vector<256x16xf32> -> vector<256x16xf32>
    %c0_84 = arith.constant 0 : index
    %c0_85 = arith.constant 0 : index
    %127 = vector.load %arg16[%c0_84, %c0_85] : memref<2x16xf32, #tpu.memory_space<vmem>>, vector<1x16xf32>
    %128 = vector.broadcast %127 : vector<1x16xf32> to vector<256x16xf32>
    %129 = arith.mulf %126, %128 : vector<256x16xf32>
    %c1_86 = arith.constant 1 : index
    %c0_87 = arith.constant 0 : index
    %130 = vector.load %arg16[%c1_86, %c0_87] : memref<2x16xf32, #tpu.memory_space<vmem>>, vector<1x16xf32>
    %131 = vector.broadcast %130 : vector<1x16xf32> to vector<256x16xf32>
    %132 = arith.addf %129, %131 : vector<256x16xf32>
    %133 = arith.addf %132, %1 : vector<256x16xf32>
    %cst_88 = arith.constant 0.000000e+00 : f32
    %134 = vector.broadcast %cst_88 : f32 to vector<256x16xf32>
    %135 = arith.maximumf %133, %134 : vector<256x16xf32>
    %c0_89 = arith.constant 0 : index
    %c0_90 = arith.constant 0 : index
    %c0_91 = arith.constant 0 : index
    %136 = vector.load %arg17[%c0_89, %c0_90, %c0_91] : memref<1x256x16xf32, #tpu.memory_space<vmem>>, vector<1x256x16xf32>
    %137 = vector.shape_cast %136 : vector<1x256x16xf32> to vector<256x16xf32>
    %138 = vector.shape_cast %135 : vector<256x16xf32> to vector<1x256x16xf32>
    tpu.vector_store %arg17[%c0_89, %c0_90, %c0_91], %138 {strides = array<i32>} : memref<1x256x16xf32, #tpu.memory_space<vmem>>, vector<1x256x16xf32>,
    return
  }
  func.func @transform_0(%arg0: i32) -> (i32, i32, i32) {
    %c0_i32 = arith.constant 0 : i32
    %c0_i32_0 = arith.constant 0 : i32
    %c0_i32_1 = arith.constant 0 : i32
    return %arg0, %c0_i32, %c0_i32_0 : i32, i32, i32
  }
  func.func @transform_1(%arg0: i32) -> (i32, i32) {
    %c0_i32 = arith.constant 0 : i32
    %c0_i32_0 = arith.constant 0 : i32
    %c0_i32_1 = arith.constant 0 : i32
    return %c0_i32, %c0_i32_0 : i32, i32
  }
  func.func @transform_2(%arg0: i32) -> (i32, i32) {
    %c0_i32 = arith.constant 0 : i32
    %c0_i32_0 = arith.constant 0 : i32
    %c0_i32_1 = arith.constant 0 : i32
    return %c0_i32, %c0_i32_0 : i32, i32
  }
  func.func @transform_3(%arg0: i32) -> (i32, i32, i32) {
    %c0_i32 = arith.constant 0 : i32
    %c0_i32_0 = arith.constant 0 : i32
    %c0_i32_1 = arith.constant 0 : i32
    %c0_i32_2 = arith.constant 0 : i32
    return %c0_i32, %c0_i32_0, %c0_i32_1 : i32, i32, i32
  }
  func.func @transform_4(%arg0: i32) -> (i32, i32) {
    %c0_i32 = arith.constant 0 : i32
    %c0_i32_0 = arith.constant 0 : i32
    %c0_i32_1 = arith.constant 0 : i32
    return %c0_i32, %c0_i32_0 : i32, i32
  }
  func.func @transform_5(%arg0: i32) -> (i32, i32) {
    %c0_i32 = arith.constant 0 : i32
    %c0_i32_0 = arith.constant 0 : i32
    %c0_i32_1 = arith.constant 0 : i32
    return %c0_i32, %c0_i32_0 : i32, i32
  }
  func.func @transform_6(%arg0: i32) -> (i32, i32) {
    %c0_i32 = arith.constant 0 : i32
    %c0_i32_0 = arith.constant 0 : i32
    %c0_i32_1 = arith.constant 0 : i32
    return %c0_i32, %c0_i32_0 : i32, i32
  }
  func.func @transform_7(%arg0: i32) -> (i32, i32) {
    %c0_i32 = arith.constant 0 : i32
    %c0_i32_0 = arith.constant 0 : i32
    %c0_i32_1 = arith.constant 0 : i32
    return %c0_i32, %c0_i32_0 : i32, i32
  }
  func.func @transform_8(%arg0: i32) -> (i32, i32) {
    %c0_i32 = arith.constant 0 : i32
    %c0_i32_0 = arith.constant 0 : i32
    %c0_i32_1 = arith.constant 0 : i32
    return %c0_i32, %c0_i32_0 : i32, i32
  }
  func.func @transform_9(%arg0: i32) -> (i32, i32) {
    %c0_i32 = arith.constant 0 : i32
    %c0_i32_0 = arith.constant 0 : i32
    %c0_i32_1 = arith.constant 0 : i32
    return %c0_i32, %c0_i32_0 : i32, i32
  }
  func.func @transform_10(%arg0: i32) -> (i32, i32) {
    %c0_i32 = arith.constant 0 : i32
    %c0_i32_0 = arith.constant 0 : i32
    %c0_i32_1 = arith.constant 0 : i32
    return %c0_i32, %c0_i32_0 : i32, i32
  }
  func.func @transform_11(%arg0: i32) -> (i32, i32) {
    %c0_i32 = arith.constant 0 : i32
    %c0_i32_0 = arith.constant 0 : i32
    %c0_i32_1 = arith.constant 0 : i32
    return %c0_i32, %c0_i32_0 : i32, i32
  }
  func.func @transform_12(%arg0: i32) -> (i32, i32) {
    %c0_i32 = arith.constant 0 : i32
    %c0_i32_0 = arith.constant 0 : i32
    %c0_i32_1 = arith.constant 0 : i32
    return %c0_i32, %c0_i32_0 : i32, i32
  }
  func.func @transform_13(%arg0: i32) -> (i32, i32) {
    %c0_i32 = arith.constant 0 : i32
    %c0_i32_0 = arith.constant 0 : i32
    %c0_i32_1 = arith.constant 0 : i32
    return %c0_i32, %c0_i32_0 : i32, i32
  }
  func.func @transform_14(%arg0: i32) -> (i32, i32) {
    %c0_i32 = arith.constant 0 : i32
    %c0_i32_0 = arith.constant 0 : i32
    %c0_i32_1 = arith.constant 0 : i32
    return %c0_i32, %c0_i32_0 : i32, i32
  }
  func.func @transform_15(%arg0: i32) -> (i32, i32) {
    %c0_i32 = arith.constant 0 : i32
    %c0_i32_0 = arith.constant 0 : i32
    %c0_i32_1 = arith.constant 0 : i32
    return %c0_i32, %c0_i32_0 : i32, i32
  }
  func.func @transform_16(%arg0: i32) -> (i32, i32, i32) {
    %c0_i32 = arith.constant 0 : i32
    %c0_i32_0 = arith.constant 0 : i32
    %c0_i32_1 = arith.constant 0 : i32
    return %arg0, %c0_i32, %c0_i32_0 : i32, i32, i32
  }
}

</mosaic_0001>

<llo_original>
// kernel: tpu_custom_call.1
$region0: #{tpu_custom_call.1}
  #allocation0 [shape = 'u32[]', space=smem, size = 0x4, offset = 0x4, fixed_abs, tag = 'smem constant byte address 0x4 - core index']
  #allocation1 [shape = 'u32[144,128]{1,0:T(1,128)}', space=vmem, size = 0x12000, scoped, tag = 'internal scratch']
  #allocation2 [shape = 'f32[19,24,4]{2,1,0:T(8,128)}', space=vmem, size = 0x39000, scoped, tag = 'scratch operand']
  %s0 = inlined_call_operand.vmem [shape: f32[2,256,16], index: 0, kind: input, shape index: {}]
  %s1 = inlined_call_operand.vmem [shape: bf16[16,4], index: 1, kind: input, shape index: {}]
  %s2 = inlined_call_operand.vmem [shape: f32[2,4], index: 2, kind: input, shape index: {}]
  %s3 = inlined_call_operand.vmem [shape: bf16[9,4,4], index: 3, kind: input, shape index: {}]
  %s4 = inlined_call_operand.vmem [shape: f32[4,4], index: 4, kind: input, shape index: {}]
  %s5 = inlined_call_operand.vmem [shape: f32[1,4], index: 5, kind: input, shape index: {}]
  %s6 = inlined_call_operand.vmem [shape: f32[4,4], index: 6, kind: input, shape index: {}]
  %s7 = inlined_call_operand.vmem [shape: f32[1,4], index: 7, kind: input, shape index: {}]
  %s8 = inlined_call_operand.vmem [shape: f32[4,4], index: 8, kind: input, shape index: {}]
  %s9 = inlined_call_operand.vmem [shape: bf16[4,4], index: 9, kind: input, shape index: {}]
  %s10 = inlined_call_operand.vmem [shape: f32[1,4], index: 10, kind: input, shape index: {}]
  %s11 = inlined_call_operand.vmem [shape: bf16[4,4], index: 11, kind: input, shape index: {}]
  %s12 = inlined_call_operand.vmem [shape: f32[1,4], index: 12, kind: input, shape index: {}]
  %s13 = inlined_call_operand.vmem [shape: bf16[4,16], index: 13, kind: input, shape index: {}]
  %s14 = inlined_call_operand.vmem [shape: f32[2,4], index: 14, kind: input, shape index: {}]
  %s15 = inlined_call_operand.vmem [shape: f32[2,16], index: 15, kind: input, shape index: {}]
  %s16 = inlined_call_operand.vmem [shape: f32[2,256,16], index: 16, kind: output, shape index: {}]
  %s17 = sld [smem:[#allocation0]]
  $region97: #{tpu_custom_call.1} parent=0
    _
  %s19 = ssub.s32 1, %s17
  %s20 = scalar_select 0, %s19, %s17
  loop: start=0, step=1, limit=4
  $region2: #{tpu_custom_call.1} parent=0 // loop_pre_header
    _
  $region3: #{tpu_custom_call.1} parent=0 // loop_header
    %s22 = sphi 0, %s26
    %p23 = scmp.ge.s32.totalorder %s22, 4
    %s32 = sphi 0, %s34
    %s35 = sphi 0, %s32
    %s36 = sphi 0, %s35
    %s52 = sphi 0, %s36
    %s56 = sphi 0, %s56
    %s58 = sphi 0, %s56
    %s59 = sphi 0, %s58
    %s73 = sphi 0, %s59
    %s77 = sphi 0, %s77
    %s79 = sphi 0, %s77
    %s80 = sphi 0, %s79
    %s94 = sphi 0, %s80
    %s98 = sphi 0, %s98
    %s100 = sphi 0, %s98
    %s101 = sphi 0, %s100
    %s115 = sphi 0, %s101
    %s119 = sphi 0, %s119
    %s121 = sphi 0, %s119
    %s122 = sphi 0, %s121
    %s136 = sphi 0, %s122
    %s140 = sphi 0, %s140
    %s142 = sphi 0, %s140
    %s143 = sphi 0, %s142
    %s157 = sphi 0, %s143
    %s161 = sphi 0, %s161
    %s163 = sphi 0, %s161
    %s164 = sphi 0, %s163
    %s178 = sphi 0, %s164
    %s182 = sphi 0, %s182
    %s184 = sphi 0, %s182
    %s185 = sphi 0, %s184
    %s199 = sphi 0, %s185
    %s203 = sphi 0, %s203
    %s205 = sphi 0, %s203
    %s206 = sphi 0, %s205
    %s220 = sphi 0, %s206
    %s224 = sphi 0, %s224
    %s226 = sphi 0, %s224
    %s227 = sphi 0, %s226
    %s241 = sphi 0, %s227
    %s245 = sphi 0, %s245
    %s247 = sphi 0, %s245
    %s248 = sphi 0, %s247
    %s262 = sphi 0, %s248
    %s266 = sphi 0, %s266
    %s268 = sphi 0, %s266
    %s269 = sphi 0, %s268
    %s283 = sphi 0, %s269
    %s287 = sphi 0, %s287
    %s289 = sphi 0, %s287
    %s290 = sphi 0, %s289
    %s304 = sphi 0, %s290
    %s308 = sphi 0, %s308
    %s310 = sphi 0, %s308
    %s311 = sphi 0, %s310
    %s325 = sphi 0, %s311
    %s329 = sphi 0, %s329
    %s331 = sphi 0, %s329
    %s332 = sphi 0, %s331
    %s346 = sphi 0, %s332
    %s350 = sphi 0, %s350
    %s352 = sphi 0, %s350
    %s353 = sphi 0, %s352
    %s367 = sphi 0, %s353
    %s373 = sphi 0, %s375
    %s376 = sphi 0, %s373
    %s377 = sphi 0, %s376
    %s393 = sphi 0, %s377
  $region4: #{tpu_custom_call.1} parent=0 // loop_header_branch
    %25 = sbr.rel (%p23) target = $region8
  $region5: #{tpu_custom_call.1} parent=0 // loop_body
    %s27 = ssub.s32 %s22, 1
    %s28 = ssub.s32 %s22, 2
    %s29 = sadd.s32 %s22, 1
    %s30 = ssub.s32 %s22, %s29
    %p31 = scmp.eq.s32.totalorder %s30, 0
    %s33 = sadd.s32 %s32, 1
    %s34 = scalar_select %p31, %s32, %s33
    %p37 = pneg %p31
    %p38 = scmp.eq.s32.totalorder %s22, 1
    %p39 = por %p37, %p38
    %p40 = scmp.ne.s32.totalorder %s32, %s35
    %p41 = scmp.eq.s32.totalorder %s22, 0
    %p42 = por %p40, %p41
    %p43 = scmp.ne.s32.totalorder %s32, %s35
    %p44 = scmp.eq.s32.totalorder %s27, 1
    %p45 = por %p43, %p44
    %p46 = scmp.ne.s32.totalorder %s35, %s36
    %p47 = scmp.eq.s32.totalorder %s27, 0
    %p48 = por %p46, %p47
    %p49 = scmp.ne.s32.totalorder %s35, %s36
    %p50 = scmp.eq.s32.totalorder %s28, 1
    %p51 = por %p49, %p50
    %p53 = scmp.ne.s32.totalorder %s36, %s52
    %p54 = scmp.eq.s32.totalorder %s28, 0
    %p55 = por %p53, %p54
    %s57 = sadd.s32 %s56, 1
    %p60 = scmp.eq.s32.totalorder %s22, 1
    %p61 = scmp.ne.s32.totalorder %s56, %s58
    %p62 = scmp.eq.s32.totalorder %s22, 0
    %p63 = por %p61, %p62
    %p64 = scmp.ne.s32.totalorder %s56, %s58
    %p65 = scmp.eq.s32.totalorder %s27, 1
    %p66 = por %p64, %p65
    %p67 = scmp.ne.s32.totalorder %s58, %s59
    %p68 = scmp.eq.s32.totalorder %s27, 0
    %p69 = por %p67, %p68
    %p70 = scmp.ne.s32.totalorder %s58, %s59
    %p71 = scmp.eq.s32.totalorder %s28, 1
    %p72 = por %p70, %p71
    %p74 = scmp.ne.s32.totalorder %s59, %s73
    %p75 = scmp.eq.s32.totalorder %s28, 0
    %p76 = por %p74, %p75
    %s78 = sadd.s32 %s77, 1
    %p81 = scmp.eq.s32.totalorder %s22, 1
    %p82 = scmp.ne.s32.totalorder %s77, %s79
    %p83 = scmp.eq.s32.totalorder %s22, 0
    %p84 = por %p82, %p83
    %p85 = scmp.ne.s32.totalorder %s77, %s79
    %p86 = scmp.eq.s32.totalorder %s27, 1
    %p87 = por %p85, %p86
    %p88 = scmp.ne.s32.totalorder %s79, %s80
    %p89 = scmp.eq.s32.totalorder %s27, 0
    %p90 = por %p88, %p89
    %p91 = scmp.ne.s32.totalorder %s79, %s80
    %p92 = scmp.eq.s32.totalorder %s28, 1
    %p93 = por %p91, %p92
    %p95 = scmp.ne.s32.totalorder %s80, %s94
    %p96 = scmp.eq.s32.totalorder %s28, 0
    %p97 = por %p95, %p96
    %s99 = sadd.s32 %s98, 1
    %p102 = scmp.eq.s32.totalorder %s22, 1
    %p103 = scmp.ne.s32.totalorder %s98, %s100
    %p104 = scmp.eq.s32.totalorder %s22, 0
    %p105 = por %p103, %p104
    %p106 = scmp.ne.s32.totalorder %s98, %s100
    %p107 = scmp.eq.s32.totalorder %s27, 1
    %p108 = por %p106, %p107
    %p109 = scmp.ne.s32.totalorder %s100, %s101
    %p110 = scmp.eq.s32.totalorder %s27, 0
    %p111 = por %p109, %p110
    %p112 = scmp.ne.s32.totalorder %s100, %s101
    %p113 = scmp.eq.s32.totalorder %s28, 1
    %p114 = por %p112, %p113
    %p116 = scmp.ne.s32.totalorder %s101, %s115
    %p117 = scmp.eq.s32.totalorder %s28, 0
    %p118 = por %p116, %p117
    %s120 = sadd.s32 %s119, 1
    %p123 = scmp.eq.s32.totalorder %s22, 1
    %p124 = scmp.ne.s32.totalorder %s119, %s121
    %p125 = scmp.eq.s32.totalorder %s22, 0
    %p126 = por %p124, %p125
    %p127 = scmp.ne.s32.totalorder %s119, %s121
    %p128 = scmp.eq.s32.totalorder %s27, 1
    %p129 = por %p127, %p128
    %p130 = scmp.ne.s32.totalorder %s121, %s122
    %p131 = scmp.eq.s32.totalorder %s27, 0
    %p132 = por %p130, %p131
    %p133 = scmp.ne.s32.totalorder %s121, %s122
    %p134 = scmp.eq.s32.totalorder %s28, 1
    %p135 = por %p133, %p134
    %p137 = scmp.ne.s32.totalorder %s122, %s136
    %p138 = scmp.eq.s32.totalorder %s28, 0
    %p139 = por %p137, %p138
    %s141 = sadd.s32 %s140, 1
    %p144 = scmp.eq.s32.totalorder %s22, 1
    %p145 = scmp.ne.s32.totalorder %s140, %s142
    %p146 = scmp.eq.s32.totalorder %s22, 0
    %p147 = por %p145, %p146
    %p148 = scmp.ne.s32.totalorder %s140, %s142
    %p149 = scmp.eq.s32.totalorder %s27, 1
    %p150 = por %p148, %p149
    %p151 = scmp.ne.s32.totalorder %s142, %s143
    %p152 = scmp.eq.s32.totalorder %s27, 0
    %p153 = por %p151, %p152
    %p154 = scmp.ne.s32.totalorder %s142, %s143
    %p155 = scmp.eq.s32.totalorder %s28, 1
    %p156 = por %p154, %p155
    %p158 = scmp.ne.s32.totalorder %s143, %s157
    %p159 = scmp.eq.s32.totalorder %s28, 0
    %p160 = por %p158, %p159
    %s162 = sadd.s32 %s161, 1
    %p165 = scmp.eq.s32.totalorder %s22, 1
    %p166 = scmp.ne.s32.totalorder %s161, %s163
    %p167 = scmp.eq.s32.totalorder %s22, 0
    %p168 = por %p166, %p167
    %p169 = scmp.ne.s32.totalorder %s161, %s163
    %p170 = scmp.eq.s32.totalorder %s27, 1
    %p171 = por %p169, %p170
    %p172 = scmp.ne.s32.totalorder %s163, %s164
    %p173 = scmp.eq.s32.totalorder %s27, 0
    %p174 = por %p172, %p173
    %p175 = scmp.ne.s32.totalorder %s163, %s164
    %p176 = scmp.eq.s32.totalorder %s28, 1
    %p177 = por %p175, %p176
    %p179 = scmp.ne.s32.totalorder %s164, %s178
    %p180 = scmp.eq.s32.totalorder %s28, 0
    %p181 = por %p179, %p180
    %s183 = sadd.s32 %s182, 1
    %p186 = scmp.eq.s32.totalorder %s22, 1
    %p187 = scmp.ne.s32.totalorder %s182, %s184
    %p188 = scmp.eq.s32.totalorder %s22, 0
    %p189 = por %p187, %p188
    %p190 = scmp.ne.s32.totalorder %s182, %s184
    %p191 = scmp.eq.s32.totalorder %s27, 1
    %p192 = por %p190, %p191
    %p193 = scmp.ne.s32.totalorder %s184, %s185
    %p194 = scmp.eq.s32.totalorder %s27, 0
    %p195 = por %p193, %p194
    %p196 = scmp.ne.s32.totalorder %s184, %s185
    %p197 = scmp.eq.s32.totalorder %s28, 1
    %p198 = por %p196, %p197
    %p200 = scmp.ne.s32.totalorder %s185, %s199
    %p201 = scmp.eq.s32.totalorder %s28, 0
    %p202 = por %p200, %p201
    %s204 = sadd.s32 %s203, 1
    %p207 = scmp.eq.s32.totalorder %s22, 1
    %p208 = scmp.ne.s32.totalorder %s203, %s205
    %p209 = scmp.eq.s32.totalorder %s22, 0
    %p210 = por %p208, %p209
    %p211 = scmp.ne.s32.totalorder %s203, %s205
    %p212 = scmp.eq.s32.totalorder %s27, 1
    %p213 = por %p211, %p212
    %p214 = scmp.ne.s32.totalorder %s205, %s206
    %p215 = scmp.eq.s32.totalorder %s27, 0
    %p216 = por %p214, %p215
    %p217 = scmp.ne.s32.totalorder %s205, %s206
    %p218 = scmp.eq.s32.totalorder %s28, 1
    %p219 = por %p217, %p218
    %p221 = scmp.ne.s32.totalorder %s206, %s220
    %p222 = scmp.eq.s32.totalorder %s28, 0
    %p223 = por %p221, %p222
    %s225 = sadd.s32 %s224, 1
    %p228 = scmp.eq.s32.totalorder %s22, 1
    %p229 = scmp.ne.s32.totalorder %s224, %s226
    %p230 = scmp.eq.s32.totalorder %s22, 0
    %p231 = por %p229, %p230
    %p232 = scmp.ne.s32.totalorder %s224, %s226
    %p233 = scmp.eq.s32.totalorder %s27, 1
    %p234 = por %p232, %p233
    %p235 = scmp.ne.s32.totalorder %s226, %s227
    %p236 = scmp.eq.s32.totalorder %s27, 0
    %p237 = por %p235, %p236
    %p238 = scmp.ne.s32.totalorder %s226, %s227
    %p239 = scmp.eq.s32.totalorder %s28, 1
    %p240 = por %p238, %p239
    %p242 = scmp.ne.s32.totalorder %s227, %s241
    %p243 = scmp.eq.s32.totalorder %s28, 0
    %p244 = por %p242, %p243
    %s246 = sadd.s32 %s245, 1
    %p249 = scmp.eq.s32.totalorder %s22, 1
    %p250 = scmp.ne.s32.totalorder %s245, %s247
    %p251 = scmp.eq.s32.totalorder %s22, 0
    %p252 = por %p250, %p251
    %p253 = scmp.ne.s32.totalorder %s245, %s247
    %p254 = scmp.eq.s32.totalorder %s27, 1
    %p255 = por %p253, %p254
    %p256 = scmp.ne.s32.totalorder %s247, %s248
    %p257 = scmp.eq.s32.totalorder %s27, 0
    %p258 = por %p256, %p257
    %p259 = scmp.ne.s32.totalorder %s247, %s248
    %p260 = scmp.eq.s32.totalorder %s28, 1
    %p261 = por %p259, %p260
    %p263 = scmp.ne.s32.totalorder %s248, %s262
    %p264 = scmp.eq.s32.totalorder %s28, 0
    %p265 = por %p263, %p264
    %s267 = sadd.s32 %s266, 1
    %p270 = scmp.eq.s32.totalorder %s22, 1
    %p271 = scmp.ne.s32.totalorder %s266, %s268
    %p272 = scmp.eq.s32.totalorder %s22, 0
    %p273 = por %p271, %p272
    %p274 = scmp.ne.s32.totalorder %s266, %s268
    %p275 = scmp.eq.s32.totalorder %s27, 1
    %p276 = por %p274, %p275
    %p277 = scmp.ne.s32.totalorder %s268, %s269
    %p278 = scmp.eq.s32.totalorder %s27, 0
    %p279 = por %p277, %p278
    %p280 = scmp.ne.s32.totalorder %s268, %s269
    %p281 = scmp.eq.s32.totalorder %s28, 1
    %p282 = por %p280, %p281
    %p284 = scmp.ne.s32.totalorder %s269, %s283
    %p285 = scmp.eq.s32.totalorder %s28, 0
    %p286 = por %p284, %p285
    %s288 = sadd.s32 %s287, 1
    %p291 = scmp.eq.s32.totalorder %s22, 1
    %p292 = scmp.ne.s32.totalorder %s287, %s289
    %p293 = scmp.eq.s32.totalorder %s22, 0
    %p294 = por %p292, %p293
    %p295 = scmp.ne.s32.totalorder %s287, %s289
    %p296 = scmp.eq.s32.totalorder %s27, 1
    %p297 = por %p295, %p296
    %p298 = scmp.ne.s32.totalorder %s289, %s290
    %p299 = scmp.eq.s32.totalorder %s27, 0
    %p300 = por %p298, %p299
    %p301 = scmp.ne.s32.totalorder %s289, %s290
    %p302 = scmp.eq.s32.totalorder %s28, 1
    %p303 = por %p301, %p302
    %p305 = scmp.ne.s32.totalorder %s290, %s304
    %p306 = scmp.eq.s32.totalorder %s28, 0
    %p307 = por %p305, %p306
    %s309 = sadd.s32 %s308, 1
    %p312 = scmp.eq.s32.totalorder %s22, 1
    %p313 = scmp.ne.s32.totalorder %s308, %s310
    %p314 = scmp.eq.s32.totalorder %s22, 0
    %p315 = por %p313, %p314
    %p316 = scmp.ne.s32.totalorder %s308, %s310
    %p317 = scmp.eq.s32.totalorder %s27, 1
    %p318 = por %p316, %p317
    %p319 = scmp.ne.s32.totalorder %s310, %s311
    %p320 = scmp.eq.s32.totalorder %s27, 0
    %p321 = por %p319, %p320
    %p322 = scmp.ne.s32.totalorder %s310, %s311
    %p323 = scmp.eq.s32.totalorder %s28, 1
    %p324 = por %p322, %p323
    %p326 = scmp.ne.s32.totalorder %s311, %s325
    %p327 = scmp.eq.s32.totalorder %s28, 0
    %p328 = por %p326, %p327
    %s330 = sadd.s32 %s329, 1
    %p333 = scmp.eq.s32.totalorder %s22, 1
    %p334 = scmp.ne.s32.totalorder %s329, %s331
    %p335 = scmp.eq.s32.totalorder %s22, 0
    %p336 = por %p334, %p335
    %p337 = scmp.ne.s32.totalorder %s329, %s331
    %p338 = scmp.eq.s32.totalorder %s27, 1
    %p339 = por %p337, %p338
    %p340 = scmp.ne.s32.totalorder %s331, %s332
    %p341 = scmp.eq.s32.totalorder %s27, 0
    %p342 = por %p340, %p341
    %p343 = scmp.ne.s32.totalorder %s331, %s332
    %p344 = scmp.eq.s32.totalorder %s28, 1
    %p345 = por %p343, %p344
    %p347 = scmp.ne.s32.totalorder %s332, %s346
    %p348 = scmp.eq.s32.totalorder %s28, 0
    %p349 = por %p347, %p348
    %s351 = sadd.s32 %s350, 1
    %p354 = scmp.eq.s32.totalorder %s22, 1
    %p355 = scmp.ne.s32.totalorder %s350, %s352
    %p356 = scmp.eq.s32.totalorder %s22, 0
    %p357 = por %p355, %p356
    %p358 = scmp.ne.s32.totalorder %s350, %s352
    %p359 = scmp.eq.s32.totalorder %s27, 1
    %p360 = por %p358, %p359
    %p361 = scmp.ne.s32.totalorder %s352, %s353
    %p362 = scmp.eq.s32.totalorder %s27, 0
    %p363 = por %p361, %p362
    %p364 = scmp.ne.s32.totalorder %s352, %s353
    %p365 = scmp.eq.s32.totalorder %s28, 1
    %p366 = por %p364, %p365
    %p368 = scmp.ne.s32.totalorder %s353, %s367
    %p369 = scmp.eq.s32.totalorder %s28, 0
    %p370 = por %p368, %p369
    %s371 = ssub.s32 %s22, %s29
    %p372 = scmp.eq.s32.totalorder %s371, 0
    %s374 = sadd.s32 %s373, 1
    %s375 = scalar_select %p372, %s373, %s374
    %p378 = pneg %p372
    %p379 = scmp.eq.s32.totalorder %s22, 1
    %p380 = por %p378, %p379
    %p381 = scmp.ne.s32.totalorder %s373, %s376
    %p382 = scmp.eq.s32.totalorder %s22, 0
    %p383 = por %p381, %p382
    %p384 = scmp.ne.s32.totalorder %s373, %s376
    %p385 = scmp.eq.s32.totalorder %s27, 1
    %p386 = por %p384, %p385
    %p387 = scmp.ne.s32.totalorder %s376, %s377
    %p388 = scmp.eq.s32.totalorder %s27, 0
    %p389 = por %p387, %p388
    %p390 = scmp.ne.s32.totalorder %s376, %s377
    %p391 = scmp.eq.s32.totalorder %s28, 1
    %p392 = por %p390, %p391
    %p394 = scmp.ne.s32.totalorder %s377, %s393
    %p395 = scmp.eq.s32.totalorder %s28, 0
    %p396 = por %p394, %p395
    %p397 = scmp.le.s32.totalorder 1, %s22
    %p398 = scmp.lt.s32.totalorder %s22, 3
    %p399 = pnand %p397, %p398
    %p400 = pneg %p399
    // Predicated region
    $region9: #{tpu_custom_call.1} parent=5 // pred_check
      _
    $region10: #{tpu_custom_call.1} parent=5 // pred_check_branch
      %402 = sbr.rel (%p399) target = $region12
    $region11: #{tpu_custom_call.1} parent=5 // pred_region
      %s403 = ssub.s32 %s22, 1
      // Predicated region
      $region13: #{tpu_custom_call.1} parent=11 // pred_check
        %p404 = pneg %p69
      $region14: #{tpu_custom_call.1} parent=11 // pred_check_branch
        %406 = sbr.rel (%p404) target = $region16
      $region15: #{tpu_custom_call.1} parent=11 // pred_region
        _
      $region16: #{tpu_custom_call.1} parent=11 // pred_fallthru
        _
      // Predicated region
      $region17: #{tpu_custom_call.1} parent=11 // pred_check
        %p407 = pneg %p90
      $region18: #{tpu_custom_call.1} parent=11 // pred_check_branch
        %409 = sbr.rel (%p407) target = $region20
      $region19: #{tpu_custom_call.1} parent=11 // pred_region
        _
      $region20: #{tpu_custom_call.1} parent=11 // pred_fallthru
        _
      // Predicated region
      $region21: #{tpu_custom_call.1} parent=11 // pred_check
        %p410 = pneg %p111
      $region22: #{tpu_custom_call.1} parent=11 // pred_check_branch
        %412 = sbr.rel (%p410) target = $region24
      $region23: #{tpu_custom_call.1} parent=11 // pred_region
        _
      $region24: #{tpu_custom_call.1} parent=11 // pred_fallthru
        _
      // Predicated region
      $region25: #{tpu_custom_call.1} parent=11 // pred_check
        %p413 = pneg %p132
      $region26: #{tpu_custom_call.1} parent=11 // pred_check_branch
        %415 = sbr.rel (%p413) target = $region28
      $region27: #{tpu_custom_call.1} parent=11 // pred_region
        _
      $region28: #{tpu_custom_call.1} parent=11 // pred_fallthru
        _
      // Predicated region
      $region29: #{tpu_custom_call.1} parent=11 // pred_check
        %p416 = pneg %p153
      $region30: #{tpu_custom_call.1} parent=11 // pred_check_branch
        %418 = sbr.rel (%p416) target = $region32
      $region31: #{tpu_custom_call.1} parent=11 // pred_region
        _
      $region32: #{tpu_custom_call.1} parent=11 // pred_fallthru
        _
      // Predicated region
      $region33: #{tpu_custom_call.1} parent=11 // pred_check
        %p419 = pneg %p174
      $region34: #{tpu_custom_call.1} parent=11 // pred_check_branch
        %421 = sbr.rel (%p419) target = $region36
      $region35: #{tpu_custom_call.1} parent=11 // pred_region
        _
      $region36: #{tpu_custom_call.1} parent=11 // pred_fallthru
        _
      // Predicated region
      $region37: #{tpu_custom_call.1} parent=11 // pred_check
        %p422 = pneg %p195
      $region38: #{tpu_custom_call.1} parent=11 // pred_check_branch
        %424 = sbr.rel (%p422) target = $region40
      $region39: #{tpu_custom_call.1} parent=11 // pred_region
        _
      $region40: #{tpu_custom_call.1} parent=11 // pred_fallthru
        _
      // Predicated region
      $region41: #{tpu_custom_call.1} parent=11 // pred_check
        %p425 = pneg %p216
      $region42: #{tpu_custom_call.1} parent=11 // pred_check_branch
        %427 = sbr.rel (%p425) target = $region44
      $region43: #{tpu_custom_call.1} parent=11 // pred_region
        _
      $region44: #{tpu_custom_call.1} parent=11 // pred_fallthru
        _
      // Predicated region
      $region45: #{tpu_custom_call.1} parent=11 // pred_check
        %p428 = pneg %p237
      $region46: #{tpu_custom_call.1} parent=11 // pred_check_branch
        %430 = sbr.rel (%p428) target = $region48
      $region47: #{tpu_custom_call.1} parent=11 // pred_region
        _
      $region48: #{tpu_custom_call.1} parent=11 // pred_fallthru
        _
      // Predicated region
      $region49: #{tpu_custom_call.1} parent=11 // pred_check
        %p431 = pneg %p258
      $region50: #{tpu_custom_call.1} parent=11 // pred_check_branch
        %433 = sbr.rel (%p431) target = $region52
      $region51: #{tpu_custom_call.1} parent=11 // pred_region
        _
      $region52: #{tpu_custom_call.1} parent=11 // pred_fallthru
        _
      // Predicated region
      $region53: #{tpu_custom_call.1} parent=11 // pred_check
        %p434 = pneg %p279
      $region54: #{tpu_custom_call.1} parent=11 // pred_check_branch
        %436 = sbr.rel (%p434) target = $region56
      $region55: #{tpu_custom_call.1} parent=11 // pred_region
        _
      $region56: #{tpu_custom_call.1} parent=11 // pred_fallthru
        _
      // Predicated region
      $region57: #{tpu_custom_call.1} parent=11 // pred_check
        %p437 = pneg %p300
      $region58: #{tpu_custom_call.1} parent=11 // pred_check_branch
        %439 = sbr.rel (%p437) target = $region60
      $region59: #{tpu_custom_call.1} parent=11 // pred_region
        _
      $region60: #{tpu_custom_call.1} parent=11 // pred_fallthru
        _
      // Predicated region
      $region61: #{tpu_custom_call.1} parent=11 // pred_check
        %p440 = pneg %p321
      $region62: #{tpu_custom_call.1} parent=11 // pred_check_branch
        %442 = sbr.rel (%p440) target = $region64
      $region63: #{tpu_custom_call.1} parent=11 // pred_region
        _
      $region64: #{tpu_custom_call.1} parent=11 // pred_fallthru
        _
      // Predicated region
      $region65: #{tpu_custom_call.1} parent=11 // pred_check
        %p443 = pneg %p342
      $region66: #{tpu_custom_call.1} parent=11 // pred_check_branch
        %445 = sbr.rel (%p443) target = $region68
      $region67: #{tpu_custom_call.1} parent=11 // pred_region
        _
      $region68: #{tpu_custom_call.1} parent=11 // pred_fallthru
        _
      // Predicated region
      $region69: #{tpu_custom_call.1} parent=11 // pred_check
        %p446 = pneg %p363
      $region70: #{tpu_custom_call.1} parent=11 // pred_check_branch
        %448 = sbr.rel (%p446) target = $region72
      $region71: #{tpu_custom_call.1} parent=11 // pred_region
        _
      $region72: #{tpu_custom_call.1} parent=11 // pred_fallthru
        _
    $region12: #{tpu_custom_call.1} parent=5 // pred_fallthru
      _
    %p449 = scmp.lt.s32.totalorder %s22, 2
    // Predicated region
    $region73: #{tpu_custom_call.1} parent=5 // pred_check
      %p450 = pneg %p449
    $region74: #{tpu_custom_call.1} parent=5 // pred_check_branch
      %452 = sbr.rel (%p450) target = $region76
    $region75: #{tpu_custom_call.1} parent=5 // pred_region
      // Predicated region
      $region77: #{tpu_custom_call.1} parent=75 // pred_check
        %p453 = pneg %p42
      $region78: #{tpu_custom_call.1} parent=75 // pred_check_branch
        %455 = sbr.rel (%p453) target = $region80
      $region79: #{tpu_custom_call.1} parent=75 // pred_region
        %p456 = scmp.lt.s32.totalorder %s22, 1
        %s457 = scalar_select %p456, %s22, 1
        %s458 = smul.addr %s457, 32
        %s459 = smul.addr %s458, 8
        %s460 = scalar_lea.vmem %s0, %s459
      $region80: #{tpu_custom_call.1} parent=75 // pred_fallthru
        _
    $region76: #{tpu_custom_call.1} parent=5 // pred_fallthru
      _
    %p461 = scmp.le.s32.totalorder 1, %s22
    %p462 = scmp.lt.s32.totalorder %s22, 3
    %p463 = pnand %p461, %p462
    %p464 = pneg %p463
    // Predicated region
    $region81: #{tpu_custom_call.1} parent=5 // pred_check
      _
    $region82: #{tpu_custom_call.1} parent=5 // pred_check_branch
      %466 = sbr.rel (%p463) target = $region84
    $region83: #{tpu_custom_call.1} parent=5 // pred_region
      %s467 = ssub.s32 %s22, 1
      %p468 = scmp.lt.s32.totalorder %s27, 1
      %s469 = scalar_select %p468, %s27, 1
      %s470 = smul.addr %s469, 32
      %s471 = smul.addr %s470, 8
      %s472 = scalar_lea.vmem %s0, %s471
      %p473 = pneg %p48
      %p474 = pneg %p45
      %p475 = pneg %p69
      %p476 = pneg %p66
      %p477 = pneg %p90
      %p478 = pneg %p87
      %p479 = pneg %p111
      %p480 = pneg %p108
      %p481 = pneg %p132
      %p482 = pneg %p129
      %p483 = pneg %p153
      %p484 = pneg %p150
      %p485 = pneg %p174
      %p486 = pneg %p171
      %p487 = pneg %p195
      %p488 = pneg %p192
      %p489 = pneg %p216
      %p490 = pneg %p213
      %p491 = pneg %p237
      %p492 = pneg %p234
      %p493 = pneg %p258
      %p494 = pneg %p255
      %p495 = pneg %p279
      %p496 = pneg %p276
      %p497 = pneg %p300
      %p498 = pneg %p297
      %p499 = pneg %p321
      %p500 = pneg %p318
      %p501 = pneg %p342
      %p502 = pneg %p339
      %p503 = pneg %p363
      %p504 = pneg %p360
      %p505 = pneg %p389
      %p506 = pneg %p386
      %p507 = scmp.lt.s32.totalorder %s27, 1
      %s508 = scalar_select %p507, %s27, 1
      %s509 = smul.addr %s508, 32
      %s510 = smul.addr %s509, 8
      %s511 = scalar_lea.vmem %s16, %s510
      %p512 = scmp.lt.s32.totalorder %s27, 1
      %s513 = scalar_select %p512, %s27, 1
      %s514 = smul.addr %s513, 32
      %s515 = smul.addr %s514, 8
      %s516 = scalar_lea.vmem %s0, %s515
      %p517 = scmp.lt.s32.totalorder %s27, 1
      %s518 = scalar_select %p517, %s27, 1
      %s519 = smul.addr %s518, 32
      %s520 = smul.addr %s519, 8
      %s521 = scalar_lea.vmem %s16, %s520
      %v523 = vld [vmem:[%s516] sm:$0xff]
      %v524 = vld [vmem:[%s516 + $0x8] sm:$0xff]
      %v525 = vld [vmem:[%s516 + $0x10] sm:$0xff]
      %v526 = vld [vmem:[%s516 + $0x18] sm:$0xff]
      %v527 = vld [vmem:[%s516 + $0x20] sm:$0xff]
      %v528 = vld [vmem:[%s516 + $0x28] sm:$0xff]
      %v529 = vld [vmem:[%s516 + $0x30] sm:$0xff]
      %v530 = vld [vmem:[%s516 + $0x38] sm:$0xff]
      %v531 = vld [vmem:[%s516 + $0x40] sm:$0xff]
      %v532 = vld [vmem:[%s516 + $0x48] sm:$0xff]
      %v533 = vld [vmem:[%s516 + $0x50] sm:$0xff]
      %v534 = vld [vmem:[%s516 + $0x58] sm:$0xff]
      %v535 = vld [vmem:[%s516 + $0x60] sm:$0xff]
      %v536 = vld [vmem:[%s516 + $0x68] sm:$0xff]
      %v537 = vld [vmem:[%s516 + $0x70] sm:$0xff]
      %v538 = vld [vmem:[%s516 + $0x78] sm:$0xff]
      %v539 = vld [vmem:[%s516 + $0x80] sm:$0xff]
      %v540 = vld [vmem:[%s516 + $0x88] sm:$0xff]
      %v541 = vld [vmem:[%s516 + $0x90] sm:$0xff]
      %v542 = vld [vmem:[%s516 + $0x98] sm:$0xff]
      %v543 = vld [vmem:[%s516 + $0xa0] sm:$0xff]
      %v544 = vld [vmem:[%s516 + $0xa8] sm:$0xff]
      %v545 = vld [vmem:[%s516 + $0xb0] sm:$0xff]
      %v546 = vld [vmem:[%s516 + $0xb8] sm:$0xff]
      %v547 = vld [vmem:[%s516 + $0xc0] sm:$0xff]
      %v548 = vld [vmem:[%s516 + $0xc8] sm:$0xff]
      %v549 = vld [vmem:[%s516 + $0xd0] sm:$0xff]
      %v550 = vld [vmem:[%s516 + $0xd8] sm:$0xff]
      %v551 = vld [vmem:[%s516 + $0xe0] sm:$0xff]
      %v552 = vld [vmem:[%s516 + $0xe8] sm:$0xff]
      %v553 = vld [vmem:[%s516 + $0xf0] sm:$0xff]
      %v554 = vld [vmem:[%s516 + $0xf8] sm:$0xff]
      %v555 = vpack.c.bf16 %v524, %v523
      %v556 = vpack.c.bf16 %v526, %v525
      %v557 = vpack.c.bf16 %v528, %v527
      %v558 = vpack.c.bf16 %v530, %v529
      %v559 = vpack.c.bf16 %v532, %v531
      %v560 = vpack.c.bf16 %v534, %v533
      %v561 = vpack.c.bf16 %v536, %v535
      %v562 = vpack.c.bf16 %v538, %v537
      %v563 = vpack.c.bf16 %v540, %v539
      %v564 = vpack.c.bf16 %v542, %v541
      %v565 = vpack.c.bf16 %v544, %v543
      %v566 = vpack.c.bf16 %v546, %v545
      %v567 = vpack.c.bf16 %v548, %v547
      %v568 = vpack.c.bf16 %v550, %v549
      %v569 = vpack.c.bf16 %v552, %v551
      %v570 = vpack.c.bf16 %v554, %v553
      %v571 = vld [vmem:[%s1] sm:$0xf]
      %v572 = vld [vmem:[%s1 + $0x4] sm:$0xf]
      %v575 = vunpack.c.l.b16 %v571
      %v576 = vunpack.c.l.b16 %v572
      %v577 = vpack.c.b16 %v576, %v575
      %vm579 = vcmask 130048
      %v581 = vsel %vm579, %v555, 0
      %v584 = vsel %vm579, %v556, 0
      %v587 = vsel %vm579, %v557, 0
      %v590 = vsel %vm579, %v558, 0
      %v593 = vsel %vm579, %v559, 0
      %v596 = vsel %vm579, %v560, 0
      %v599 = vsel %vm579, %v561, 0
      %v602 = vsel %vm579, %v562, 0
      %v605 = vsel %vm579, %v563, 0
      %v608 = vsel %vm579, %v564, 0
      %v611 = vsel %vm579, %v565, 0
      %v614 = vsel %vm579, %v566, 0
      %v617 = vsel %vm579, %v567, 0
      %v620 = vsel %vm579, %v568, 0
      %v623 = vsel %vm579, %v569, 0
      %v626 = vsel %vm579, %v570, 0
      %628 = vmatprep.subr.bf16.mxu0 0
      %629 = vmatpush1.bf16.msra.mxu0 0
      %630 = vmatprep.subr.bf16.mxu0 0
      %631 = vmatpush1.bf16.msra.mxu0 0
      %632 = vmatprep.subr.bf16.mxu0 0
      %633 = vmatpush1.bf16.msra.mxu0 0
      %634 = vmatprep.subr.bf16.mxu0 0
      %635 = vmatpush1.bf16.msra.mxu0 0
      %636 = vmatprep.subr.bf16.mxu0 0
      %637 = vmatpush1.bf16.msra.mxu0 0
      %638 = vmatprep.subr.bf16.mxu0 0
      %639 = vmatpush1.bf16.msra.mxu0 0
      %640 = vmatprep.subr.bf16.mxu0 0
      %641 = vmatpush1.bf16.msra.mxu0 0
      %642 = vmatprep.subr.bf16.mxu0 0
      %643 = vmatpush1.bf16.msra.mxu0 %v577
      %644 = vmatprep.subr.bf16.mxu0 0
      %645 = vmatpush2.bf16.msra.mxu0 0
      %646 = vmatprep.subr.bf16.mxu0 0
      %647 = vmatpush2.bf16.msra.mxu0 0
      %648 = vmatprep.subr.bf16.mxu0 0
      %649 = vmatpush2.bf16.msra.mxu0 0
      %650 = vmatprep.subr.bf16.mxu0 0
      %651 = vmatpush2.bf16.msra.mxu0 0
      %652 = vmatprep.subr.bf16.mxu0 0
      %653 = vmatpush2.bf16.msra.mxu0 0
      %654 = vmatprep.subr.bf16.mxu0 0
      %655 = vmatpush2.bf16.msra.mxu0 0
      %656 = vmatprep.subr.bf16.mxu0 0
      %657 = vmatpush2.bf16.msra.mxu0 0
      %658 = vmatprep.subr.bf16.mxu0 0
      %659 = vmatpush2.bf16.msra.mxu0 0
      %660 = vmatprep.mubr.bf16.mxu0 0
      %661 = vmatmul.mubr.bf16.gmra.mxu0 %v581
      %v662 = vpop.f32.mrf.mxu0
      %v663 = vadd.f32 0.0, %v662
      %v664 = vpop.f32.mrf.mxu0
      %v665 = vpop.f32.mrf.mxu0
      %v666 = vadd.f32 0.0, %v665
      %v667 = vpop.f32.mrf.mxu0
      %668 = vmatprep.mubr.bf16.mxu0 0
      %669 = vmatmul.mubr.bf16.gmra.mxu0 %v584
      %v670 = vpop.f32.mrf.mxu0
      %v671 = vadd.f32 0.0, %v670
      %v672 = vpop.f32.mrf.mxu0
      %v673 = vpop.f32.mrf.mxu0
      %v674 = vadd.f32 0.0, %v673
      %v675 = vpop.f32.mrf.mxu0
      %676 = vmatprep.mubr.bf16.mxu0 0
      %677 = vmatmul.mubr.bf16.gmra.mxu0 %v587
      %v678 = vpop.f32.mrf.mxu0
      %v679 = vadd.f32 0.0, %v678
      %v680 = vpop.f32.mrf.mxu0
      %v681 = vpop.f32.mrf.mxu0
      %v682 = vadd.f32 0.0, %v681
      %v683 = vpop.f32.mrf.mxu0
      %684 = vmatprep.mubr.bf16.mxu0 0
      %685 = vmatmul.mubr.bf16.gmra.mxu0 %v590
      %v686 = vpop.f32.mrf.mxu0
      %v687 = vadd.f32 0.0, %v686
      %v688 = vpop.f32.mrf.mxu0
      %v689 = vpop.f32.mrf.mxu0
      %v690 = vadd.f32 0.0, %v689
      %v691 = vpop.f32.mrf.mxu0
      %692 = vmatprep.mubr.bf16.mxu0 0
      %693 = vmatmul.mubr.bf16.gmra.mxu0 %v593
      %v694 = vpop.f32.mrf.mxu0
      %v695 = vadd.f32 0.0, %v694
      %v696 = vpop.f32.mrf.mxu0
      %v697 = vpop.f32.mrf.mxu0
      %v698 = vadd.f32 0.0, %v697
      %v699 = vpop.f32.mrf.mxu0
      %700 = vmatprep.mubr.bf16.mxu0 0
      %701 = vmatmul.mubr.bf16.gmra.mxu0 %v596
      %v702 = vpop.f32.mrf.mxu0
      %v703 = vadd.f32 0.0, %v702
      %v704 = vpop.f32.mrf.mxu0
      %v705 = vpop.f32.mrf.mxu0
      %v706 = vadd.f32 0.0, %v705
      %v707 = vpop.f32.mrf.mxu0
      %708 = vmatprep.mubr.bf16.mxu0 0
      %709 = vmatmul.mubr.bf16.gmra.mxu0 %v599
      %v710 = vpop.f32.mrf.mxu0
      %v711 = vadd.f32 0.0, %v710
      %v712 = vpop.f32.mrf.mxu0
      %v713 = vpop.f32.mrf.mxu0
      %v714 = vadd.f32 0.0, %v713
      %v715 = vpop.f32.mrf.mxu0
      %716 = vmatprep.mubr.bf16.mxu0 0
      %717 = vmatmul.mubr.bf16.gmra.mxu0 %v602
      %v718 = vpop.f32.mrf.mxu0
      %v719 = vadd.f32 0.0, %v718
      %v720 = vpop.f32.mrf.mxu0
      %v721 = vpop.f32.mrf.mxu0
      %v722 = vadd.f32 0.0, %v721
      %v723 = vpop.f32.mrf.mxu0
      %724 = vmatprep.mubr.bf16.mxu0 0
      %725 = vmatmul.mubr.bf16.gmra.mxu0 %v605
      %v726 = vpop.f32.mrf.mxu0
      %v727 = vadd.f32 0.0, %v726
      %v728 = vpop.f32.mrf.mxu0
      %v729 = vpop.f32.mrf.mxu0
      %v730 = vadd.f32 0.0, %v729
      %v731 = vpop.f32.mrf.mxu0
      %732 = vmatprep.mubr.bf16.mxu0 0
      %733 = vmatmul.mubr.bf16.gmra.mxu0 %v608
      %v734 = vpop.f32.mrf.mxu0
      %v735 = vadd.f32 0.0, %v734
      %v736 = vpop.f32.mrf.mxu0
      %v737 = vpop.f32.mrf.mxu0
      %v738 = vadd.f32 0.0, %v737
      %v739 = vpop.f32.mrf.mxu0
      %740 = vmatprep.mubr.bf16.mxu0 0
      %741 = vmatmul.mubr.bf16.gmra.mxu0 %v611
      %v742 = vpop.f32.mrf.mxu0
      %v743 = vadd.f32 0.0, %v742
      %v744 = vpop.f32.mrf.mxu0
      %v745 = vpop.f32.mrf.mxu0
      %v746 = vadd.f32 0.0, %v745
      %v747 = vpop.f32.mrf.mxu0
      %748 = vmatprep.mubr.bf16.mxu0 0
      %749 = vmatmul.mubr.bf16.gmra.mxu0 %v614
      %v750 = vpop.f32.mrf.mxu0
      %v751 = vadd.f32 0.0, %v750
      %v752 = vpop.f32.mrf.mxu0
      %v753 = vpop.f32.mrf.mxu0
      %v754 = vadd.f32 0.0, %v753
      %v755 = vpop.f32.mrf.mxu0
      %756 = vmatprep.mubr.bf16.mxu0 0
      %757 = vmatmul.mubr.bf16.gmra.mxu0 %v617
      %v758 = vpop.f32.mrf.mxu0
      %v759 = vadd.f32 0.0, %v758
      %v760 = vpop.f32.mrf.mxu0
      %v761 = vpop.f32.mrf.mxu0
      %v762 = vadd.f32 0.0, %v761
      %v763 = vpop.f32.mrf.mxu0
      %764 = vmatprep.mubr.bf16.mxu0 0
      %765 = vmatmul.mubr.bf16.gmra.mxu0 %v620
      %v766 = vpop.f32.mrf.mxu0
      %v767 = vadd.f32 0.0, %v766
      %v768 = vpop.f32.mrf.mxu0
      %v769 = vpop.f32.mrf.mxu0
      %v770 = vadd.f32 0.0, %v769
      %v771 = vpop.f32.mrf.mxu0
      %772 = vmatprep.mubr.bf16.mxu0 0
      %773 = vmatmul.mubr.bf16.gmra.mxu0 %v623
      %v774 = vpop.f32.mrf.mxu0
      %v775 = vadd.f32 0.0, %v774
      %v776 = vpop.f32.mrf.mxu0
      %v777 = vpop.f32.mrf.mxu0
      %v778 = vadd.f32 0.0, %v777
      %v779 = vpop.f32.mrf.mxu0
      %780 = vmatprep.mubr.bf16.mxu0 0
      %781 = vmatmul.mubr.bf16.gmra.mxu0 %v626
      %v782 = vpop.f32.mrf.mxu0
      %v783 = vadd.f32 0.0, %v782
      %v784 = vpop.f32.mrf.mxu0
      %v785 = vpop.f32.mrf.mxu0
      %v786 = vadd.f32 0.0, %v785
      %v787 = vpop.f32.mrf.mxu0
      %788 = vdwg.mxu0
      %v789 = vld [vmem:[%s2] sm:$0x1]
      %v790 = vlaneseq
      %v791 = vshrl.u32 %v790, 7
      %v792 = vsub.s32 0, %v791
      %v793 = vrot.slane %v789, %v792
      %v794 = vmul.f32 %v663, %v793
      %v795 = vmul.f32 %v666, %v793
      %v796 = vmul.f32 %v671, %v793
      %v797 = vmul.f32 %v674, %v793
      %v798 = vmul.f32 %v679, %v793
      %v799 = vmul.f32 %v682, %v793
      %v800 = vmul.f32 %v687, %v793
      %v801 = vmul.f32 %v690, %v793
      %v802 = vmul.f32 %v695, %v793
      %v803 = vmul.f32 %v698, %v793
      %v804 = vmul.f32 %v703, %v793
      %v805 = vmul.f32 %v706, %v793
      %v806 = vmul.f32 %v711, %v793
      %v807 = vmul.f32 %v714, %v793
      %v808 = vmul.f32 %v719, %v793
      %v809 = vmul.f32 %v722, %v793
      %v810 = vmul.f32 %v727, %v793
      %v811 = vmul.f32 %v730, %v793
      %v812 = vmul.f32 %v735, %v793
      %v813 = vmul.f32 %v738, %v793
      %v814 = vmul.f32 %v743, %v793
      %v815 = vmul.f32 %v746, %v793
      %v816 = vmul.f32 %v751, %v793
      %v817 = vmul.f32 %v754, %v793
      %v818 = vmul.f32 %v759, %v793
      %v819 = vmul.f32 %v762, %v793
      %v820 = vmul.f32 %v767, %v793
      %v821 = vmul.f32 %v770, %v793
      %v822 = vmul.f32 %v775, %v793
      %v823 = vmul.f32 %v778, %v793
      %v824 = vmul.f32 %v783, %v793
      %v825 = vmul.f32 %v786, %v793
      %v826 = vld [vmem:[%s2 + $0x1] sm:$0x1]
      %v827 = vlaneseq
      %v828 = vshrl.u32 %v827, 7
      %v829 = vsub.s32 0, %v828
      %v830 = vrot.slane %v826, %v829
      %v831 = vadd.f32 %v794, %v830
      %v832 = vadd.f32 %v795, %v830
      %v833 = vadd.f32 %v796, %v830
      %v834 = vadd.f32 %v797, %v830
      %v835 = vadd.f32 %v798, %v830
      %v836 = vadd.f32 %v799, %v830
      %v837 = vadd.f32 %v800, %v830
      %v838 = vadd.f32 %v801, %v830
      %v839 = vadd.f32 %v802, %v830
      %v840 = vadd.f32 %v803, %v830
      %v841 = vadd.f32 %v804, %v830
      %v842 = vadd.f32 %v805, %v830
      %v843 = vadd.f32 %v806, %v830
      %v844 = vadd.f32 %v807, %v830
      %v845 = vadd.f32 %v808, %v830
      %v846 = vadd.f32 %v809, %v830
      %v847 = vadd.f32 %v810, %v830
      %v848 = vadd.f32 %v811, %v830
      %v849 = vadd.f32 %v812, %v830
      %v850 = vadd.f32 %v813, %v830
      %v851 = vadd.f32 %v814, %v830
      %v852 = vadd.f32 %v815, %v830
      %v853 = vadd.f32 %v816, %v830
      %v854 = vadd.f32 %v817, %v830
      %v855 = vadd.f32 %v818, %v830
      %v856 = vadd.f32 %v819, %v830
      %v857 = vadd.f32 %v820, %v830
      %v858 = vadd.f32 %v821, %v830
      %v859 = vadd.f32 %v822, %v830
      %v860 = vadd.f32 %v823, %v830
      %v861 = vadd.f32 %v824, %v830
      %v862 = vadd.f32 %v825, %v830
      %v863 = vmax.f32 %v831, 0.0
      %v864 = vmax.f32 %v832, 0.0
      %v865 = vmax.f32 %v833, 0.0
      %v866 = vmax.f32 %v834, 0.0
      %v867 = vmax.f32 %v835, 0.0
      %v868 = vmax.f32 %v836, 0.0
      %v869 = vmax.f32 %v837, 0.0
      %v870 = vmax.f32 %v838, 0.0
      %v871 = vmax.f32 %v839, 0.0
      %v872 = vmax.f32 %v840, 0.0
      %v873 = vmax.f32 %v841, 0.0
      %v874 = vmax.f32 %v842, 0.0
      %v875 = vmax.f32 %v843, 0.0
      %v876 = vmax.f32 %v844, 0.0
      %v877 = vmax.f32 %v845, 0.0
      %v878 = vmax.f32 %v846, 0.0
      %v879 = vmax.f32 %v847, 0.0
      %v880 = vmax.f32 %v848, 0.0
      %v881 = vmax.f32 %v849, 0.0
      %v882 = vmax.f32 %v850, 0.0
      %v883 = vmax.f32 %v851, 0.0
      %v884 = vmax.f32 %v852, 0.0
      %v885 = vmax.f32 %v853, 0.0
      %v886 = vmax.f32 %v854, 0.0
      %v887 = vmax.f32 %v855, 0.0
      %v888 = vmax.f32 %v856, 0.0
      %v889 = vmax.f32 %v857, 0.0
      %v890 = vmax.f32 %v858, 0.0
      %v891 = vmax.f32 %v859, 0.0
      %v892 = vmax.f32 %v860, 0.0
      %v893 = vmax.f32 %v861, 0.0
      %v894 = vmax.f32 %v862, 0.0
      %vm895 = vcmask 31744
      %896 = vst.msk [vmem:[#allocation2] sm:$0xff] %vm895, 0.0
      %897 = vst.msk [vmem:[#allocation2 + $0x8] sm:$0xff] %vm895, 0.0
      %898 = vst.msk [vmem:[#allocation2 + $0x10] sm:$0xff] %vm895, 0.0
      %899 = vst.msk [vmem:[#allocation2 + $0x18] sm:$0xff] %vm895, 0.0
      %900 = vst.msk [vmem:[#allocation2 + $0x20] sm:$0xff] %vm895, 0.0
      %901 = vst.msk [vmem:[#allocation2 + $0x28] sm:$0xff] %vm895, 0.0
      %902 = vst.msk [vmem:[#allocation2 + $0x30] sm:$0xff] %vm895, 0.0
      %903 = vst.msk [vmem:[#allocation2 + $0x38] sm:$0xff] %vm895, 0.0
      %904 = vst.msk [vmem:[#allocation2 + $0x40] sm:$0xff] %vm895, 0.0
      %905 = vst.msk [vmem:[#allocation2 + $0x48] sm:$0xff] %vm895, 0.0
      %906 = vst.msk [vmem:[#allocation2 + $0x50] sm:$0xff] %vm895, 0.0
      %907 = vst.msk [vmem:[#allocation2 + $0x58] sm:$0xff] %vm895, 0.0
      %908 = vst.msk [vmem:[#allocation2 + $0x60] sm:$0xff] %vm895, 0.0
      %909 = vst.msk [vmem:[#allocation2 + $0x68] sm:$0xff] %vm895, 0.0
      %910 = vst.msk [vmem:[#allocation2 + $0x70] sm:$0xff] %vm895, 0.0
      %911 = vst.msk [vmem:[#allocation2 + $0x78] sm:$0xff] %vm895, 0.0
      %912 = vst.msk [vmem:[#allocation2 + $0x80] sm:$0xff] %vm895, 0.0
      %913 = vst.msk [vmem:[#allocation2 + $0x88] sm:$0xff] %vm895, 0.0
      %914 = vst.msk [vmem:[#allocation2 + $0x90] sm:$0xff] %vm895, 0.0
      %915 = vst.msk [vmem:[#allocation2 + $0x98] sm:$0xff] %vm895, 0.0
      %916 = vst.msk [vmem:[#allocation2 + $0xa0] sm:$0xff] %vm895, 0.0
      %917 = vst.msk [vmem:[#allocation2 + $0xa8] sm:$0xff] %vm895, 0.0
      %918 = vst.msk [vmem:[#allocation2 + $0xb0] sm:$0xff] %vm895, 0.0
      %919 = vst.msk [vmem:[#allocation2 + $0xb8] sm:$0xff] %vm895, 0.0
      %920 = vst.msk [vmem:[#allocation2 + $0xc0] sm:$0xff] %vm895, 0.0
      %921 = vst.msk [vmem:[#allocation2 + $0xc8] sm:$0xff] %vm895, 0.0
      %922 = vst.msk [vmem:[#allocation2 + $0xd0] sm:$0xff] %vm895, 0.0
      %923 = vst.msk [vmem:[#allocation2 + $0xd8] sm:$0xff] %vm895, 0.0
      %924 = vst.msk [vmem:[#allocation2 + $0xe0] sm:$0xff] %vm895, 0.0
      %925 = vst.msk [vmem:[#allocation2 + $0xe8] sm:$0xff] %vm895, 0.0
      %926 = vst.msk [vmem:[#allocation2 + $0xf0] sm:$0xff] %vm895, 0.0
      %927 = vst.msk [vmem:[#allocation2 + $0xf8] sm:$0xff] %vm895, 0.0
      %928 = vst.msk [vmem:[#allocation2 + $0x100] sm:$0xff] %vm895, 0.0
      %929 = vst.msk [vmem:[#allocation2 + $0x108] sm:$0xff] %vm895, 0.0
      %930 = vst.msk [vmem:[#allocation2 + $0x110] sm:$0xff] %vm895, 0.0
      %931 = vst.msk [vmem:[#allocation2 + $0x118] sm:$0xff] %vm895, 0.0
      %932 = vst.msk [vmem:[#allocation2 + $0x120] sm:$0xff] %vm895, 0.0
      %933 = vst.msk [vmem:[#allocation2 + $0x128] sm:$0xff] %vm895, 0.0
      %934 = vst.msk [vmem:[#allocation2 + $0x130] sm:$0xff] %vm895, 0.0
      %935 = vst.msk [vmem:[#allocation2 + $0x138] sm:$0xff] %vm895, 0.0
      %936 = vst.msk [vmem:[#allocation2 + $0x140] sm:$0xff] %vm895, 0.0
      %937 = vst.msk [vmem:[#allocation2 + $0x148] sm:$0xff] %vm895, 0.0
      %938 = vst.msk [vmem:[#allocation2 + $0x150] sm:$0xff] %vm895, 0.0
      %939 = vst.msk [vmem:[#allocation2 + $0x158] sm:$0xff] %vm895, 0.0
      %940 = vst.msk [vmem:[#allocation2 + $0x160] sm:$0xff] %vm895, 0.0
      %941 = vst.msk [vmem:[#allocation2 + $0x168] sm:$0xff] %vm895, 0.0
      %942 = vst.msk [vmem:[#allocation2 + $0x170] sm:$0xff] %vm895, 0.0
      %943 = vst.msk [vmem:[#allocation2 + $0x178] sm:$0xff] %vm895, 0.0
      %944 = vst.msk [vmem:[#allocation2 + $0x180] sm:$0xff] %vm895, 0.0
      %945 = vst.msk [vmem:[#allocation2 + $0x188] sm:$0xff] %vm895, 0.0
      %946 = vst.msk [vmem:[#allocation2 + $0x190] sm:$0xff] %vm895, 0.0
      %947 = vst.msk [vmem:[#allocation2 + $0x198] sm:$0xff] %vm895, 0.0
      %948 = vst.msk [vmem:[#allocation2 + $0x1a0] sm:$0xff] %vm895, 0.0
      %949 = vst.msk [vmem:[#allocation2 + $0x1a8] sm:$0xff] %vm895, 0.0
      %950 = vst.msk [vmem:[#allocation2 + $0x1b0] sm:$0xff] %vm895, 0.0
      %951 = vst.msk [vmem:[#allocation2 + $0x1b8] sm:$0xff] %vm895, 0.0
      %952 = vst.msk [vmem:[#allocation2 + $0x1c0] sm:$0xff] %vm895, 0.0
      %s953 = scalar_lea.vmem [#allocation2], 24
      %954 = vst.msk [vmem:[%s953 + $0x1] sm:$0xff] %vm895, %v863
      %955 = vst.msk [vmem:[%s953 + $0x9] sm:$0xff] %vm895, %v864
      %956 = vst.msk [vmem:[%s953 + $0x19] sm:$0xff] %vm895, %v865
      %957 = vst.msk [vmem:[%s953 + $0x21] sm:$0xff] %vm895, %v866
      %958 = vst.msk [vmem:[%s953 + $0x31] sm:$0xff] %vm895, %v867
      %959 = vst.msk [vmem:[%s953 + $0x39] sm:$0xff] %vm895, %v868
      %960 = vst.msk [vmem:[%s953 + $0x49] sm:$0xff] %vm895, %v869
      %961 = vst.msk [vmem:[%s953 + $0x51] sm:$0xff] %vm895, %v870
      %962 = vst.msk [vmem:[%s953 + $0x61] sm:$0xff] %vm895, %v871
      %963 = vst.msk [vmem:[%s953 + $0x69] sm:$0xff] %vm895, %v872
      %964 = vst.msk [vmem:[%s953 + $0x79] sm:$0xff] %vm895, %v873
      %965 = vst.msk [vmem:[%s953 + $0x81] sm:$0xff] %vm895, %v874
      %966 = vst.msk [vmem:[%s953 + $0x91] sm:$0xff] %vm895, %v875
      %967 = vst.msk [vmem:[%s953 + $0x99] sm:$0xff] %vm895, %v876
      %968 = vst.msk [vmem:[%s953 + $0xa9] sm:$0xff] %vm895, %v877
      %969 = vst.msk [vmem:[%s953 + $0xb1] sm:$0xff] %vm895, %v878
      %970 = vst.msk [vmem:[%s953 + $0xc1] sm:$0xff] %vm895, %v879
      %971 = vst.msk [vmem:[%s953 + $0xc9] sm:$0xff] %vm895, %v880
      %972 = vst.msk [vmem:[%s953 + $0xd9] sm:$0xff] %vm895, %v881
      %973 = vst.msk [vmem:[%s953 + $0xe1] sm:$0xff] %vm895, %v882
      %974 = vst.msk [vmem:[%s953 + $0xf1] sm:$0xff] %vm895, %v883
      %975 = vst.msk [vmem:[%s953 + $0xf9] sm:$0xff] %vm895, %v884
      %976 = vst.msk [vmem:[%s953 + $0x109] sm:$0xff] %vm895, %v885
      %977 = vst.msk [vmem:[%s953 + $0x111] sm:$0xff] %vm895, %v886
      %978 = vst.msk [vmem:[%s953 + $0x121] sm:$0xff] %vm895, %v887
      %979 = vst.msk [vmem:[%s953 + $0x129] sm:$0xff] %vm895, %v888
      %980 = vst.msk [vmem:[%s953 + $0x139] sm:$0xff] %vm895, %v889
      %981 = vst.msk [vmem:[%s953 + $0x141] sm:$0xff] %vm895, %v890
      %982 = vst.msk [vmem:[%s953 + $0x151] sm:$0xff] %vm895, %v891
      %983 = vst.msk [vmem:[%s953 + $0x159] sm:$0xff] %vm895, %v892
      %984 = vst.msk [vmem:[%s953 + $0x169] sm:$0xff] %vm895, %v893
      %985 = vst.msk [vmem:[%s953 + $0x171] sm:$0xff] %vm895, %v894
      %v986 = vld [vmem:[#allocation2] sm:$0xff]
      %v987 = vld [vmem:[#allocation2 + $0x8] sm:$0xff]
      %v988 = vld [vmem:[#allocation2 + $0x10] sm:$0xff]
      %v989 = vld [vmem:[#allocation2 + $0x18] sm:$0xff]
      %v990 = vld [vmem:[#allocation2 + $0x20] sm:$0xff]
      %v991 = vld [vmem:[#allocation2 + $0x28] sm:$0xff]
      %v992 = vld [vmem:[#allocation2 + $0x30] sm:$0xff]
      %v993 = vld [vmem:[#allocation2 + $0x38] sm:$0xff]
      %v994 = vld [vmem:[#allocation2 + $0x40] sm:$0xff]
      %v995 = vld [vmem:[#allocation2 + $0x48] sm:$0xff]
      %v996 = vld [vmem:[#allocation2 + $0x50] sm:$0xff]
      %v997 = vld [vmem:[#allocation2 + $0x58] sm:$0xff]
      %v998 = vld [vmem:[#allocation2 + $0x60] sm:$0xff]
      %v999 = vld [vmem:[#allocation2 + $0x68] sm:$0xff]
      %v1000 = vld [vmem:[#allocation2 + $0x70] sm:$0xff]
      %v1001 = vld [vmem:[#allocation2 + $0x78] sm:$0xff]
      %v1002 = vld [vmem:[#allocation2 + $0x80] sm:$0xff]
      %v1003 = vld [vmem:[#allocation2 + $0x88] sm:$0xff]
      %v1004 = vld [vmem:[#allocation2 + $0x90] sm:$0xff]
      %v1005 = vld [vmem:[#allocation2 + $0x98] sm:$0xff]
      %v1006 = vld [vmem:[#allocation2 + $0xa0] sm:$0xff]
      %v1007 = vld [vmem:[#allocation2 + $0xa8] sm:$0xff]
      %v1008 = vld [vmem:[#allocation2 + $0xb0] sm:$0xff]
      %v1009 = vld [vmem:[#allocation2 + $0xb8] sm:$0xff]
      %v1010 = vld [vmem:[#allocation2 + $0xc0] sm:$0xff]
      %v1011 = vld [vmem:[#allocation2 + $0xc8] sm:$0xff]
      %v1012 = vld [vmem:[#allocation2 + $0xd0] sm:$0xff]
      %v1013 = vld [vmem:[#allocation2 + $0xd8] sm:$0xff]
      %v1014 = vld [vmem:[#allocation2 + $0xe0] sm:$0xff]
      %v1015 = vld [vmem:[#allocation2 + $0xe8] sm:$0xff]
      %v1016 = vld [vmem:[#allocation2 + $0xf0] sm:$0xff]
      %v1017 = vld [vmem:[#allocation2 + $0xf8] sm:$0xff]
      %v1018 = vld [vmem:[#allocation2 + $0x100] sm:$0xff]
      %v1019 = vld [vmem:[#allocation2 + $0x108] sm:$0xff]
      %v1020 = vld [vmem:[#allocation2 + $0x110] sm:$0xff]
      %v1021 = vld [vmem:[#allocation2 + $0x118] sm:$0xff]
      %v1022 = vld [vmem:[#allocation2 + $0x120] sm:$0xff]
      %v1023 = vld [vmem:[#allocation2 + $0x128] sm:$0xff]
      %v1024 = vld [vmem:[#allocation2 + $0x130] sm:$0xff]
      %v1025 = vld [vmem:[#allocation2 + $0x138] sm:$0xff]
      %v1026 = vld [vmem:[#allocation2 + $0x140] sm:$0xff]
      %v1027 = vld [vmem:[#allocation2 + $0x148] sm:$0xff]
      %v1028 = vld [vmem:[#allocation2 + $0x150] sm:$0xff]
      %v1029 = vld [vmem:[#allocation2 + $0x158] sm:$0xff]
      %v1030 = vld [vmem:[#allocation2 + $0x160] sm:$0xff]
      %v1031 = vld [vmem:[#allocation2 + $0x168] sm:$0xff]
      %v1032 = vld [vmem:[#allocation2 + $0x170] sm:$0xff]
      %v1033 = vld [vmem:[#allocation2 + $0x178] sm:$0xff]
      %v1034 = vld [vmem:[#allocation2 + $0x180] sm:$0xff]
      %v1035 = vld [vmem:[#allocation2 + $0x188] sm:$0xff]
      %v1036 = vld [vmem:[#allocation2 + $0x190] sm:$0xff]
      %v1037 = vld [vmem:[#allocation2 + $0x198] sm:$0xff]
      %v1038 = vld [vmem:[#allocation2 + $0x1a0] sm:$0xff]
      %v1039 = vld [vmem:[#allocation2 + $0x1a8] sm:$0xff]
      %v1040 = vld [vmem:[#allocation2 + $0x1b0] sm:$0xff]
      %v1041 = vpack.c.bf16 %v987, %v986
      %v1042 = vpack.c.bf16 %v989, %v988
      %v1043 = vpack.c.bf16 %v991, %v990
      %v1044 = vpack.c.bf16 %v993, %v992
      %v1045 = vpack.c.bf16 %v995, %v994
      %v1046 = vpack.c.bf16 %v997, %v996
      %v1047 = vpack.c.bf16 %v999, %v998
      %v1048 = vpack.c.bf16 %v1001, %v1000
      %v1049 = vpack.c.bf16 %v1003, %v1002
      %v1050 = vpack.c.bf16 %v1005, %v1004
      %v1051 = vpack.c.bf16 %v1007, %v1006
      %v1052 = vpack.c.bf16 %v1009, %v1008
      %v1053 = vpack.c.bf16 %v1011, %v1010
      %v1054 = vpack.c.bf16 %v1013, %v1012
      %v1055 = vpack.c.bf16 %v1015, %v1014
      %v1056 = vpack.c.bf16 %v1017, %v1016
      %v1057 = vpack.c.bf16 %v1019, %v1018
      %v1058 = vpack.c.bf16 %v1021, %v1020
      %v1059 = vpack.c.bf16 %v1023, %v1022
      %v1060 = vpack.c.bf16 %v1025, %v1024
      %v1061 = vpack.c.bf16 %v1027, %v1026
      %v1062 = vpack.c.bf16 %v1029, %v1028
      %v1063 = vpack.c.bf16 %v1031, %v1030
      %v1064 = vpack.c.bf16 %v1033, %v1032
      %v1065 = vld [vmem:[%s3] sm:$0x3]
      %v1066 = vpack.c.bf16 %v1034, %v1034
      %s1067 = scalar_lea.vmem %s3, 2
      %v1068 = vld [vmem:[%s1067] sm:$0x3]
      %vm1069 = vsmask.f32 7424
      %v1071 = vshrl.u32 %v1041, 16
      %v1073 = vshll.u32 %v1041, 16
      %v1075 = vrot.slane %v1073, 1
      %v1076 = vor.u32 %v1071, %v1075
      %v1078 = vshll.u32 %v1042, 16
      %v1080 = vrot.slane %v1078, 1
      %v1081 = vsel %vm1069, %v1076, %v1080
      %v1082 = vshrl.u32 %v1042, 16
      %v1084 = vor.u32 %v1082, %v1080
      %v1086 = vshll.u32 %v1043, 16
      %v1088 = vrot.slane %v1086, 1
      %v1089 = vsel %vm1069, %v1084, %v1088
      %v1090 = vshrl.u32 %v1043, 16
      %v1092 = vor.u32 %v1090, %v1088
      %v1094 = vshll.u32 %v1044, 16
      %v1096 = vrot.slane %v1094, 1
      %v1097 = vsel %vm1069, %v1092, %v1096
      %v1098 = vshrl.u32 %v1044, 16
      %v1100 = vor.u32 %v1098, %v1096
      %v1102 = vshll.u32 %v1045, 16
      %v1104 = vrot.slane %v1102, 1
      %v1105 = vsel %vm1069, %v1100, %v1104
      %v1106 = vshrl.u32 %v1045, 16
      %v1108 = vor.u32 %v1106, %v1104
      %v1110 = vshll.u32 %v1046, 16
      %v1112 = vrot.slane %v1110, 1
      %v1113 = vsel %vm1069, %v1108, %v1112
      %v1114 = vshrl.u32 %v1046, 16
      %v1116 = vor.u32 %v1114, %v1112
      %v1118 = vshll.u32 %v1047, 16
      %v1120 = vrot.slane %v1118, 1
      %v1121 = vsel %vm1069, %v1116, %v1120
      %v1122 = vshrl.u32 %v1047, 16
      %v1124 = vor.u32 %v1122, %v1120
      %v1126 = vshll.u32 %v1048, 16
      %v1128 = vrot.slane %v1126, 1
      %v1129 = vsel %vm1069, %v1124, %v1128
      %v1130 = vshrl.u32 %v1048, 16
      %v1132 = vor.u32 %v1130, %v1128
      %v1134 = vshll.u32 %v1049, 16
      %v1136 = vrot.slane %v1134, 1
      %v1137 = vsel %vm1069, %v1132, %v1136
      %v1138 = vshrl.u32 %v1049, 16
      %v1140 = vor.u32 %v1138, %v1136
      %v1142 = vshll.u32 %v1050, 16
      %v1144 = vrot.slane %v1142, 1
      %v1145 = vsel %vm1069, %v1140, %v1144
      %v1146 = vshrl.u32 %v1050, 16
      %v1148 = vor.u32 %v1146, %v1144
      %v1150 = vshll.u32 %v1051, 16
      %v1152 = vrot.slane %v1150, 1
      %v1153 = vsel %vm1069, %v1148, %v1152
      %v1154 = vshrl.u32 %v1051, 16
      %v1156 = vor.u32 %v1154, %v1152
      %v1158 = vshll.u32 %v1052, 16
      %v1160 = vrot.slane %v1158, 1
      %v1161 = vsel %vm1069, %v1156, %v1160
      %v1162 = vshrl.u32 %v1052, 16
      %v1164 = vor.u32 %v1162, %v1160
      %v1166 = vshll.u32 %v1053, 16
      %v1168 = vrot.slane %v1166, 1
      %v1169 = vsel %vm1069, %v1164, %v1168
      %v1170 = vshrl.u32 %v1053, 16
      %v1172 = vor.u32 %v1170, %v1168
      %v1174 = vshll.u32 %v1054, 16
      %v1176 = vrot.slane %v1174, 1
      %v1177 = vsel %vm1069, %v1172, %v1176
      %v1178 = vshrl.u32 %v1054, 16
      %v1180 = vor.u32 %v1178, %v1176
      %v1182 = vshll.u32 %v1055, 16
      %v1184 = vrot.slane %v1182, 1
      %v1185 = vsel %vm1069, %v1180, %v1184
      %v1186 = vshrl.u32 %v1055, 16
      %v1188 = vor.u32 %v1186, %v1184
      %v1190 = vshll.u32 %v1056, 16
      %v1192 = vrot.slane %v1190, 1
      %v1193 = vsel %vm1069, %v1188, %v1192
      %v1194 = vshrl.u32 %v1056, 16
      %v1196 = vor.u32 %v1194, %v1192
      %v1198 = vshll.u32 %v1057, 16
      %v1200 = vrot.slane %v1198, 1
      %v1201 = vsel %vm1069, %v1196, %v1200
      %v1202 = vshrl.u32 %v1057, 16
      %v1204 = vor.u32 %v1202, %v1200
      %v1206 = vshll.u32 %v1058, 16
      %v1208 = vrot.slane %v1206, 1
      %v1209 = vsel %vm1069, %v1204, %v1208
      %v1210 = vshrl.u32 %v1058, 16
      %v1212 = vor.u32 %v1210, %v1208
      %v1214 = vshll.u32 %v1059, 16
      %v1216 = vrot.slane %v1214, 1
      %v1217 = vsel %vm1069, %v1212, %v1216
      %v1218 = vshrl.u32 %v1059, 16
      %v1220 = vor.u32 %v1218, %v1216
      %v1222 = vshll.u32 %v1060, 16
      %v1224 = vrot.slane %v1222, 1
      %v1225 = vsel %vm1069, %v1220, %v1224
      %v1226 = vshrl.u32 %v1060, 16
      %v1228 = vor.u32 %v1226, %v1224
      %v1230 = vshll.u32 %v1061, 16
      %v1232 = vrot.slane %v1230, 1
      %v1233 = vsel %vm1069, %v1228, %v1232
      %v1234 = vshrl.u32 %v1061, 16
      %v1236 = vor.u32 %v1234, %v1232
      %v1238 = vshll.u32 %v1062, 16
      %v1240 = vrot.slane %v1238, 1
      %v1241 = vsel %vm1069, %v1236, %v1240
      %v1242 = vshrl.u32 %v1062, 16
      %v1244 = vor.u32 %v1242, %v1240
      %v1246 = vshll.u32 %v1063, 16
      %v1248 = vrot.slane %v1246, 1
      %v1249 = vsel %vm1069, %v1244, %v1248
      %v1250 = vshrl.u32 %v1063, 16
      %v1252 = vor.u32 %v1250, %v1248
      %v1254 = vshll.u32 %v1064, 16
      %v1256 = vrot.slane %v1254, 1
      %v1257 = vsel %vm1069, %v1252, %v1256
      %v1258 = vshrl.u32 %v1064, 16
      %v1260 = vor.u32 %v1258, %v1256
      %v1262 = vshll.u32 %v1066, 16
      %v1264 = vrot.slane %v1262, 1
      %v1265 = vsel %vm1069, %v1260, %v1264
      %v1267 = vsel %vm895, %v1081, 0
      %v1270 = vsel %vm895, %v1089, 0
      %v1273 = vsel %vm895, %v1097, 0
      %v1276 = vsel %vm895, %v1105, 0
      %v1279 = vsel %vm895, %v1113, 0
      %v1282 = vsel %vm895, %v1121, 0
      %v1285 = vsel %vm895, %v1129, 0
      %v1288 = vsel %vm895, %v1137, 0
      %v1291 = vsel %vm895, %v1145, 0
      %v1294 = vsel %vm895, %v1153, 0
      %v1297 = vsel %vm895, %v1161, 0
      %v1300 = vsel %vm895, %v1169, 0
      %v1303 = vsel %vm895, %v1177, 0
      %v1306 = vsel %vm895, %v1185, 0
      %v1309 = vsel %vm895, %v1193, 0
      %v1312 = vsel %vm895, %v1201, 0
      %v1315 = vsel %vm895, %v1209, 0
      %v1318 = vsel %vm895, %v1217, 0
      %v1321 = vsel %vm895, %v1225, 0
      %v1324 = vsel %vm895, %v1233, 0
      %v1327 = vsel %vm895, %v1241, 0
      %v1330 = vsel %vm895, %v1249, 0
      %v1333 = vsel %vm895, %v1257, 0
      %v1336 = vsel %vm895, %v1265, 0
      %vm1338 = vcmask 1041408
      %v1340 = vsel %vm1338, %v1068, 0
      %1342 = vmatprep.subr.bf16.mxu0 0
      %1343 = vmatpush1.bf16.msra.mxu0 0
      %1344 = vmatprep.subr.bf16.mxu0 0
      %1345 = vmatpush1.bf16.msra.mxu0 0
      %1346 = vmatprep.subr.bf16.mxu0 0
      %1347 = vmatpush1.bf16.msra.mxu0 0
      %1348 = vmatprep.subr.bf16.mxu0 0
      %1349 = vmatpush1.bf16.msra.mxu0 0
      %1350 = vmatprep.subr.bf16.mxu0 0
      %1351 = vmatpush1.bf16.msra.mxu0 0
      %1352 = vmatprep.subr.bf16.mxu0 0
      %1353 = vmatpush1.bf16.msra.mxu0 0
      %1354 = vmatprep.subr.bf16.mxu0 0
      %1355 = vmatpush1.bf16.msra.mxu0 0
      %1356 = vmatprep.subr.bf16.mxu0 0
      %1357 = vmatpush1.bf16.msra.mxu0 %v1340
      %1358 = vmatprep.subr.bf16.mxu0 0
      %1359 = vmatpush2.bf16.msra.mxu0 0
      %1360 = vmatprep.subr.bf16.mxu0 0
      %1361 = vmatpush2.bf16.msra.mxu0 0
      %1362 = vmatprep.subr.bf16.mxu0 0
      %1363 = vmatpush2.bf16.msra.mxu0 0
      %1364 = vmatprep.subr.bf16.mxu0 0
      %1365 = vmatpush2.bf16.msra.mxu0 0
      %1366 = vmatprep.subr.bf16.mxu0 0
      %1367 = vmatpush2.bf16.msra.mxu0 0
      %1368 = vmatprep.subr.bf16.mxu0 0
      %1369 = vmatpush2.bf16.msra.mxu0 0
      %1370 = vmatprep.subr.bf16.mxu0 0
      %1371 = vmatpush2.bf16.msra.mxu0 0
      %1372 = vmatprep.subr.bf16.mxu0 0
      %1373 = vmatpush2.bf16.msra.mxu0 0
      %1374 = vmatprep.mubr.bf16.mxu0 0
      %1375 = vmatmul.mubr.bf16.gmra.mxu0 %v1267
      %v1376 = vpop.f32.mrf.mxu0
      %v1377 = vadd.f32 0.0, %v1376
      %v1378 = vpop.f32.mrf.mxu0
      %v1379 = vpop.f32.mrf.mxu0
      %v1380 = vadd.f32 0.0, %v1379
      %v1381 = vpop.f32.mrf.mxu0
      %1382 = vmatprep.mubr.bf16.mxu0 0
      %1383 = vmatmul.mubr.bf16.gmra.mxu0 %v1270
      %v1384 = vpop.f32.mrf.mxu0
      %v1385 = vpop.f32.mrf.mxu0
      %v1386 = vpop.f32.mrf.mxu0
      %v1387 = vadd.f32 0.0, %v1386
      %v1388 = vpop.f32.mrf.mxu0
      %1389 = vmatprep.mubr.bf16.mxu0 0
      %1390 = vmatmul.mubr.bf16.gmra.mxu0 %v1273
      %v1391 = vpop.f32.mrf.mxu0
      %v1392 = vadd.f32 0.0, %v1391
      %v1393 = vpop.f32.mrf.mxu0
      %v1394 = vpop.f32.mrf.mxu0
      %v1395 = vpop.f32.mrf.mxu0
      %1396 = vmatprep.mubr.bf16.mxu0 0
      %1397 = vmatmul.mubr.bf16.gmra.mxu0 %v1276
      %v1398 = vpop.f32.mrf.mxu0
      %v1399 = vadd.f32 0.0, %v1398
      %v1400 = vpop.f32.mrf.mxu0
      %v1401 = vpop.f32.mrf.mxu0
      %v1402 = vadd.f32 0.0, %v1401
      %v1403 = vpop.f32.mrf.mxu0
      %1404 = vmatprep.mubr.bf16.mxu0 0
      %1405 = vmatmul.mubr.bf16.gmra.mxu0 %v1279
      %v1406 = vpop.f32.mrf.mxu0
      %v1407 = vpop.f32.mrf.mxu0
      %v1408 = vpop.f32.mrf.mxu0
      %v1409 = vadd.f32 0.0, %v1408
      %v1410 = vpop.f32.mrf.mxu0
      %1411 = vmatprep.mubr.bf16.mxu0 0
      %1412 = vmatmul.mubr.bf16.gmra.mxu0 %v1282
      %v1413 = vpop.f32.mrf.mxu0
      %v1414 = vadd.f32 0.0, %v1413
      %v1415 = vpop.f32.mrf.mxu0
      %v1416 = vpop.f32.mrf.mxu0
      %v1417 = vpop.f32.mrf.mxu0
      %1418 = vmatprep.mubr.bf16.mxu0 0
      %1419 = vmatmul.mubr.bf16.gmra.mxu0 %v1285
      %v1420 = vpop.f32.mrf.mxu0
      %v1421 = vadd.f32 0.0, %v1420
      %v1422 = vpop.f32.mrf.mxu0
      %v1423 = vpop.f32.mrf.mxu0
      %v1424 = vadd.f32 0.0, %v1423
      %v1425 = vpop.f32.mrf.mxu0
      %1426 = vmatprep.mubr.bf16.mxu0 0
      %1427 = vmatmul.mubr.bf16.gmra.mxu0 %v1288
      %v1428 = vpop.f32.mrf.mxu0
      %v1429 = vpop.f32.mrf.mxu0
      %v1430 = vpop.f32.mrf.mxu0
      %v1431 = vadd.f32 0.0, %v1430
      %v1432 = vpop.f32.mrf.mxu0
      %1433 = vmatprep.mubr.bf16.mxu0 0
      %1434 = vmatmul.mubr.bf16.gmra.mxu0 %v1291
      %v1435 = vpop.f32.mrf.mxu0
      %v1436 = vadd.f32 0.0, %v1435
      %v1437 = vpop.f32.mrf.mxu0
      %v1438 = vpop.f32.mrf.mxu0
      %v1439 = vpop.f32.mrf.mxu0
      %1440 = vmatprep.mubr.bf16.mxu0 0
      %1441 = vmatmul.mubr.bf16.gmra.mxu0 %v1294
      %v1442 = vpop.f32.mrf.mxu0
      %v1443 = vadd.f32 0.0, %v1442
      %v1444 = vpop.f32.mrf.mxu0
      %v1445 = vpop.f32.mrf.mxu0
      %v1446 = vadd.f32 0.0, %v1445
      %v1447 = vpop.f32.mrf.mxu0
      %1448 = vmatprep.mubr.bf16.mxu0 0
      %1449 = vmatmul.mubr.bf16.gmra.mxu0 %v1297
      %v1450 = vpop.f32.mrf.mxu0
      %v1451 = vpop.f32.mrf.mxu0
      %v1452 = vpop.f32.mrf.mxu0
      %v1453 = vadd.f32 0.0, %v1452
      %v1454 = vpop.f32.mrf.mxu0
      %1455 = vmatprep.mubr.bf16.mxu0 0
      %1456 = vmatmul.mubr.bf16.gmra.mxu0 %v1300
      %v1457 = vpop.f32.mrf.mxu0
      %v1458 = vadd.f32 0.0, %v1457
      %v1459 = vpop.f32.mrf.mxu0
      %v1460 = vpop.f32.mrf.mxu0
      %v1461 = vpop.f32.mrf.mxu0
      %1462 = vmatprep.mubr.bf16.mxu0 0
      %1463 = vmatmul.mubr.bf16.gmra.mxu0 %v1303
      %v1464 = vpop.f32.mrf.mxu0
      %v1465 = vadd.f32 0.0, %v1464
      %v1466 = vpop.f32.mrf.mxu0
      %v1467 = vpop.f32.mrf.mxu0
      %v1468 = vadd.f32 0.0, %v1467
      %v1469 = vpop.f32.mrf.mxu0
      %1470 = vmatprep.mubr.bf16.mxu0 0
      %1471 = vmatmul.mubr.bf16.gmra.mxu0 %v1306
      %v1472 = vpop.f32.mrf.mxu0
      %v1473 = vpop.f32.mrf.mxu0
      %v1474 = vpop.f32.mrf.mxu0
      %v1475 = vadd.f32 0.0, %v1474
      %v1476 = vpop.f32.mrf.mxu0
      %1477 = vmatprep.mubr.bf16.mxu0 0
      %1478 = vmatmul.mubr.bf16.gmra.mxu0 %v1309
      %v1479 = vpop.f32.mrf.mxu0
      %v1480 = vadd.f32 0.0, %v1479
      %v1481 = vpop.f32.mrf.mxu0
      %v1482 = vpop.f32.mrf.mxu0
      %v1483 = vpop.f32.mrf.mxu0
      %1484 = vmatprep.mubr.bf16.mxu0 0
      %1485 = vmatmul.mubr.bf16.gmra.mxu0 %v1312
      %v1486 = vpop.f32.mrf.mxu0
      %v1487 = vadd.f32 0.0, %v1486
      %v1488 = vpop.f32.mrf.mxu0
      %v1489 = vpop.f32.mrf.mxu0
      %v1490 = vadd.f32 0.0, %v1489
      %v1491 = vpop.f32.mrf.mxu0
      %1492 = vmatprep.mubr.bf16.mxu0 0
      %1493 = vmatmul.mubr.bf16.gmra.mxu0 %v1315
      %v1494 = vpop.f32.mrf.mxu0
      %v1495 = vpop.f32.mrf.mxu0
      %v1496 = vpop.f32.mrf.mxu0
      %v1497 = vadd.f32 0.0, %v1496
      %v1498 = vpop.f32.mrf.mxu0
      %1499 = vmatprep.mubr.bf16.mxu0 0
      %1500 = vmatmul.mubr.bf16.gmra.mxu0 %v1318
      %v1501 = vpop.f32.mrf.mxu0
      %v1502 = vadd.f32 0.0, %v1501
      %v1503 = vpop.f32.mrf.mxu0
      %v1504 = vpop.f32.mrf.mxu0
      %v1505 = vpop.f32.mrf.mxu0
      %1506 = vmatprep.mubr.bf16.mxu0 0
      %1507 = vmatmul.mubr.bf16.gmra.mxu0 %v1321
      %v1508 = vpop.f32.mrf.mxu0
      %v1509 = vadd.f32 0.0, %v1508
      %v1510 = vpop.f32.mrf.mxu0
      %v1511 = vpop.f32.mrf.mxu0
      %v1512 = vadd.f32 0.0, %v1511
      %v1513 = vpop.f32.mrf.mxu0
      %1514 = vmatprep.mubr.bf16.mxu0 0
      %1515 = vmatmul.mubr.bf16.gmra.mxu0 %v1324
      %v1516 = vpop.f32.mrf.mxu0
      %v1517 = vpop.f32.mrf.mxu0
      %v1518 = vpop.f32.mrf.mxu0
      %v1519 = vadd.f32 0.0, %v1518
      %v1520 = vpop.f32.mrf.mxu0
      %1521 = vmatprep.mubr.bf16.mxu0 0
      %1522 = vmatmul.mubr.bf16.gmra.mxu0 %v1327
      %v1523 = vpop.f32.mrf.mxu0
      %v1524 = vadd.f32 0.0, %v1523
      %v1525 = vpop.f32.mrf.mxu0
      %v1526 = vpop.f32.mrf.mxu0
      %v1527 = vpop.f32.mrf.mxu0
      %1528 = vmatprep.mubr.bf16.mxu0 0
      %1529 = vmatmul.mubr.bf16.gmra.mxu0 %v1330
      %v1530 = vpop.f32.mrf.mxu0
      %v1531 = vadd.f32 0.0, %v1530
      %v1532 = vpop.f32.mrf.mxu0
      %v1533 = vpop.f32.mrf.mxu0
      %v1534 = vadd.f32 0.0, %v1533
      %v1535 = vpop.f32.mrf.mxu0
      %1536 = vmatprep.mubr.bf16.mxu0 0
      %1537 = vmatmul.mubr.bf16.gmra.mxu0 %v1333
      %v1538 = vpop.f32.mrf.mxu0
      %v1539 = vpop.f32.mrf.mxu0
      %v1540 = vpop.f32.mrf.mxu0
      %v1541 = vadd.f32 0.0, %v1540
      %v1542 = vpop.f32.mrf.mxu0
      %1543 = vmatprep.mubr.bf16.mxu0 0
      %1544 = vmatmul.mubr.bf16.gmra.mxu0 %v1336
      %v1545 = vpop.f32.mrf.mxu0
      %v1546 = vadd.f32 0.0, %v1545
      %v1547 = vpop.f32.mrf.mxu0
      %v1548 = vpop.f32.mrf.mxu0
      %v1549 = vpop.f32.mrf.mxu0
      %1550 = vdwg.mxu0
      %v1551 = vsel %vm895, %v1041, 0
      %v1553 = vsel %vm895, %v1042, 0
      %v1555 = vsel %vm895, %v1043, 0
      %v1557 = vsel %vm895, %v1044, 0
      %v1559 = vsel %vm895, %v1045, 0
      %v1561 = vsel %vm895, %v1046, 0
      %v1563 = vsel %vm895, %v1047, 0
      %v1565 = vsel %vm895, %v1048, 0
      %v1567 = vsel %vm895, %v1049, 0
      %v1569 = vsel %vm895, %v1050, 0
      %v1571 = vsel %vm895, %v1051, 0
      %v1573 = vsel %vm895, %v1052, 0
      %v1575 = vsel %vm895, %v1053, 0
      %v1577 = vsel %vm895, %v1054, 0
      %v1579 = vsel %vm895, %v1055, 0
      %v1581 = vsel %vm895, %v1056, 0
      %v1583 = vsel %vm895, %v1057, 0
      %v1585 = vsel %vm895, %v1058, 0
      %v1587 = vsel %vm895, %v1059, 0
      %v1589 = vsel %vm895, %v1060, 0
      %v1591 = vsel %vm895, %v1061, 0
      %v1593 = vsel %vm895, %v1062, 0
      %v1595 = vsel %vm895, %v1063, 0
      %v1597 = vsel %vm895, %v1064, 0
      %v1600 = vsel %vm1338, %v1065, 0
      %1602 = vmatprep.subr.bf16.mxu0 0
      %1603 = vmatpush1.bf16.msra.mxu0 0
      %1604 = vmatprep.subr.bf16.mxu0 0
      %1605 = vmatpush1.bf16.msra.mxu0 0
      %1606 = vmatprep.subr.bf16.mxu0 0
      %1607 = vmatpush1.bf16.msra.mxu0 0
      %1608 = vmatprep.subr.bf16.mxu0 0
      %1609 = vmatpush1.bf16.msra.mxu0 0
      %1610 = vmatprep.subr.bf16.mxu0 0
      %1611 = vmatpush1.bf16.msra.mxu0 0
      %1612 = vmatprep.subr.bf16.mxu0 0
      %1613 = vmatpush1.bf16.msra.mxu0 0
      %1614 = vmatprep.subr.bf16.mxu0 0
      %1615 = vmatpush1.bf16.msra.mxu0 0
      %1616 = vmatprep.subr.bf16.mxu0 0
      %1617 = vmatpush1.bf16.msra.mxu0 %v1600
      %1618 = vmatprep.subr.bf16.mxu0 0
      %1619 = vmatpush2.bf16.msra.mxu0 0
      %1620 = vmatprep.subr.bf16.mxu0 0
      %1621 = vmatpush2.bf16.msra.mxu0 0
      %1622 = vmatprep.subr.bf16.mxu0 0
      %1623 = vmatpush2.bf16.msra.mxu0 0
      %1624 = vmatprep.subr.bf16.mxu0 0
      %1625 = vmatpush2.bf16.msra.mxu0 0
      %1626 = vmatprep.subr.bf16.mxu0 0
      %1627 = vmatpush2.bf16.msra.mxu0 0
      %1628 = vmatprep.subr.bf16.mxu0 0
      %1629 = vmatpush2.bf16.msra.mxu0 0
      %1630 = vmatprep.subr.bf16.mxu0 0
      %1631 = vmatpush2.bf16.msra.mxu0 0
      %1632 = vmatprep.subr.bf16.mxu0 0
      %1633 = vmatpush2.bf16.msra.mxu0 0
      %1634 = vmatprep.mubr.bf16.mxu0 0
      %1635 = vmatmul.mubr.bf16.gmra.mxu0 %v1551
      %v1636 = vpop.f32.mrf.mxu0
      %v1637 = vadd.f32 %v1377, %v1636
      %v1638 = vpop.f32.mrf.mxu0
      %v1639 = vpop.f32.mrf.mxu0
      %v1640 = vadd.f32 %v1380, %v1639
      %v1641 = vpop.f32.mrf.mxu0
      %1642 = vmatprep.mubr.bf16.mxu0 0
      %1643 = vmatmul.mubr.bf16.gmra.mxu0 %v1553
      %v1644 = vpop.f32.mrf.mxu0
      %v1645 = vpop.f32.mrf.mxu0
      %v1646 = vpop.f32.mrf.mxu0
      %v1647 = vadd.f32 %v1387, %v1646
      %v1648 = vpop.f32.mrf.mxu0
      %1649 = vmatprep.mubr.bf16.mxu0 0
      %1650 = vmatmul.mubr.bf16.gmra.mxu0 %v1555
      %v1651 = vpop.f32.mrf.mxu0
      %v1652 = vadd.f32 %v1392, %v1651
      %v1653 = vpop.f32.mrf.mxu0
      %v1654 = vpop.f32.mrf.mxu0
      %v1655 = vpop.f32.mrf.mxu0
      %1656 = vmatprep.mubr.bf16.mxu0 0
      %1657 = vmatmul.mubr.bf16.gmra.mxu0 %v1557
      %v1658 = vpop.f32.mrf.mxu0
      %v1659 = vadd.f32 %v1399, %v1658
      %v1660 = vpop.f32.mrf.mxu0
      %v1661 = vpop.f32.mrf.mxu0
      %v1662 = vadd.f32 %v1402, %v1661
      %v1663 = vpop.f32.mrf.mxu0
      %1664 = vmatprep.mubr.bf16.mxu0 0
      %1665 = vmatmul.mubr.bf16.gmra.mxu0 %v1559
      %v1666 = vpop.f32.mrf.mxu0
      %v1667 = vpop.f32.mrf.mxu0
      %v1668 = vpop.f32.mrf.mxu0
      %v1669 = vadd.f32 %v1409, %v1668
      %v1670 = vpop.f32.mrf.mxu0
      %1671 = vmatprep.mubr.bf16.mxu0 0
      %1672 = vmatmul.mubr.bf16.gmra.mxu0 %v1561
      %v1673 = vpop.f32.mrf.mxu0
      %v1674 = vadd.f32 %v1414, %v1673
      %v1675 = vpop.f32.mrf.mxu0
      %v1676 = vpop.f32.mrf.mxu0
      %v1677 = vpop.f32.mrf.mxu0
      %1678 = vmatprep.mubr.bf16.mxu0 0
      %1679 = vmatmul.mubr.bf16.gmra.mxu0 %v1563
      %v1680 = vpop.f32.mrf.mxu0
      %v1681 = vadd.f32 %v1421, %v1680
      %v1682 = vpop.f32.mrf.mxu0
      %v1683 = vpop.f32.mrf.mxu0
      %v1684 = vadd.f32 %v1424, %v1683
      %v1685 = vpop.f32.mrf.mxu0
      %1686 = vmatprep.mubr.bf16.mxu0 0
      %1687 = vmatmul.mubr.bf16.gmra.mxu0 %v1565
      %v1688 = vpop.f32.mrf.mxu0
      %v1689 = vpop.f32.mrf.mxu0
      %v1690 = vpop.f32.mrf.mxu0
      %v1691 = vadd.f32 %v1431, %v1690
      %v1692 = vpop.f32.mrf.mxu0
      %1693 = vmatprep.mubr.bf16.mxu0 0
      %1694 = vmatmul.mubr.bf16.gmra.mxu0 %v1567
      %v1695 = vpop.f32.mrf.mxu0
      %v1696 = vadd.f32 %v1436, %v1695
      %v1697 = vpop.f32.mrf.mxu0
      %v1698 = vpop.f32.mrf.mxu0
      %v1699 = vpop.f32.mrf.mxu0
      %1700 = vmatprep.mubr.bf16.mxu0 0
      %1701 = vmatmul.mubr.bf16.gmra.mxu0 %v1569
      %v1702 = vpop.f32.mrf.mxu0
      %v1703 = vadd.f32 %v1443, %v1702
      %v1704 = vpop.f32.mrf.mxu0
      %v1705 = vpop.f32.mrf.mxu0
      %v1706 = vadd.f32 %v1446, %v1705
      %v1707 = vpop.f32.mrf.mxu0
      %1708 = vmatprep.mubr.bf16.mxu0 0
      %1709 = vmatmul.mubr.bf16.gmra.mxu0 %v1571
      %v1710 = vpop.f32.mrf.mxu0
      %v1711 = vpop.f32.mrf.mxu0
      %v1712 = vpop.f32.mrf.mxu0
      %v1713 = vadd.f32 %v1453, %v1712
      %v1714 = vpop.f32.mrf.mxu0
      %1715 = vmatprep.mubr.bf16.mxu0 0
      %1716 = vmatmul.mubr.bf16.gmra.mxu0 %v1573
      %v1717 = vpop.f32.mrf.mxu0
      %v1718 = vadd.f32 %v1458, %v1717
      %v1719 = vpop.f32.mrf.mxu0
      %v1720 = vpop.f32.mrf.mxu0
      %v1721 = vpop.f32.mrf.mxu0
      %1722 = vmatprep.mubr.bf16.mxu0 0
      %1723 = vmatmul.mubr.bf16.gmra.mxu0 %v1575
      %v1724 = vpop.f32.mrf.mxu0
      %v1725 = vadd.f32 %v1465, %v1724
      %v1726 = vpop.f32.mrf.mxu0
      %v1727 = vpop.f32.mrf.mxu0
      %v1728 = vadd.f32 %v1468, %v1727
      %v1729 = vpop.f32.mrf.mxu0
      %1730 = vmatprep.mubr.bf16.mxu0 0
      %1731 = vmatmul.mubr.bf16.gmra.mxu0 %v1577
      %v1732 = vpop.f32.mrf.mxu0
      %v1733 = vpop.f32.mrf.mxu0
      %v1734 = vpop.f32.mrf.mxu0
      %v1735 = vadd.f32 %v1475, %v1734
      %v1736 = vpop.f32.mrf.mxu0
      %1737 = vmatprep.mubr.bf16.mxu0 0
      %1738 = vmatmul.mubr.bf16.gmra.mxu0 %v1579
      %v1739 = vpop.f32.mrf.mxu0
      %v1740 = vadd.f32 %v1480, %v1739
      %v1741 = vpop.f32.mrf.mxu0
      %v1742 = vpop.f32.mrf.mxu0
      %v1743 = vpop.f32.mrf.mxu0
      %1744 = vmatprep.mubr.bf16.mxu0 0
      %1745 = vmatmul.mubr.bf16.gmra.mxu0 %v1581
      %v1746 = vpop.f32.mrf.mxu0
      %v1747 = vadd.f32 %v1487, %v1746
      %v1748 = vpop.f32.mrf.mxu0
      %v1749 = vpop.f32.mrf.mxu0
      %v1750 = vadd.f32 %v1490, %v1749
      %v1751 = vpop.f32.mrf.mxu0
      %1752 = vmatprep.mubr.bf16.mxu0 0
      %1753 = vmatmul.mubr.bf16.gmra.mxu0 %v1583
      %v1754 = vpop.f32.mrf.mxu0
      %v1755 = vpop.f32.mrf.mxu0
      %v1756 = vpop.f32.mrf.mxu0
      %v1757 = vadd.f32 %v1497, %v1756
      %v1758 = vpop.f32.mrf.mxu0
      %1759 = vmatprep.mubr.bf16.mxu0 0
      %1760 = vmatmul.mubr.bf16.gmra.mxu0 %v1585
      %v1761 = vpop.f32.mrf.mxu0
      %v1762 = vadd.f32 %v1502, %v1761
      %v1763 = vpop.f32.mrf.mxu0
      %v1764 = vpop.f32.mrf.mxu0
      %v1765 = vpop.f32.mrf.mxu0
      %1766 = vmatprep.mubr.bf16.mxu0 0
      %1767 = vmatmul.mubr.bf16.gmra.mxu0 %v1587
      %v1768 = vpop.f32.mrf.mxu0
      %v1769 = vadd.f32 %v1509, %v1768
      %v1770 = vpop.f32.mrf.mxu0
      %v1771 = vpop.f32.mrf.mxu0
      %v1772 = vadd.f32 %v1512, %v1771
      %v1773 = vpop.f32.mrf.mxu0
      %1774 = vmatprep.mubr.bf16.mxu0 0
      %1775 = vmatmul.mubr.bf16.gmra.mxu0 %v1589
      %v1776 = vpop.f32.mrf.mxu0
      %v1777 = vpop.f32.mrf.mxu0
      %v1778 = vpop.f32.mrf.mxu0
      %v1779 = vadd.f32 %v1519, %v1778
      %v1780 = vpop.f32.mrf.mxu0
      %1781 = vmatprep.mubr.bf16.mxu0 0
      %1782 = vmatmul.mubr.bf16.gmra.mxu0 %v1591
      %v1783 = vpop.f32.mrf.mxu0
      %v1784 = vadd.f32 %v1524, %v1783
      %v1785 = vpop.f32.mrf.mxu0
      %v1786 = vpop.f32.mrf.mxu0
      %v1787 = vpop.f32.mrf.mxu0
      %1788 = vmatprep.mubr.bf16.mxu0 0
      %1789 = vmatmul.mubr.bf16.gmra.mxu0 %v1593
      %v1790 = vpop.f32.mrf.mxu0
      %v1791 = vadd.f32 %v1531, %v1790
      %v1792 = vpop.f32.mrf.mxu0
      %v1793 = vpop.f32.mrf.mxu0
      %v1794 = vadd.f32 %v1534, %v1793
      %v1795 = vpop.f32.mrf.mxu0
      %1796 = vmatprep.mubr.bf16.mxu0 0
      %1797 = vmatmul.mubr.bf16.gmra.mxu0 %v1595
      %v1798 = vpop.f32.mrf.mxu0
      %v1799 = vpop.f32.mrf.mxu0
      %v1800 = vpop.f32.mrf.mxu0
      %v1801 = vadd.f32 %v1541, %v1800
      %v1802 = vpop.f32.mrf.mxu0
      %1803 = vmatprep.mubr.bf16.mxu0 0
      %1804 = vmatmul.mubr.bf16.gmra.mxu0 %v1597
      %v1805 = vpop.f32.mrf.mxu0
      %v1806 = vadd.f32 %v1546, %v1805
      %v1807 = vpop.f32.mrf.mxu0
      %v1808 = vpop.f32.mrf.mxu0
      %v1809 = vpop.f32.mrf.mxu0
      %1810 = vdwg.mxu0
      %s1811 = scalar_lea.vmem %s3, 4
      %v1812 = vld [vmem:[%s1811] sm:$0x3]
      %vm1838 = vcmask 1046528
      %v1839 = vrot.slane %v1041, 1
      %v1840 = vrot.slane %v1042, 1
      %v1841 = vsel %vm1838, %v1839, %v1840
      %v1842 = vrot.slane %v1043, 1
      %v1843 = vsel %vm1838, %v1840, %v1842
      %v1844 = vrot.slane %v1044, 1
      %v1845 = vsel %vm1838, %v1842, %v1844
      %v1846 = vrot.slane %v1045, 1
      %v1847 = vsel %vm1838, %v1844, %v1846
      %v1848 = vrot.slane %v1046, 1
      %v1849 = vsel %vm1838, %v1846, %v1848
      %v1850 = vrot.slane %v1047, 1
      %v1851 = vsel %vm1838, %v1848, %v1850
      %v1852 = vrot.slane %v1048, 1
      %v1853 = vsel %vm1838, %v1850, %v1852
      %v1854 = vrot.slane %v1049, 1
      %v1855 = vsel %vm1838, %v1852, %v1854
      %v1856 = vrot.slane %v1050, 1
      %v1857 = vsel %vm1838, %v1854, %v1856
      %v1858 = vrot.slane %v1051, 1
      %v1859 = vsel %vm1838, %v1856, %v1858
      %v1860 = vrot.slane %v1052, 1
      %v1861 = vsel %vm1838, %v1858, %v1860
      %v1862 = vrot.slane %v1053, 1
      %v1863 = vsel %vm1838, %v1860, %v1862
      %v1864 = vrot.slane %v1054, 1
      %v1865 = vsel %vm1838, %v1862, %v1864
      %v1866 = vrot.slane %v1055, 1
      %v1867 = vsel %vm1838, %v1864, %v1866
      %v1868 = vrot.slane %v1056, 1
      %v1869 = vsel %vm1838, %v1866, %v1868
      %v1870 = vrot.slane %v1057, 1
      %v1871 = vsel %vm1838, %v1868, %v1870
      %v1872 = vrot.slane %v1058, 1
      %v1873 = vsel %vm1838, %v1870, %v1872
      %v1874 = vrot.slane %v1059, 1
      %v1875 = vsel %vm1838, %v1872, %v1874
      %v1876 = vrot.slane %v1060, 1
      %v1877 = vsel %vm1838, %v1874, %v1876
      %v1878 = vrot.slane %v1061, 1
      %v1879 = vsel %vm1838, %v1876, %v1878
      %v1880 = vrot.slane %v1062, 1
      %v1881 = vsel %vm1838, %v1878, %v1880
      %v1882 = vrot.slane %v1063, 1
      %v1883 = vsel %vm1838, %v1880, %v1882
      %v1884 = vrot.slane %v1064, 1
      %v1885 = vsel %vm1838, %v1882, %v1884
      %v1886 = vrot.slane %v1066, 1
      %v1887 = vsel %vm1838, %v1884, %v1886
      %v1889 = vsel %vm895, %v1841, 0
      %v1892 = vsel %vm895, %v1843, 0
      %v1895 = vsel %vm895, %v1845, 0
      %v1898 = vsel %vm895, %v1847, 0
      %v1901 = vsel %vm895, %v1849, 0
      %v1904 = vsel %vm895, %v1851, 0
      %v1907 = vsel %vm895, %v1853, 0
      %v1910 = vsel %vm895, %v1855, 0
      %v1913 = vsel %vm895, %v1857, 0
      %v1916 = vsel %vm895, %v1859, 0
      %v1919 = vsel %vm895, %v1861, 0
      %v1922 = vsel %vm895, %v1863, 0
      %v1925 = vsel %vm895, %v1865, 0
      %v1928 = vsel %vm895, %v1867, 0
      %v1931 = vsel %vm895, %v1869, 0
      %v1934 = vsel %vm895, %v1871, 0
      %v1937 = vsel %vm895, %v1873, 0
      %v1940 = vsel %vm895, %v1875, 0
      %v1943 = vsel %vm895, %v1877, 0
      %v1946 = vsel %vm895, %v1879, 0
      %v1949 = vsel %vm895, %v1881, 0
      %v1952 = vsel %vm895, %v1883, 0
      %v1955 = vsel %vm895, %v1885, 0
      %v1958 = vsel %vm895, %v1887, 0
      %v1961 = vsel %vm1338, %v1812, 0
      %1963 = vmatprep.subr.bf16.mxu0 0
      %1964 = vmatpush1.bf16.msra.mxu0 0
      %1965 = vmatprep.subr.bf16.mxu0 0
      %1966 = vmatpush1.bf16.msra.mxu0 0
      %1967 = vmatprep.subr.bf16.mxu0 0
      %1968 = vmatpush1.bf16.msra.mxu0 0
      %1969 = vmatprep.subr.bf16.mxu0 0
      %1970 = vmatpush1.bf16.msra.mxu0 0
      %1971 = vmatprep.subr.bf16.mxu0 0
      %1972 = vmatpush1.bf16.msra.mxu0 0
      %1973 = vmatprep.subr.bf16.mxu0 0
      %1974 = vmatpush1.bf16.msra.mxu0 0
      %1975 = vmatprep.subr.bf16.mxu0 0
      %1976 = vmatpush1.bf16.msra.mxu0 0
      %1977 = vmatprep.subr.bf16.mxu0 0
      %1978 = vmatpush1.bf16.msra.mxu0 %v1961
      %1979 = vmatprep.subr.bf16.mxu0 0
      %1980 = vmatpush2.bf16.msra.mxu0 0
      %1981 = vmatprep.subr.bf16.mxu0 0
      %1982 = vmatpush2.bf16.msra.mxu0 0
      %1983 = vmatprep.subr.bf16.mxu0 0
      %1984 = vmatpush2.bf16.msra.mxu0 0
      %1985 = vmatprep.subr.bf16.mxu0 0
      %1986 = vmatpush2.bf16.msra.mxu0 0
      %1987 = vmatprep.subr.bf16.mxu0 0
      %1988 = vmatpush2.bf16.msra.mxu0 0
      %1989 = vmatprep.subr.bf16.mxu0 0
      %1990 = vmatpush2.bf16.msra.mxu0 0
      %1991 = vmatprep.subr.bf16.mxu0 0
      %1992 = vmatpush2.bf16.msra.mxu0 0
      %1993 = vmatprep.subr.bf16.mxu0 0
      %1994 = vmatpush2.bf16.msra.mxu0 0
      %1995 = vmatprep.mubr.bf16.mxu0 0
      %1996 = vmatmul.mubr.bf16.gmra.mxu0 %v1889
      %v1997 = vpop.f32.mrf.mxu0
      %v1998 = vadd.f32 0.0, %v1997
      %v1999 = vpop.f32.mrf.mxu0
      %v2000 = vpop.f32.mrf.mxu0
      %v2001 = vadd.f32 0.0, %v2000
      %v2002 = vpop.f32.mrf.mxu0
      %2003 = vmatprep.mubr.bf16.mxu0 0
      %2004 = vmatmul.mubr.bf16.gmra.mxu0 %v1892
      %v2005 = vpop.f32.mrf.mxu0
      %v2006 = vpop.f32.mrf.mxu0
      %v2007 = vpop.f32.mrf.mxu0
      %v2008 = vadd.f32 0.0, %v2007
      %v2009 = vpop.f32.mrf.mxu0
      %2010 = vmatprep.mubr.bf16.mxu0 0
      %2011 = vmatmul.mubr.bf16.gmra.mxu0 %v1895
      %v2012 = vpop.f32.mrf.mxu0
      %v2013 = vadd.f32 0.0, %v2012
      %v2014 = vpop.f32.mrf.mxu0
      %v2015 = vpop.f32.mrf.mxu0
      %v2016 = vpop.f32.mrf.mxu0
      %2017 = vmatprep.mubr.bf16.mxu0 0
      %2018 = vmatmul.mubr.bf16.gmra.mxu0 %v1898
      %v2019 = vpop.f32.mrf.mxu0
      %v2020 = vadd.f32 0.0, %v2019
      %v2021 = vpop.f32.mrf.mxu0
      %v2022 = vpop.f32.mrf.mxu0
      %v2023 = vadd.f32 0.0, %v2022
      %v2024 = vpop.f32.mrf.mxu0
      %2025 = vmatprep.mubr.bf16.mxu0 0
      %2026 = vmatmul.mubr.bf16.gmra.mxu0 %v1901
      %v2027 = vpop.f32.mrf.mxu0
      %v2028 = vpop.f32.mrf.mxu0
      %v2029 = vpop.f32.mrf.mxu0
      %v2030 = vadd.f32 0.0, %v2029
      %v2031 = vpop.f32.mrf.mxu0
      %2032 = vmatprep.mubr.bf16.mxu0 0
      %2033 = vmatmul.mubr.bf16.gmra.mxu0 %v1904
      %v2034 = vpop.f32.mrf.mxu0
      %v2035 = vadd.f32 0.0, %v2034
      %v2036 = vpop.f32.mrf.mxu0
      %v2037 = vpop.f32.mrf.mxu0
      %v2038 = vpop.f32.mrf.mxu0
      %2039 = vmatprep.mubr.bf16.mxu0 0
      %2040 = vmatmul.mubr.bf16.gmra.mxu0 %v1907
      %v2041 = vpop.f32.mrf.mxu0
      %v2042 = vadd.f32 0.0, %v2041
      %v2043 = vpop.f32.mrf.mxu0
      %v2044 = vpop.f32.mrf.mxu0
      %v2045 = vadd.f32 0.0, %v2044
      %v2046 = vpop.f32.mrf.mxu0
      %2047 = vmatprep.mubr.bf16.mxu0 0
      %2048 = vmatmul.mubr.bf16.gmra.mxu0 %v1910
      %v2049 = vpop.f32.mrf.mxu0
      %v2050 = vpop.f32.mrf.mxu0
      %v2051 = vpop.f32.mrf.mxu0
      %v2052 = vadd.f32 0.0, %v2051
      %v2053 = vpop.f32.mrf.mxu0
      %2054 = vmatprep.mubr.bf16.mxu0 0
      %2055 = vmatmul.mubr.bf16.gmra.mxu0 %v1913
      %v2056 = vpop.f32.mrf.mxu0
      %v2057 = vadd.f32 0.0, %v2056
      %v2058 = vpop.f32.mrf.mxu0
      %v2059 = vpop.f32.mrf.mxu0
      %v2060 = vpop.f32.mrf.mxu0
      %2061 = vmatprep.mubr.bf16.mxu0 0
      %2062 = vmatmul.mubr.bf16.gmra.mxu0 %v1916
      %v2063 = vpop.f32.mrf.mxu0
      %v2064 = vadd.f32 0.0, %v2063
      %v2065 = vpop.f32.mrf.mxu0
      %v2066 = vpop.f32.mrf.mxu0
      %v2067 = vadd.f32 0.0, %v2066
      %v2068 = vpop.f32.mrf.mxu0
      %2069 = vmatprep.mubr.bf16.mxu0 0
      %2070 = vmatmul.mubr.bf16.gmra.mxu0 %v1919
      %v2071 = vpop.f32.mrf.mxu0
      %v2072 = vpop.f32.mrf.mxu0
      %v2073 = vpop.f32.mrf.mxu0
      %v2074 = vadd.f32 0.0, %v2073
      %v2075 = vpop.f32.mrf.mxu0
      %2076 = vmatprep.mubr.bf16.mxu0 0
      %2077 = vmatmul.mubr.bf16.gmra.mxu0 %v1922
      %v2078 = vpop.f32.mrf.mxu0
      %v2079 = vadd.f32 0.0, %v2078
      %v2080 = vpop.f32.mrf.mxu0
      %v2081 = vpop.f32.mrf.mxu0
      %v2082 = vpop.f32.mrf.mxu0
      %2083 = vmatprep.mubr.bf16.mxu0 0
      %2084 = vmatmul.mubr.bf16.gmra.mxu0 %v1925
      %v2085 = vpop.f32.mrf.mxu0
      %v2086 = vadd.f32 0.0, %v2085
      %v2087 = vpop.f32.mrf.mxu0
      %v2088 = vpop.f32.mrf.mxu0
      %v2089 = vadd.f32 0.0, %v2088
      %v2090 = vpop.f32.mrf.mxu0
      %2091 = vmatprep.mubr.bf16.mxu0 0
      %2092 = vmatmul.mubr.bf16.gmra.mxu0 %v1928
      %v2093 = vpop.f32.mrf.mxu0
      %v2094 = vpop.f32.mrf.mxu0
      %v2095 = vpop.f32.mrf.mxu0
      %v2096 = vadd.f32 0.0, %v2095
      %v2097 = vpop.f32.mrf.mxu0
      %2098 = vmatprep.mubr.bf16.mxu0 0
      %2099 = vmatmul.mubr.bf16.gmra.mxu0 %v1931
      %v2100 = vpop.f32.mrf.mxu0
      %v2101 = vadd.f32 0.0, %v2100
      %v2102 = vpop.f32.mrf.mxu0
      %v2103 = vpop.f32.mrf.mxu0
      %v2104 = vpop.f32.mrf.mxu0
      %2105 = vmatprep.mubr.bf16.mxu0 0
      %2106 = vmatmul.mubr.bf16.gmra.mxu0 %v1934
      %v2107 = vpop.f32.mrf.mxu0
      %v2108 = vadd.f32 0.0, %v2107
      %v2109 = vpop.f32.mrf.mxu0
      %v2110 = vpop.f32.mrf.mxu0
      %v2111 = vadd.f32 0.0, %v2110
      %v2112 = vpop.f32.mrf.mxu0
      %2113 = vmatprep.mubr.bf16.mxu0 0
      %2114 = vmatmul.mubr.bf16.gmra.mxu0 %v1937
      %v2115 = vpop.f32.mrf.mxu0
      %v2116 = vpop.f32.mrf.mxu0
      %v2117 = vpop.f32.mrf.mxu0
      %v2118 = vadd.f32 0.0, %v2117
      %v2119 = vpop.f32.mrf.mxu0
      %2120 = vmatprep.mubr.bf16.mxu0 0
      %2121 = vmatmul.mubr.bf16.gmra.mxu0 %v1940
      %v2122 = vpop.f32.mrf.mxu0
      %v2123 = vadd.f32 0.0, %v2122
      %v2124 = vpop.f32.mrf.mxu0
      %v2125 = vpop.f32.mrf.mxu0
      %v2126 = vpop.f32.mrf.mxu0
      %2127 = vmatprep.mubr.bf16.mxu0 0
      %2128 = vmatmul.mubr.bf16.gmra.mxu0 %v1943
      %v2129 = vpop.f32.mrf.mxu0
      %v2130 = vadd.f32 0.0, %v2129
      %v2131 = vpop.f32.mrf.mxu0
      %v2132 = vpop.f32.mrf.mxu0
      %v2133 = vadd.f32 0.0, %v2132
      %v2134 = vpop.f32.mrf.mxu0
      %2135 = vmatprep.mubr.bf16.mxu0 0
      %2136 = vmatmul.mubr.bf16.gmra.mxu0 %v1946
      %v2137 = vpop.f32.mrf.mxu0
      %v2138 = vpop.f32.mrf.mxu0
      %v2139 = vpop.f32.mrf.mxu0
      %v2140 = vadd.f32 0.0, %v2139
      %v2141 = vpop.f32.mrf.mxu0
      %2142 = vmatprep.mubr.bf16.mxu0 0
      %2143 = vmatmul.mubr.bf16.gmra.mxu0 %v1949
      %v2144 = vpop.f32.mrf.mxu0
      %v2145 = vadd.f32 0.0, %v2144
      %v2146 = vpop.f32.mrf.mxu0
      %v2147 = vpop.f32.mrf.mxu0
      %v2148 = vpop.f32.mrf.mxu0
      %2149 = vmatprep.mubr.bf16.mxu0 0
      %2150 = vmatmul.mubr.bf16.gmra.mxu0 %v1952
      %v2151 = vpop.f32.mrf.mxu0
      %v2152 = vadd.f32 0.0, %v2151
      %v2153 = vpop.f32.mrf.mxu0
      %v2154 = vpop.f32.mrf.mxu0
      %v2155 = vadd.f32 0.0, %v2154
      %v2156 = vpop.f32.mrf.mxu0
      %2157 = vmatprep.mubr.bf16.mxu0 0
      %2158 = vmatmul.mubr.bf16.gmra.mxu0 %v1955
      %v2159 = vpop.f32.mrf.mxu0
      %v2160 = vpop.f32.mrf.mxu0
      %v2161 = vpop.f32.mrf.mxu0
      %v2162 = vadd.f32 0.0, %v2161
      %v2163 = vpop.f32.mrf.mxu0
      %2164 = vmatprep.mubr.bf16.mxu0 0
      %2165 = vmatmul.mubr.bf16.gmra.mxu0 %v1958
      %v2166 = vpop.f32.mrf.mxu0
      %v2167 = vadd.f32 0.0, %v2166
      %v2168 = vpop.f32.mrf.mxu0
      %v2169 = vpop.f32.mrf.mxu0
      %v2170 = vpop.f32.mrf.mxu0
      %2171 = vdwg.mxu0
      %v2172 = vadd.f32 %v1637, %v1998
      %v2173 = vadd.f32 %v1640, %v2001
      %v2174 = vadd.f32 %v1647, %v2008
      %v2175 = vadd.f32 %v1652, %v2013
      %v2176 = vadd.f32 %v1659, %v2020
      %v2177 = vadd.f32 %v1662, %v2023
      %v2178 = vadd.f32 %v1669, %v2030
      %v2179 = vadd.f32 %v1674, %v2035
      %v2180 = vadd.f32 %v1681, %v2042
      %v2181 = vadd.f32 %v1684, %v2045
      %v2182 = vadd.f32 %v1691, %v2052
      %v2183 = vadd.f32 %v1696, %v2057
      %v2184 = vadd.f32 %v1703, %v2064
      %v2185 = vadd.f32 %v1706, %v2067
      %v2186 = vadd.f32 %v1713, %v2074
      %v2187 = vadd.f32 %v1718, %v2079
      %v2188 = vadd.f32 %v1725, %v2086
      %v2189 = vadd.f32 %v1728, %v2089
      %v2190 = vadd.f32 %v1735, %v2096
      %v2191 = vadd.f32 %v1740, %v2101
      %v2192 = vadd.f32 %v1747, %v2108
      %v2193 = vadd.f32 %v1750, %v2111
      %v2194 = vadd.f32 %v1757, %v2118
      %v2195 = vadd.f32 %v1762, %v2123
      %v2196 = vadd.f32 %v1769, %v2130
      %v2197 = vadd.f32 %v1772, %v2133
      %v2198 = vadd.f32 %v1779, %v2140
      %v2199 = vadd.f32 %v1784, %v2145
      %v2200 = vadd.f32 %v1791, %v2152
      %v2201 = vadd.f32 %v1794, %v2155
      %v2202 = vadd.f32 %v1801, %v2162
      %v2203 = vadd.f32 %v1806, %v2167
      %v2204 = vpack.c.bf16 %v990, %v989
      %v2205 = vpack.c.bf16 %v992, %v991
      %v2206 = vpack.c.bf16 %v994, %v993
      %v2207 = vpack.c.bf16 %v996, %v995
      %v2208 = vpack.c.bf16 %v998, %v997
      %v2209 = vpack.c.bf16 %v1000, %v999
      %v2210 = vpack.c.bf16 %v1002, %v1001
      %v2211 = vpack.c.bf16 %v1004, %v1003
      %v2212 = vpack.c.bf16 %v1006, %v1005
      %v2213 = vpack.c.bf16 %v1008, %v1007
      %v2214 = vpack.c.bf16 %v1010, %v1009
      %v2215 = vpack.c.bf16 %v1012, %v1011
      %v2216 = vpack.c.bf16 %v1014, %v1013
      %v2217 = vpack.c.bf16 %v1016, %v1015
      %v2218 = vpack.c.bf16 %v1018, %v1017
      %v2219 = vpack.c.bf16 %v1020, %v1019
      %v2220 = vpack.c.bf16 %v1022, %v1021
      %v2221 = vpack.c.bf16 %v1024, %v1023
      %v2222 = vpack.c.bf16 %v1026, %v1025
      %v2223 = vpack.c.bf16 %v1028, %v1027
      %v2224 = vpack.c.bf16 %v1030, %v1029
      %v2225 = vpack.c.bf16 %v1032, %v1031
      %v2226 = vpack.c.bf16 %v1034, %v1033
      %v2227 = vpack.c.bf16 %v1036, %v1035
      %s2228 = scalar_lea.vmem %s3, 6
      %v2229 = vld [vmem:[%s2228] sm:$0x3]
      %v2231 = vsel %vm895, %v2204, 0
      %v2234 = vsel %vm895, %v2205, 0
      %v2237 = vsel %vm895, %v2206, 0
      %v2240 = vsel %vm895, %v2207, 0
      %v2243 = vsel %vm895, %v2208, 0
      %v2246 = vsel %vm895, %v2209, 0
      %v2249 = vsel %vm895, %v2210, 0
      %v2252 = vsel %vm895, %v2211, 0
      %v2255 = vsel %vm895, %v2212, 0
      %v2258 = vsel %vm895, %v2213, 0
      %v2261 = vsel %vm895, %v2214, 0
      %v2264 = vsel %vm895, %v2215, 0
      %v2267 = vsel %vm895, %v2216, 0
      %v2270 = vsel %vm895, %v2217, 0
      %v2273 = vsel %vm895, %v2218, 0
      %v2276 = vsel %vm895, %v2219, 0
      %v2279 = vsel %vm895, %v2220, 0
      %v2282 = vsel %vm895, %v2221, 0
      %v2285 = vsel %vm895, %v2222, 0
      %v2288 = vsel %vm895, %v2223, 0
      %v2291 = vsel %vm895, %v2224, 0
      %v2294 = vsel %vm895, %v2225, 0
      %v2297 = vsel %vm895, %v2226, 0
      %v2300 = vsel %vm895, %v2227, 0
      %v2303 = vsel %vm1338, %v2229, 0
      %2305 = vmatprep.subr.bf16.mxu0 0
      %2306 = vmatpush1.bf16.msra.mxu0 0
      %2307 = vmatprep.subr.bf16.mxu0 0
      %2308 = vmatpush1.bf16.msra.mxu0 0
      %2309 = vmatprep.subr.bf16.mxu0 0
      %2310 = vmatpush1.bf16.msra.mxu0 0
      %2311 = vmatprep.subr.bf16.mxu0 0
      %2312 = vmatpush1.bf16.msra.mxu0 0
      %2313 = vmatprep.subr.bf16.mxu0 0
      %2314 = vmatpush1.bf16.msra.mxu0 0
      %2315 = vmatprep.subr.bf16.mxu0 0
      %2316 = vmatpush1.bf16.msra.mxu0 0
      %2317 = vmatprep.subr.bf16.mxu0 0
      %2318 = vmatpush1.bf16.msra.mxu0 0
      %2319 = vmatprep.subr.bf16.mxu0 0
      %2320 = vmatpush1.bf16.msra.mxu0 %v2303
      %2321 = vmatprep.subr.bf16.mxu0 0
      %2322 = vmatpush2.bf16.msra.mxu0 0
      %2323 = vmatprep.subr.bf16.mxu0 0
      %2324 = vmatpush2.bf16.msra.mxu0 0
      %2325 = vmatprep.subr.bf16.mxu0 0
      %2326 = vmatpush2.bf16.msra.mxu0 0
      %2327 = vmatprep.subr.bf16.mxu0 0
      %2328 = vmatpush2.bf16.msra.mxu0 0
      %2329 = vmatprep.subr.bf16.mxu0 0
      %2330 = vmatpush2.bf16.msra.mxu0 0
      %2331 = vmatprep.subr.bf16.mxu0 0
      %2332 = vmatpush2.bf16.msra.mxu0 0
      %2333 = vmatprep.subr.bf16.mxu0 0
      %2334 = vmatpush2.bf16.msra.mxu0 0
      %2335 = vmatprep.subr.bf16.mxu0 0
      %2336 = vmatpush2.bf16.msra.mxu0 0
      %2337 = vmatprep.mubr.bf16.mxu0 0
      %2338 = vmatmul.mubr.bf16.gmra.mxu0 %v2231
      %v2339 = vpop.f32.mrf.mxu0
      %v2340 = vadd.f32 0.0, %v2339
      %v2341 = vpop.f32.mrf.mxu0
      %v2342 = vpop.f32.mrf.mxu0
      %v2343 = vadd.f32 0.0, %v2342
      %v2344 = vpop.f32.mrf.mxu0
      %2345 = vmatprep.mubr.bf16.mxu0 0
      %2346 = vmatmul.mubr.bf16.gmra.mxu0 %v2234
      %v2347 = vpop.f32.mrf.mxu0
      %v2348 = vpop.f32.mrf.mxu0
      %v2349 = vpop.f32.mrf.mxu0
      %v2350 = vadd.f32 0.0, %v2349
      %v2351 = vpop.f32.mrf.mxu0
      %2352 = vmatprep.mubr.bf16.mxu0 0
      %2353 = vmatmul.mubr.bf16.gmra.mxu0 %v2237
      %v2354 = vpop.f32.mrf.mxu0
      %v2355 = vadd.f32 0.0, %v2354
      %v2356 = vpop.f32.mrf.mxu0
      %v2357 = vpop.f32.mrf.mxu0
      %v2358 = vpop.f32.mrf.mxu0
      %2359 = vmatprep.mubr.bf16.mxu0 0
      %2360 = vmatmul.mubr.bf16.gmra.mxu0 %v2240
      %v2361 = vpop.f32.mrf.mxu0
      %v2362 = vadd.f32 0.0, %v2361
      %v2363 = vpop.f32.mrf.mxu0
      %v2364 = vpop.f32.mrf.mxu0
      %v2365 = vadd.f32 0.0, %v2364
      %v2366 = vpop.f32.mrf.mxu0
      %2367 = vmatprep.mubr.bf16.mxu0 0
      %2368 = vmatmul.mubr.bf16.gmra.mxu0 %v2243
      %v2369 = vpop.f32.mrf.mxu0
      %v2370 = vpop.f32.mrf.mxu0
      %v2371 = vpop.f32.mrf.mxu0
      %v2372 = vadd.f32 0.0, %v2371
      %v2373 = vpop.f32.mrf.mxu0
      %2374 = vmatprep.mubr.bf16.mxu0 0
      %2375 = vmatmul.mubr.bf16.gmra.mxu0 %v2246
      %v2376 = vpop.f32.mrf.mxu0
      %v2377 = vadd.f32 0.0, %v2376
      %v2378 = vpop.f32.mrf.mxu0
      %v2379 = vpop.f32.mrf.mxu0
      %v2380 = vpop.f32.mrf.mxu0
      %2381 = vmatprep.mubr.bf16.mxu0 0
      %2382 = vmatmul.mubr.bf16.gmra.mxu0 %v2249
      %v2383 = vpop.f32.mrf.mxu0
      %v2384 = vadd.f32 0.0, %v2383
      %v2385 = vpop.f32.mrf.mxu0
      %v2386 = vpop.f32.mrf.mxu0
      %v2387 = vadd.f32 0.0, %v2386
      %v2388 = vpop.f32.mrf.mxu0
      %2389 = vmatprep.mubr.bf16.mxu0 0
      %2390 = vmatmul.mubr.bf16.gmra.mxu0 %v2252
      %v2391 = vpop.f32.mrf.mxu0
      %v2392 = vpop.f32.mrf.mxu0
      %v2393 = vpop.f32.mrf.mxu0
      %v2394 = vadd.f32 0.0, %v2393
      %v2395 = vpop.f32.mrf.mxu0
      %2396 = vmatprep.mubr.bf16.mxu0 0
      %2397 = vmatmul.mubr.bf16.gmra.mxu0 %v2255
      %v2398 = vpop.f32.mrf.mxu0
      %v2399 = vadd.f32 0.0, %v2398
      %v2400 = vpop.f32.mrf.mxu0
      %v2401 = vpop.f32.mrf.mxu0
      %v2402 = vpop.f32.mrf.mxu0
      %2403 = vmatprep.mubr.bf16.mxu0 0
      %2404 = vmatmul.mubr.bf16.gmra.mxu0 %v2258
      %v2405 = vpop.f32.mrf.mxu0
      %v2406 = vadd.f32 0.0, %v2405
      %v2407 = vpop.f32.mrf.mxu0
      %v2408 = vpop.f32.mrf.mxu0
      %v2409 = vadd.f32 0.0, %v2408
      %v2410 = vpop.f32.mrf.mxu0
      %2411 = vmatprep.mubr.bf16.mxu0 0
      %2412 = vmatmul.mubr.bf16.gmra.mxu0 %v2261
      %v2413 = vpop.f32.mrf.mxu0
      %v2414 = vpop.f32.mrf.mxu0
      %v2415 = vpop.f32.mrf.mxu0
      %v2416 = vadd.f32 0.0, %v2415
      %v2417 = vpop.f32.mrf.mxu0
      %2418 = vmatprep.mubr.bf16.mxu0 0
      %2419 = vmatmul.mubr.bf16.gmra.mxu0 %v2264
      %v2420 = vpop.f32.mrf.mxu0
      %v2421 = vadd.f32 0.0, %v2420
      %v2422 = vpop.f32.mrf.mxu0
      %v2423 = vpop.f32.mrf.mxu0
      %v2424 = vpop.f32.mrf.mxu0
      %2425 = vmatprep.mubr.bf16.mxu0 0
      %2426 = vmatmul.mubr.bf16.gmra.mxu0 %v2267
      %v2427 = vpop.f32.mrf.mxu0
      %v2428 = vadd.f32 0.0, %v2427
      %v2429 = vpop.f32.mrf.mxu0
      %v2430 = vpop.f32.mrf.mxu0
      %v2431 = vadd.f32 0.0, %v2430
      %v2432 = vpop.f32.mrf.mxu0
      %2433 = vmatprep.mubr.bf16.mxu0 0
      %2434 = vmatmul.mubr.bf16.gmra.mxu0 %v2270
      %v2435 = vpop.f32.mrf.mxu0
      %v2436 = vpop.f32.mrf.mxu0
      %v2437 = vpop.f32.mrf.mxu0
      %v2438 = vadd.f32 0.0, %v2437
      %v2439 = vpop.f32.mrf.mxu0
      %2440 = vmatprep.mubr.bf16.mxu0 0
      %2441 = vmatmul.mubr.bf16.gmra.mxu0 %v2273
      %v2442 = vpop.f32.mrf.mxu0
      %v2443 = vadd.f32 0.0, %v2442
      %v2444 = vpop.f32.mrf.mxu0
      %v2445 = vpop.f32.mrf.mxu0
      %v2446 = vpop.f32.mrf.mxu0
      %2447 = vmatprep.mubr.bf16.mxu0 0
      %2448 = vmatmul.mubr.bf16.gmra.mxu0 %v2276
      %v2449 = vpop.f32.mrf.mxu0
      %v2450 = vadd.f32 0.0, %v2449
      %v2451 = vpop.f32.mrf.mxu0
      %v2452 = vpop.f32.mrf.mxu0
      %v2453 = vadd.f32 0.0, %v2452
      %v2454 = vpop.f32.mrf.mxu0
      %2455 = vmatprep.mubr.bf16.mxu0 0
      %2456 = vmatmul.mubr.bf16.gmra.mxu0 %v2279
      %v2457 = vpop.f32.mrf.mxu0
      %v2458 = vpop.f32.mrf.mxu0
      %v2459 = vpop.f32.mrf.mxu0
      %v2460 = vadd.f32 0.0, %v2459
      %v2461 = vpop.f32.mrf.mxu0
      %2462 = vmatprep.mubr.bf16.mxu0 0
      %2463 = vmatmul.mubr.bf16.gmra.mxu0 %v2282
      %v2464 = vpop.f32.mrf.mxu0
      %v2465 = vadd.f32 0.0, %v2464
      %v2466 = vpop.f32.mrf.mxu0
      %v2467 = vpop.f32.mrf.mxu0
      %v2468 = vpop.f32.mrf.mxu0
      %2469 = vmatprep.mubr.bf16.mxu0 0
      %2470 = vmatmul.mubr.bf16.gmra.mxu0 %v2285
      %v2471 = vpop.f32.mrf.mxu0
      %v2472 = vadd.f32 0.0, %v2471
      %v2473 = vpop.f32.mrf.mxu0
      %v2474 = vpop.f32.mrf.mxu0
      %v2475 = vadd.f32 0.0, %v2474
      %v2476 = vpop.f32.mrf.mxu0
      %2477 = vmatprep.mubr.bf16.mxu0 0
      %2478 = vmatmul.mubr.bf16.gmra.mxu0 %v2288
      %v2479 = vpop.f32.mrf.mxu0
      %v2480 = vpop.f32.mrf.mxu0
      %v2481 = vpop.f32.mrf.mxu0
      %v2482 = vadd.f32 0.0, %v2481
      %v2483 = vpop.f32.mrf.mxu0
      %2484 = vmatprep.mubr.bf16.mxu0 0
      %2485 = vmatmul.mubr.bf16.gmra.mxu0 %v2291
      %v2486 = vpop.f32.mrf.mxu0
      %v2487 = vadd.f32 0.0, %v2486
      %v2488 = vpop.f32.mrf.mxu0
      %v2489 = vpop.f32.mrf.mxu0
      %v2490 = vpop.f32.mrf.mxu0
      %2491 = vmatprep.mubr.bf16.mxu0 0
      %2492 = vmatmul.mubr.bf16.gmra.mxu0 %v2294
      %v2493 = vpop.f32.mrf.mxu0
      %v2494 = vadd.f32 0.0, %v2493
      %v2495 = vpop.f32.mrf.mxu0
      %v2496 = vpop.f32.mrf.mxu0
      %v2497 = vadd.f32 0.0, %v2496
      %v2498 = vpop.f32.mrf.mxu0
      %2499 = vmatprep.mubr.bf16.mxu0 0
      %2500 = vmatmul.mubr.bf16.gmra.mxu0 %v2297
      %v2501 = vpop.f32.mrf.mxu0
      %v2502 = vpop.f32.mrf.mxu0
      %v2503 = vpop.f32.mrf.mxu0
      %v2504 = vadd.f32 0.0, %v2503
      %v2505 = vpop.f32.mrf.mxu0
      %2506 = vmatprep.mubr.bf16.mxu0 0
      %2507 = vmatmul.mubr.bf16.gmra.mxu0 %v2300
      %v2508 = vpop.f32.mrf.mxu0
      %v2509 = vadd.f32 0.0, %v2508
      %v2510 = vpop.f32.mrf.mxu0
      %v2511 = vpop.f32.mrf.mxu0
      %v2512 = vpop.f32.mrf.mxu0
      %2513 = vdwg.mxu0
      %v2514 = vadd.f32 %v2172, %v2340
      %v2515 = vadd.f32 %v2173, %v2343
      %v2516 = vadd.f32 %v2174, %v2350
      %v2517 = vadd.f32 %v2175, %v2355
      %v2518 = vadd.f32 %v2176, %v2362
      %v2519 = vadd.f32 %v2177, %v2365
      %v2520 = vadd.f32 %v2178, %v2372
      %v2521 = vadd.f32 %v2179, %v2377
      %v2522 = vadd.f32 %v2180, %v2384
      %v2523 = vadd.f32 %v2181, %v2387
      %v2524 = vadd.f32 %v2182, %v2394
      %v2525 = vadd.f32 %v2183, %v2399
      %v2526 = vadd.f32 %v2184, %v2406
      %v2527 = vadd.f32 %v2185, %v2409
      %v2528 = vadd.f32 %v2186, %v2416
      %v2529 = vadd.f32 %v2187, %v2421
      %v2530 = vadd.f32 %v2188, %v2428
      %v2531 = vadd.f32 %v2189, %v2431
      %v2532 = vadd.f32 %v2190, %v2438
      %v2533 = vadd.f32 %v2191, %v2443
      %v2534 = vadd.f32 %v2192, %v2450
      %v2535 = vadd.f32 %v2193, %v2453
      %v2536 = vadd.f32 %v2194, %v2460
      %v2537 = vadd.f32 %v2195, %v2465
      %v2538 = vadd.f32 %v2196, %v2472
      %v2539 = vadd.f32 %v2197, %v2475
      %v2540 = vadd.f32 %v2198, %v2482
      %v2541 = vadd.f32 %v2199, %v2487
      %v2542 = vadd.f32 %v2200, %v2494
      %v2543 = vadd.f32 %v2201, %v2497
      %v2544 = vadd.f32 %v2202, %v2504
      %v2545 = vadd.f32 %v2203, %v2509
      %v2546 = vpack.c.bf16 %v1037, %v1037
      %s2547 = scalar_lea.vmem %s3, 8
      %v2548 = vld [vmem:[%s2547] sm:$0x3]
      %v2549 = vshrl.u32 %v2204, 16
      %v2551 = vshll.u32 %v2204, 16
      %v2553 = vrot.slane %v2551, 1
      %v2554 = vor.u32 %v2549, %v2553
      %v2555 = vshll.u32 %v2205, 16
      %v2557 = vrot.slane %v2555, 1
      %v2558 = vsel %vm1069, %v2554, %v2557
      %v2559 = vshrl.u32 %v2205, 16
      %v2561 = vor.u32 %v2559, %v2557
      %v2562 = vshll.u32 %v2206, 16
      %v2564 = vrot.slane %v2562, 1
      %v2565 = vsel %vm1069, %v2561, %v2564
      %v2566 = vshrl.u32 %v2206, 16
      %v2568 = vor.u32 %v2566, %v2564
      %v2569 = vshll.u32 %v2207, 16
      %v2571 = vrot.slane %v2569, 1
      %v2572 = vsel %vm1069, %v2568, %v2571
      %v2573 = vshrl.u32 %v2207, 16
      %v2575 = vor.u32 %v2573, %v2571
      %v2576 = vshll.u32 %v2208, 16
      %v2578 = vrot.slane %v2576, 1
      %v2579 = vsel %vm1069, %v2575, %v2578
      %v2580 = vshrl.u32 %v2208, 16
      %v2582 = vor.u32 %v2580, %v2578
      %v2583 = vshll.u32 %v2209, 16
      %v2585 = vrot.slane %v2583, 1
      %v2586 = vsel %vm1069, %v2582, %v2585
      %v2587 = vshrl.u32 %v2209, 16
      %v2589 = vor.u32 %v2587, %v2585
      %v2590 = vshll.u32 %v2210, 16
      %v2592 = vrot.slane %v2590, 1
      %v2593 = vsel %vm1069, %v2589, %v2592
      %v2594 = vshrl.u32 %v2210, 16
      %v2596 = vor.u32 %v2594, %v2592
      %v2597 = vshll.u32 %v2211, 16
      %v2599 = vrot.slane %v2597, 1
      %v2600 = vsel %vm1069, %v2596, %v2599
      %v2601 = vshrl.u32 %v2211, 16
      %v2603 = vor.u32 %v2601, %v2599
      %v2604 = vshll.u32 %v2212, 16
      %v2606 = vrot.slane %v2604, 1
      %v2607 = vsel %vm1069, %v2603, %v2606
      %v2608 = vshrl.u32 %v2212, 16
      %v2610 = vor.u32 %v2608, %v2606
      %v2611 = vshll.u32 %v2213, 16
      %v2613 = vrot.slane %v2611, 1
      %v2614 = vsel %vm1069, %v2610, %v2613
      %v2615 = vshrl.u32 %v2213, 16
      %v2617 = vor.u32 %v2615, %v2613
      %v2618 = vshll.u32 %v2214, 16
      %v2620 = vrot.slane %v2618, 1
      %v2621 = vsel %vm1069, %v2617, %v2620
      %v2622 = vshrl.u32 %v2214, 16
      %v2624 = vor.u32 %v2622, %v2620
      %v2625 = vshll.u32 %v2215, 16
      %v2627 = vrot.slane %v2625, 1
      %v2628 = vsel %vm1069, %v2624, %v2627
      %v2629 = vshrl.u32 %v2215, 16
      %v2631 = vor.u32 %v2629, %v2627
      %v2632 = vshll.u32 %v2216, 16
      %v2634 = vrot.slane %v2632, 1
      %v2635 = vsel %vm1069, %v2631, %v2634
      %v2636 = vshrl.u32 %v2216, 16
      %v2638 = vor.u32 %v2636, %v2634
      %v2639 = vshll.u32 %v2217, 16
      %v2641 = vrot.slane %v2639, 1
      %v2642 = vsel %vm1069, %v2638, %v2641
      %v2643 = vshrl.u32 %v2217, 16
      %v2645 = vor.u32 %v2643, %v2641
      %v2646 = vshll.u32 %v2218, 16
      %v2648 = vrot.slane %v2646, 1
      %v2649 = vsel %vm1069, %v2645, %v2648
      %v2650 = vshrl.u32 %v2218, 16
      %v2652 = vor.u32 %v2650, %v2648
      %v2653 = vshll.u32 %v2219, 16
      %v2655 = vrot.slane %v2653, 1
      %v2656 = vsel %vm1069, %v2652, %v2655
      %v2657 = vshrl.u32 %v2219, 16
      %v2659 = vor.u32 %v2657, %v2655
      %v2660 = vshll.u32 %v2220, 16
      %v2662 = vrot.slane %v2660, 1
      %v2663 = vsel %vm1069, %v2659, %v2662
      %v2664 = vshrl.u32 %v2220, 16
      %v2666 = vor.u32 %v2664, %v2662
      %v2667 = vshll.u32 %v2221, 16
      %v2669 = vrot.slane %v2667, 1
      %v2670 = vsel %vm1069, %v2666, %v2669
      %v2671 = vshrl.u32 %v2221, 16
      %v2673 = vor.u32 %v2671, %v2669
      %v2674 = vshll.u32 %v2222, 16
      %v2676 = vrot.slane %v2674, 1
      %v2677 = vsel %vm1069, %v2673, %v2676
      %v2678 = vshrl.u32 %v2222, 16
      %v2680 = vor.u32 %v2678, %v2676
      %v2681 = vshll.u32 %v2223, 16
      %v2683 = vrot.slane %v2681, 1
      %v2684 = vsel %vm1069, %v2680, %v2683
      %v2685 = vshrl.u32 %v2223, 16
      %v2687 = vor.u32 %v2685, %v2683
      %v2688 = vshll.u32 %v2224, 16
      %v2690 = vrot.slane %v2688, 1
      %v2691 = vsel %vm1069, %v2687, %v2690
      %v2692 = vshrl.u32 %v2224, 16
      %v2694 = vor.u32 %v2692, %v2690
      %v2695 = vshll.u32 %v2225, 16
      %v2697 = vrot.slane %v2695, 1
      %v2698 = vsel %vm1069, %v2694, %v2697
      %v2699 = vshrl.u32 %v2225, 16
      %v2701 = vor.u32 %v2699, %v2697
      %v2702 = vshll.u32 %v2226, 16
      %v2704 = vrot.slane %v2702, 1
      %v2705 = vsel %vm1069, %v2701, %v2704
      %v2706 = vshrl.u32 %v2226, 16
      %v2708 = vor.u32 %v2706, %v2704
      %v2709 = vshll.u32 %v2227, 16
      %v2711 = vrot.slane %v2709, 1
      %v2712 = vsel %vm1069, %v2708, %v2711
      %v2713 = vshrl.u32 %v2227, 16
      %v2715 = vor.u32 %v2713, %v2711
      %v2717 = vshll.u32 %v2546, 16
      %v2719 = vrot.slane %v2717, 1
      %v2720 = vsel %vm1069, %v2715, %v2719
      %v2722 = vsel %vm895, %v2558, 0
      %v2725 = vsel %vm895, %v2565, 0
      %v2728 = vsel %vm895, %v2572, 0
      %v2731 = vsel %vm895, %v2579, 0
      %v2734 = vsel %vm895, %v2586, 0
      %v2737 = vsel %vm895, %v2593, 0
      %v2740 = vsel %vm895, %v2600, 0
      %v2743 = vsel %vm895, %v2607, 0
      %v2746 = vsel %vm895, %v2614, 0
      %v2749 = vsel %vm895, %v2621, 0
      %v2752 = vsel %vm895, %v2628, 0
      %v2755 = vsel %vm895, %v2635, 0
      %v2758 = vsel %vm895, %v2642, 0
      %v2761 = vsel %vm895, %v2649, 0
      %v2764 = vsel %vm895, %v2656, 0
      %v2767 = vsel %vm895, %v2663, 0
      %v2770 = vsel %vm895, %v2670, 0
      %v2773 = vsel %vm895, %v2677, 0
      %v2776 = vsel %vm895, %v2684, 0
      %v2779 = vsel %vm895, %v2691, 0
      %v2782 = vsel %vm895, %v2698, 0
      %v2785 = vsel %vm895, %v2705, 0
      %v2788 = vsel %vm895, %v2712, 0
      %v2791 = vsel %vm895, %v2720, 0
      %v2794 = vsel %vm1338, %v2548, 0
      %2796 = vmatprep.subr.bf16.mxu0 0
      %2797 = vmatpush1.bf16.msra.mxu0 0
      %2798 = vmatprep.subr.bf16.mxu0 0
      %2799 = vmatpush1.bf16.msra.mxu0 0
      %2800 = vmatprep.subr.bf16.mxu0 0
      %2801 = vmatpush1.bf16.msra.mxu0 0
      %2802 = vmatprep.subr.bf16.mxu0 0
      %2803 = vmatpush1.bf16.msra.mxu0 0
      %2804 = vmatprep.subr.bf16.mxu0 0
      %2805 = vmatpush1.bf16.msra.mxu0 0
      %2806 = vmatprep.subr.bf16.mxu0 0
      %2807 = vmatpush1.bf16.msra.mxu0 0
      %2808 = vmatprep.subr.bf16.mxu0 0
      %2809 = vmatpush1.bf16.msra.mxu0 0
      %2810 = vmatprep.subr.bf16.mxu0 0
      %2811 = vmatpush1.bf16.msra.mxu0 %v2794
      %2812 = vmatprep.subr.bf16.mxu0 0
      %2813 = vmatpush2.bf16.msra.mxu0 0
      %2814 = vmatprep.subr.bf16.mxu0 0
      %2815 = vmatpush2.bf16.msra.mxu0 0
      %2816 = vmatprep.subr.bf16.mxu0 0
      %2817 = vmatpush2.bf16.msra.mxu0 0
      %2818 = vmatprep.subr.bf16.mxu0 0
      %2819 = vmatpush2.bf16.msra.mxu0 0
      %2820 = vmatprep.subr.bf16.mxu0 0
      %2821 = vmatpush2.bf16.msra.mxu0 0
      %2822 = vmatprep.subr.bf16.mxu0 0
      %2823 = vmatpush2.bf16.msra.mxu0 0
      %2824 = vmatprep.subr.bf16.mxu0 0
      %2825 = vmatpush2.bf16.msra.mxu0 0
      %2826 = vmatprep.subr.bf16.mxu0 0
      %2827 = vmatpush2.bf16.msra.mxu0 0
      %2828 = vmatprep.mubr.bf16.mxu0 0
      %2829 = vmatmul.mubr.bf16.gmra.mxu0 %v2722
      %v2830 = vpop.f32.mrf.mxu0
      %v2831 = vadd.f32 0.0, %v2830
      %v2832 = vpop.f32.mrf.mxu0
      %v2833 = vpop.f32.mrf.mxu0
      %v2834 = vadd.f32 0.0, %v2833
      %v2835 = vpop.f32.mrf.mxu0
      %2836 = vmatprep.mubr.bf16.mxu0 0
      %2837 = vmatmul.mubr.bf16.gmra.mxu0 %v2725
      %v2838 = vpop.f32.mrf.mxu0
      %v2839 = vpop.f32.mrf.mxu0
      %v2840 = vpop.f32.mrf.mxu0
      %v2841 = vadd.f32 0.0, %v2840
      %v2842 = vpop.f32.mrf.mxu0
      %2843 = vmatprep.mubr.bf16.mxu0 0
      %2844 = vmatmul.mubr.bf16.gmra.mxu0 %v2728
      %v2845 = vpop.f32.mrf.mxu0
      %v2846 = vadd.f32 0.0, %v2845
      %v2847 = vpop.f32.mrf.mxu0
      %v2848 = vpop.f32.mrf.mxu0
      %v2849 = vpop.f32.mrf.mxu0
      %2850 = vmatprep.mubr.bf16.mxu0 0
      %2851 = vmatmul.mubr.bf16.gmra.mxu0 %v2731
      %v2852 = vpop.f32.mrf.mxu0
      %v2853 = vadd.f32 0.0, %v2852
      %v2854 = vpop.f32.mrf.mxu0
      %v2855 = vpop.f32.mrf.mxu0
      %v2856 = vadd.f32 0.0, %v2855
      %v2857 = vpop.f32.mrf.mxu0
      %2858 = vmatprep.mubr.bf16.mxu0 0
      %2859 = vmatmul.mubr.bf16.gmra.mxu0 %v2734
      %v2860 = vpop.f32.mrf.mxu0
      %v2861 = vpop.f32.mrf.mxu0
      %v2862 = vpop.f32.mrf.mxu0
      %v2863 = vadd.f32 0.0, %v2862
      %v2864 = vpop.f32.mrf.mxu0
      %2865 = vmatprep.mubr.bf16.mxu0 0
      %2866 = vmatmul.mubr.bf16.gmra.mxu0 %v2737
      %v2867 = vpop.f32.mrf.mxu0
      %v2868 = vadd.f32 0.0, %v2867
      %v2869 = vpop.f32.mrf.mxu0
      %v2870 = vpop.f32.mrf.mxu0
      %v2871 = vpop.f32.mrf.mxu0
      %2872 = vmatprep.mubr.bf16.mxu0 0
      %2873 = vmatmul.mubr.bf16.gmra.mxu0 %v2740
      %v2874 = vpop.f32.mrf.mxu0
      %v2875 = vadd.f32 0.0, %v2874
      %v2876 = vpop.f32.mrf.mxu0
      %v2877 = vpop.f32.mrf.mxu0
      %v2878 = vadd.f32 0.0, %v2877
      %v2879 = vpop.f32.mrf.mxu0
      %2880 = vmatprep.mubr.bf16.mxu0 0
      %2881 = vmatmul.mubr.bf16.gmra.mxu0 %v2743
      %v2882 = vpop.f32.mrf.mxu0
      %v2883 = vpop.f32.mrf.mxu0
      %v2884 = vpop.f32.mrf.mxu0
      %v2885 = vadd.f32 0.0, %v2884
      %v2886 = vpop.f32.mrf.mxu0
      %2887 = vmatprep.mubr.bf16.mxu0 0
      %2888 = vmatmul.mubr.bf16.gmra.mxu0 %v2746
      %v2889 = vpop.f32.mrf.mxu0
      %v2890 = vadd.f32 0.0, %v2889
      %v2891 = vpop.f32.mrf.mxu0
      %v2892 = vpop.f32.mrf.mxu0
      %v2893 = vpop.f32.mrf.mxu0
      %2894 = vmatprep.mubr.bf16.mxu0 0
      %2895 = vmatmul.mubr.bf16.gmra.mxu0 %v2749
      %v2896 = vpop.f32.mrf.mxu0
      %v2897 = vadd.f32 0.0, %v2896
      %v2898 = vpop.f32.mrf.mxu0
      %v2899 = vpop.f32.mrf.mxu0
      %v2900 = vadd.f32 0.0, %v2899
      %v2901 = vpop.f32.mrf.mxu0
      %2902 = vmatprep.mubr.bf16.mxu0 0
      %2903 = vmatmul.mubr.bf16.gmra.mxu0 %v2752
      %v2904 = vpop.f32.mrf.mxu0
      %v2905 = vpop.f32.mrf.mxu0
      %v2906 = vpop.f32.mrf.mxu0
      %v2907 = vadd.f32 0.0, %v2906
      %v2908 = vpop.f32.mrf.mxu0
      %2909 = vmatprep.mubr.bf16.mxu0 0
      %2910 = vmatmul.mubr.bf16.gmra.mxu0 %v2755
      %v2911 = vpop.f32.mrf.mxu0
      %v2912 = vadd.f32 0.0, %v2911
      %v2913 = vpop.f32.mrf.mxu0
      %v2914 = vpop.f32.mrf.mxu0
      %v2915 = vpop.f32.mrf.mxu0
      %2916 = vmatprep.mubr.bf16.mxu0 0
      %2917 = vmatmul.mubr.bf16.gmra.mxu0 %v2758
      %v2918 = vpop.f32.mrf.mxu0
      %v2919 = vadd.f32 0.0, %v2918
      %v2920 = vpop.f32.mrf.mxu0
      %v2921 = vpop.f32.mrf.mxu0
      %v2922 = vadd.f32 0.0, %v2921
      %v2923 = vpop.f32.mrf.mxu0
      %2924 = vmatprep.mubr.bf16.mxu0 0
      %2925 = vmatmul.mubr.bf16.gmra.mxu0 %v2761
      %v2926 = vpop.f32.mrf.mxu0
      %v2927 = vpop.f32.mrf.mxu0
      %v2928 = vpop.f32.mrf.mxu0
      %v2929 = vadd.f32 0.0, %v2928
      %v2930 = vpop.f32.mrf.mxu0
      %2931 = vmatprep.mubr.bf16.mxu0 0
      %2932 = vmatmul.mubr.bf16.gmra.mxu0 %v2764
      %v2933 = vpop.f32.mrf.mxu0
      %v2934 = vadd.f32 0.0, %v2933
      %v2935 = vpop.f32.mrf.mxu0
      %v2936 = vpop.f32.mrf.mxu0
      %v2937 = vpop.f32.mrf.mxu0
      %2938 = vmatprep.mubr.bf16.mxu0 0
      %2939 = vmatmul.mubr.bf16.gmra.mxu0 %v2767
      %v2940 = vpop.f32.mrf.mxu0
      %v2941 = vadd.f32 0.0, %v2940
      %v2942 = vpop.f32.mrf.mxu0
      %v2943 = vpop.f32.mrf.mxu0
      %v2944 = vadd.f32 0.0, %v2943
      %v2945 = vpop.f32.mrf.mxu0
      %2946 = vmatprep.mubr.bf16.mxu0 0
      %2947 = vmatmul.mubr.bf16.gmra.mxu0 %v2770
      %v2948 = vpop.f32.mrf.mxu0
      %v2949 = vpop.f32.mrf.mxu0
      %v2950 = vpop.f32.mrf.mxu0
      %v2951 = vadd.f32 0.0, %v2950
      %v2952 = vpop.f32.mrf.mxu0
      %2953 = vmatprep.mubr.bf16.mxu0 0
      %2954 = vmatmul.mubr.bf16.gmra.mxu0 %v2773
      %v2955 = vpop.f32.mrf.mxu0
      %v2956 = vadd.f32 0.0, %v2955
      %v2957 = vpop.f32.mrf.mxu0
      %v2958 = vpop.f32.mrf.mxu0
      %v2959 = vpop.f32.mrf.mxu0
      %2960 = vmatprep.mubr.bf16.mxu0 0
      %2961 = vmatmul.mubr.bf16.gmra.mxu0 %v2776
      %v2962 = vpop.f32.mrf.mxu0
      %v2963 = vadd.f32 0.0, %v2962
      %v2964 = vpop.f32.mrf.mxu0
      %v2965 = vpop.f32.mrf.mxu0
      %v2966 = vadd.f32 0.0, %v2965
      %v2967 = vpop.f32.mrf.mxu0
      %2968 = vmatprep.mubr.bf16.mxu0 0
      %2969 = vmatmul.mubr.bf16.gmra.mxu0 %v2779
      %v2970 = vpop.f32.mrf.mxu0
      %v2971 = vpop.f32.mrf.mxu0
      %v2972 = vpop.f32.mrf.mxu0
      %v2973 = vadd.f32 0.0, %v2972
      %v2974 = vpop.f32.mrf.mxu0
      %2975 = vmatprep.mubr.bf16.mxu0 0
      %2976 = vmatmul.mubr.bf16.gmra.mxu0 %v2782
      %v2977 = vpop.f32.mrf.mxu0
      %v2978 = vadd.f32 0.0, %v2977
      %v2979 = vpop.f32.mrf.mxu0
      %v2980 = vpop.f32.mrf.mxu0
      %v2981 = vpop.f32.mrf.mxu0
      %2982 = vmatprep.mubr.bf16.mxu0 0
      %2983 = vmatmul.mubr.bf16.gmra.mxu0 %v2785
      %v2984 = vpop.f32.mrf.mxu0
      %v2985 = vadd.f32 0.0, %v2984
      %v2986 = vpop.f32.mrf.mxu0
      %v2987 = vpop.f32.mrf.mxu0
      %v2988 = vadd.f32 0.0, %v2987
      %v2989 = vpop.f32.mrf.mxu0
      %2990 = vmatprep.mubr.bf16.mxu0 0
      %2991 = vmatmul.mubr.bf16.gmra.mxu0 %v2788
      %v2992 = vpop.f32.mrf.mxu0
      %v2993 = vpop.f32.mrf.mxu0
      %v2994 = vpop.f32.mrf.mxu0
      %v2995 = vadd.f32 0.0, %v2994
      %v2996 = vpop.f32.mrf.mxu0
      %2997 = vmatprep.mubr.bf16.mxu0 0
      %2998 = vmatmul.mubr.bf16.gmra.mxu0 %v2791
      %v2999 = vpop.f32.mrf.mxu0
      %v3000 = vadd.f32 0.0, %v2999
      %v3001 = vpop.f32.mrf.mxu0
      %v3002 = vpop.f32.mrf.mxu0
      %v3003 = vpop.f32.mrf.mxu0
      %3004 = vdwg.mxu0
      %v3005 = vadd.f32 %v2514, %v2831
      %v3006 = vadd.f32 %v2515, %v2834
      %v3007 = vadd.f32 %v2516, %v2841
      %v3008 = vadd.f32 %v2517, %v2846
      %v3009 = vadd.f32 %v2518, %v2853
      %v3010 = vadd.f32 %v2519, %v2856
      %v3011 = vadd.f32 %v2520, %v2863
      %v3012 = vadd.f32 %v2521, %v2868
      %v3013 = vadd.f32 %v2522, %v2875
      %v3014 = vadd.f32 %v2523, %v2878
      %v3015 = vadd.f32 %v2524, %v2885
      %v3016 = vadd.f32 %v2525, %v2890
      %v3017 = vadd.f32 %v2526, %v2897
      %v3018 = vadd.f32 %v2527, %v2900
      %v3019 = vadd.f32 %v2528, %v2907
      %v3020 = vadd.f32 %v2529, %v2912
      %v3021 = vadd.f32 %v2530, %v2919
      %v3022 = vadd.f32 %v2531, %v2922
      %v3023 = vadd.f32 %v2532, %v2929
      %v3024 = vadd.f32 %v2533, %v2934
      %v3025 = vadd.f32 %v2534, %v2941
      %v3026 = vadd.f32 %v2535, %v2944
      %v3027 = vadd.f32 %v2536, %v2951
      %v3028 = vadd.f32 %v2537, %v2956
      %v3029 = vadd.f32 %v2538, %v2963
      %v3030 = vadd.f32 %v2539, %v2966
      %v3031 = vadd.f32 %v2540, %v2973
      %v3032 = vadd.f32 %v2541, %v2978
      %v3033 = vadd.f32 %v2542, %v2985
      %v3034 = vadd.f32 %v2543, %v2988
      %v3035 = vadd.f32 %v2544, %v2995
      %v3036 = vadd.f32 %v2545, %v3000
      %s3037 = scalar_lea.vmem %s3, 10
      %v3038 = vld [vmem:[%s3037] sm:$0x3]
      %v3064 = vrot.slane %v2204, 1
      %v3065 = vrot.slane %v2205, 1
      %v3066 = vsel %vm1838, %v3064, %v3065
      %v3067 = vrot.slane %v2206, 1
      %v3068 = vsel %vm1838, %v3065, %v3067
      %v3069 = vrot.slane %v2207, 1
      %v3070 = vsel %vm1838, %v3067, %v3069
      %v3071 = vrot.slane %v2208, 1
      %v3072 = vsel %vm1838, %v3069, %v3071
      %v3073 = vrot.slane %v2209, 1
      %v3074 = vsel %vm1838, %v3071, %v3073
      %v3075 = vrot.slane %v2210, 1
      %v3076 = vsel %vm1838, %v3073, %v3075
      %v3077 = vrot.slane %v2211, 1
      %v3078 = vsel %vm1838, %v3075, %v3077
      %v3079 = vrot.slane %v2212, 1
      %v3080 = vsel %vm1838, %v3077, %v3079
      %v3081 = vrot.slane %v2213, 1
      %v3082 = vsel %vm1838, %v3079, %v3081
      %v3083 = vrot.slane %v2214, 1
      %v3084 = vsel %vm1838, %v3081, %v3083
      %v3085 = vrot.slane %v2215, 1
      %v3086 = vsel %vm1838, %v3083, %v3085
      %v3087 = vrot.slane %v2216, 1
      %v3088 = vsel %vm1838, %v3085, %v3087
      %v3089 = vrot.slane %v2217, 1
      %v3090 = vsel %vm1838, %v3087, %v3089
      %v3091 = vrot.slane %v2218, 1
      %v3092 = vsel %vm1838, %v3089, %v3091
      %v3093 = vrot.slane %v2219, 1
      %v3094 = vsel %vm1838, %v3091, %v3093
      %v3095 = vrot.slane %v2220, 1
      %v3096 = vsel %vm1838, %v3093, %v3095
      %v3097 = vrot.slane %v2221, 1
      %v3098 = vsel %vm1838, %v3095, %v3097
      %v3099 = vrot.slane %v2222, 1
      %v3100 = vsel %vm1838, %v3097, %v3099
      %v3101 = vrot.slane %v2223, 1
      %v3102 = vsel %vm1838, %v3099, %v3101
      %v3103 = vrot.slane %v2224, 1
      %v3104 = vsel %vm1838, %v3101, %v3103
      %v3105 = vrot.slane %v2225, 1
      %v3106 = vsel %vm1838, %v3103, %v3105
      %v3107 = vrot.slane %v2226, 1
      %v3108 = vsel %vm1838, %v3105, %v3107
      %v3109 = vrot.slane %v2227, 1
      %v3110 = vsel %vm1838, %v3107, %v3109
      %v3111 = vrot.slane %v2546, 1
      %v3112 = vsel %vm1838, %v3109, %v3111
      %v3114 = vsel %vm895, %v3066, 0
      %v3117 = vsel %vm895, %v3068, 0
      %v3120 = vsel %vm895, %v3070, 0
      %v3123 = vsel %vm895, %v3072, 0
      %v3126 = vsel %vm895, %v3074, 0
      %v3129 = vsel %vm895, %v3076, 0
      %v3132 = vsel %vm895, %v3078, 0
      %v3135 = vsel %vm895, %v3080, 0
      %v3138 = vsel %vm895, %v3082, 0
      %v3141 = vsel %vm895, %v3084, 0
      %v3144 = vsel %vm895, %v3086, 0
      %v3147 = vsel %vm895, %v3088, 0
      %v3150 = vsel %vm895, %v3090, 0
      %v3153 = vsel %vm895, %v3092, 0
      %v3156 = vsel %vm895, %v3094, 0
      %v3159 = vsel %vm895, %v3096, 0
      %v3162 = vsel %vm895, %v3098, 0
      %v3165 = vsel %vm895, %v3100, 0
      %v3168 = vsel %vm895, %v3102, 0
      %v3171 = vsel %vm895, %v3104, 0
      %v3174 = vsel %vm895, %v3106, 0
      %v3177 = vsel %vm895, %v3108, 0
      %v3180 = vsel %vm895, %v3110, 0
      %v3183 = vsel %vm895, %v3112, 0
      %v3186 = vsel %vm1338, %v3038, 0
      %3188 = vmatprep.subr.bf16.mxu0 0
      %3189 = vmatpush1.bf16.msra.mxu0 0
      %3190 = vmatprep.subr.bf16.mxu0 0
      %3191 = vmatpush1.bf16.msra.mxu0 0
      %3192 = vmatprep.subr.bf16.mxu0 0
      %3193 = vmatpush1.bf16.msra.mxu0 0
      %3194 = vmatprep.subr.bf16.mxu0 0
      %3195 = vmatpush1.bf16.msra.mxu0 0
      %3196 = vmatprep.subr.bf16.mxu0 0
      %3197 = vmatpush1.bf16.msra.mxu0 0
      %3198 = vmatprep.subr.bf16.mxu0 0
      %3199 = vmatpush1.bf16.msra.mxu0 0
      %3200 = vmatprep.subr.bf16.mxu0 0
      %3201 = vmatpush1.bf16.msra.mxu0 0
      %3202 = vmatprep.subr.bf16.mxu0 0
      %3203 = vmatpush1.bf16.msra.mxu0 %v3186
      %3204 = vmatprep.subr.bf16.mxu0 0
      %3205 = vmatpush2.bf16.msra.mxu0 0
      %3206 = vmatprep.subr.bf16.mxu0 0
      %3207 = vmatpush2.bf16.msra.mxu0 0
      %3208 = vmatprep.subr.bf16.mxu0 0
      %3209 = vmatpush2.bf16.msra.mxu0 0
      %3210 = vmatprep.subr.bf16.mxu0 0
      %3211 = vmatpush2.bf16.msra.mxu0 0
      %3212 = vmatprep.subr.bf16.mxu0 0
      %3213 = vmatpush2.bf16.msra.mxu0 0
      %3214 = vmatprep.subr.bf16.mxu0 0
      %3215 = vmatpush2.bf16.msra.mxu0 0
      %3216 = vmatprep.subr.bf16.mxu0 0
      %3217 = vmatpush2.bf16.msra.mxu0 0
      %3218 = vmatprep.subr.bf16.mxu0 0
      %3219 = vmatpush2.bf16.msra.mxu0 0
      %3220 = vmatprep.mubr.bf16.mxu0 0
      %3221 = vmatmul.mubr.bf16.gmra.mxu0 %v3114
      %v3222 = vpop.f32.mrf.mxu0
      %v3223 = vadd.f32 0.0, %v3222
      %v3224 = vpop.f32.mrf.mxu0
      %v3225 = vpop.f32.mrf.mxu0
      %v3226 = vadd.f32 0.0, %v3225
      %v3227 = vpop.f32.mrf.mxu0
      %3228 = vmatprep.mubr.bf16.mxu0 0
      %3229 = vmatmul.mubr.bf16.gmra.mxu0 %v3117
      %v3230 = vpop.f32.mrf.mxu0
      %v3231 = vpop.f32.mrf.mxu0
      %v3232 = vpop.f32.mrf.mxu0
      %v3233 = vadd.f32 0.0, %v3232
      %v3234 = vpop.f32.mrf.mxu0
      %3235 = vmatprep.mubr.bf16.mxu0 0
      %3236 = vmatmul.mubr.bf16.gmra.mxu0 %v3120
      %v3237 = vpop.f32.mrf.mxu0
      %v3238 = vadd.f32 0.0, %v3237
      %v3239 = vpop.f32.mrf.mxu0
      %v3240 = vpop.f32.mrf.mxu0
      %v3241 = vpop.f32.mrf.mxu0
      %3242 = vmatprep.mubr.bf16.mxu0 0
      %3243 = vmatmul.mubr.bf16.gmra.mxu0 %v3123
      %v3244 = vpop.f32.mrf.mxu0
      %v3245 = vadd.f32 0.0, %v3244
      %v3246 = vpop.f32.mrf.mxu0
      %v3247 = vpop.f32.mrf.mxu0
      %v3248 = vadd.f32 0.0, %v3247
      %v3249 = vpop.f32.mrf.mxu0
      %3250 = vmatprep.mubr.bf16.mxu0 0
      %3251 = vmatmul.mubr.bf16.gmra.mxu0 %v3126
      %v3252 = vpop.f32.mrf.mxu0
      %v3253 = vpop.f32.mrf.mxu0
      %v3254 = vpop.f32.mrf.mxu0
      %v3255 = vadd.f32 0.0, %v3254
      %v3256 = vpop.f32.mrf.mxu0
      %3257 = vmatprep.mubr.bf16.mxu0 0
      %3258 = vmatmul.mubr.bf16.gmra.mxu0 %v3129
      %v3259 = vpop.f32.mrf.mxu0
      %v3260 = vadd.f32 0.0, %v3259
      %v3261 = vpop.f32.mrf.mxu0
      %v3262 = vpop.f32.mrf.mxu0
      %v3263 = vpop.f32.mrf.mxu0
      %3264 = vmatprep.mubr.bf16.mxu0 0
      %3265 = vmatmul.mubr.bf16.gmra.mxu0 %v3132
      %v3266 = vpop.f32.mrf.mxu0
      %v3267 = vadd.f32 0.0, %v3266
      %v3268 = vpop.f32.mrf.mxu0
      %v3269 = vpop.f32.mrf.mxu0
      %v3270 = vadd.f32 0.0, %v3269
      %v3271 = vpop.f32.mrf.mxu0
      %3272 = vmatprep.mubr.bf16.mxu0 0
      %3273 = vmatmul.mubr.bf16.gmra.mxu0 %v3135
      %v3274 = vpop.f32.mrf.mxu0
      %v3275 = vpop.f32.mrf.mxu0
      %v3276 = vpop.f32.mrf.mxu0
      %v3277 = vadd.f32 0.0, %v3276
      %v3278 = vpop.f32.mrf.mxu0
      %3279 = vmatprep.mubr.bf16.mxu0 0
      %3280 = vmatmul.mubr.bf16.gmra.mxu0 %v3138
      %v3281 = vpop.f32.mrf.mxu0
      %v3282 = vadd.f32 0.0, %v3281
      %v3283 = vpop.f32.mrf.mxu0
      %v3284 = vpop.f32.mrf.mxu0
      %v3285 = vpop.f32.mrf.mxu0
      %3286 = vmatprep.mubr.bf16.mxu0 0
      %3287 = vmatmul.mubr.bf16.gmra.mxu0 %v3141
      %v3288 = vpop.f32.mrf.mxu0
      %v3289 = vadd.f32 0.0, %v3288
      %v3290 = vpop.f32.mrf.mxu0
      %v3291 = vpop.f32.mrf.mxu0
      %v3292 = vadd.f32 0.0, %v3291
      %v3293 = vpop.f32.mrf.mxu0
      %3294 = vmatprep.mubr.bf16.mxu0 0
      %3295 = vmatmul.mubr.bf16.gmra.mxu0 %v3144
      %v3296 = vpop.f32.mrf.mxu0
      %v3297 = vpop.f32.mrf.mxu0
      %v3298 = vpop.f32.mrf.mxu0
      %v3299 = vadd.f32 0.0, %v3298
      %v3300 = vpop.f32.mrf.mxu0
      %3301 = vmatprep.mubr.bf16.mxu0 0
      %3302 = vmatmul.mubr.bf16.gmra.mxu0 %v3147
      %v3303 = vpop.f32.mrf.mxu0
      %v3304 = vadd.f32 0.0, %v3303
      %v3305 = vpop.f32.mrf.mxu0
      %v3306 = vpop.f32.mrf.mxu0
      %v3307 = vpop.f32.mrf.mxu0
      %3308 = vmatprep.mubr.bf16.mxu0 0
      %3309 = vmatmul.mubr.bf16.gmra.mxu0 %v3150
      %v3310 = vpop.f32.mrf.mxu0
      %v3311 = vadd.f32 0.0, %v3310
      %v3312 = vpop.f32.mrf.mxu0
      %v3313 = vpop.f32.mrf.mxu0
      %v3314 = vadd.f32 0.0, %v3313
      %v3315 = vpop.f32.mrf.mxu0
      %3316 = vmatprep.mubr.bf16.mxu0 0
      %3317 = vmatmul.mubr.bf16.gmra.mxu0 %v3153
      %v3318 = vpop.f32.mrf.mxu0
      %v3319 = vpop.f32.mrf.mxu0
      %v3320 = vpop.f32.mrf.mxu0
      %v3321 = vadd.f32 0.0, %v3320
      %v3322 = vpop.f32.mrf.mxu0
      %3323 = vmatprep.mubr.bf16.mxu0 0
      %3324 = vmatmul.mubr.bf16.gmra.mxu0 %v3156
      %v3325 = vpop.f32.mrf.mxu0
      %v3326 = vadd.f32 0.0, %v3325
      %v3327 = vpop.f32.mrf.mxu0
      %v3328 = vpop.f32.mrf.mxu0
      %v3329 = vpop.f32.mrf.mxu0
      %3330 = vmatprep.mubr.bf16.mxu0 0
      %3331 = vmatmul.mubr.bf16.gmra.mxu0 %v3159
      %v3332 = vpop.f32.mrf.mxu0
      %v3333 = vadd.f32 0.0, %v3332
      %v3334 = vpop.f32.mrf.mxu0
      %v3335 = vpop.f32.mrf.mxu0
      %v3336 = vadd.f32 0.0, %v3335
      %v3337 = vpop.f32.mrf.mxu0
      %3338 = vmatprep.mubr.bf16.mxu0 0
      %3339 = vmatmul.mubr.bf16.gmra.mxu0 %v3162
      %v3340 = vpop.f32.mrf.mxu0
      %v3341 = vpop.f32.mrf.mxu0
      %v3342 = vpop.f32.mrf.mxu0
      %v3343 = vadd.f32 0.0, %v3342
      %v3344 = vpop.f32.mrf.mxu0
      %3345 = vmatprep.mubr.bf16.mxu0 0
      %3346 = vmatmul.mubr.bf16.gmra.mxu0 %v3165
      %v3347 = vpop.f32.mrf.mxu0
      %v3348 = vadd.f32 0.0, %v3347
      %v3349 = vpop.f32.mrf.mxu0
      %v3350 = vpop.f32.mrf.mxu0
      %v3351 = vpop.f32.mrf.mxu0
      %3352 = vmatprep.mubr.bf16.mxu0 0
      %3353 = vmatmul.mubr.bf16.gmra.mxu0 %v3168
      %v3354 = vpop.f32.mrf.mxu0
      %v3355 = vadd.f32 0.0, %v3354
      %v3356 = vpop.f32.mrf.mxu0
      %v3357 = vpop.f32.mrf.mxu0
      %v3358 = vadd.f32 0.0, %v3357
      %v3359 = vpop.f32.mrf.mxu0
      %3360 = vmatprep.mubr.bf16.mxu0 0
      %3361 = vmatmul.mubr.bf16.gmra.mxu0 %v3171
      %v3362 = vpop.f32.mrf.mxu0
      %v3363 = vpop.f32.mrf.mxu0
      %v3364 = vpop.f32.mrf.mxu0
      %v3365 = vadd.f32 0.0, %v3364
      %v3366 = vpop.f32.mrf.mxu0
      %3367 = vmatprep.mubr.bf16.mxu0 0
      %3368 = vmatmul.mubr.bf16.gmra.mxu0 %v3174
      %v3369 = vpop.f32.mrf.mxu0
      %v3370 = vadd.f32 0.0, %v3369
      %v3371 = vpop.f32.mrf.mxu0
      %v3372 = vpop.f32.mrf.mxu0
      %v3373 = vpop.f32.mrf.mxu0
      %3374 = vmatprep.mubr.bf16.mxu0 0
      %3375 = vmatmul.mubr.bf16.gmra.mxu0 %v3177
      %v3376 = vpop.f32.mrf.mxu0
      %v3377 = vadd.f32 0.0, %v3376
      %v3378 = vpop.f32.mrf.mxu0
      %v3379 = vpop.f32.mrf.mxu0
      %v3380 = vadd.f32 0.0, %v3379
      %v3381 = vpop.f32.mrf.mxu0
      %3382 = vmatprep.mubr.bf16.mxu0 0
      %3383 = vmatmul.mubr.bf16.gmra.mxu0 %v3180
      %v3384 = vpop.f32.mrf.mxu0
      %v3385 = vpop.f32.mrf.mxu0
      %v3386 = vpop.f32.mrf.mxu0
      %v3387 = vadd.f32 0.0, %v3386
      %v3388 = vpop.f32.mrf.mxu0
      %3389 = vmatprep.mubr.bf16.mxu0 0
      %3390 = vmatmul.mubr.bf16.gmra.mxu0 %v3183
      %v3391 = vpop.f32.mrf.mxu0
      %v3392 = vadd.f32 0.0, %v3391
      %v3393 = vpop.f32.mrf.mxu0
      %v3394 = vpop.f32.mrf.mxu0
      %v3395 = vpop.f32.mrf.mxu0
      %3396 = vdwg.mxu0
      %v3397 = vadd.f32 %v3005, %v3223
      %v3398 = vadd.f32 %v3006, %v3226
      %v3399 = vadd.f32 %v3007, %v3233
      %v3400 = vadd.f32 %v3008, %v3238
      %v3401 = vadd.f32 %v3009, %v3245
      %v3402 = vadd.f32 %v3010, %v3248
      %v3403 = vadd.f32 %v3011, %v3255
      %v3404 = vadd.f32 %v3012, %v3260
      %v3405 = vadd.f32 %v3013, %v3267
      %v3406 = vadd.f32 %v3014, %v3270
      %v3407 = vadd.f32 %v3015, %v3277
      %v3408 = vadd.f32 %v3016, %v3282
      %v3409 = vadd.f32 %v3017, %v3289
      %v3410 = vadd.f32 %v3018, %v3292
      %v3411 = vadd.f32 %v3019, %v3299
      %v3412 = vadd.f32 %v3020, %v3304
      %v3413 = vadd.f32 %v3021, %v3311
      %v3414 = vadd.f32 %v3022, %v3314
      %v3415 = vadd.f32 %v3023, %v3321
      %v3416 = vadd.f32 %v3024, %v3326
      %v3417 = vadd.f32 %v3025, %v3333
      %v3418 = vadd.f32 %v3026, %v3336
      %v3419 = vadd.f32 %v3027, %v3343
      %v3420 = vadd.f32 %v3028, %v3348
      %v3421 = vadd.f32 %v3029, %v3355
      %v3422 = vadd.f32 %v3030, %v3358
      %v3423 = vadd.f32 %v3031, %v3365
      %v3424 = vadd.f32 %v3032, %v3370
      %v3425 = vadd.f32 %v3033, %v3377
      %v3426 = vadd.f32 %v3034, %v3380
      %v3427 = vadd.f32 %v3035, %v3387
      %v3428 = vadd.f32 %v3036, %v3392
      %v3429 = vpack.c.bf16 %v1035, %v1034
      %v3430 = vpack.c.bf16 %v1037, %v1036
      %v3431 = vpack.c.bf16 %v1039, %v1038
      %s3432 = scalar_lea.vmem %s3, 12
      %v3433 = vld [vmem:[%s3432] sm:$0x3]
      %v3435 = vsel %vm895, %v3429, 0
      %v3438 = vsel %vm895, %v3430, 0
      %v3441 = vsel %vm895, %v3431, 0
      %v3444 = vsel %vm1338, %v3433, 0
      %3446 = vmatprep.subr.bf16.mxu0 0
      %3447 = vmatpush1.bf16.msra.mxu0 0
      %3448 = vmatprep.subr.bf16.mxu0 0
      %3449 = vmatpush1.bf16.msra.mxu0 0
      %3450 = vmatprep.subr.bf16.mxu0 0
      %3451 = vmatpush1.bf16.msra.mxu0 0
      %3452 = vmatprep.subr.bf16.mxu0 0
      %3453 = vmatpush1.bf16.msra.mxu0 0
      %3454 = vmatprep.subr.bf16.mxu0 0
      %3455 = vmatpush1.bf16.msra.mxu0 0
      %3456 = vmatprep.subr.bf16.mxu0 0
      %3457 = vmatpush1.bf16.msra.mxu0 0
      %3458 = vmatprep.subr.bf16.mxu0 0
      %3459 = vmatpush1.bf16.msra.mxu0 0
      %3460 = vmatprep.subr.bf16.mxu0 0
      %3461 = vmatpush1.bf16.msra.mxu0 %v3444
      %3462 = vmatprep.subr.bf16.mxu0 0
      %3463 = vmatpush2.bf16.msra.mxu0 0
      %3464 = vmatprep.subr.bf16.mxu0 0
      %3465 = vmatpush2.bf16.msra.mxu0 0
      %3466 = vmatprep.subr.bf16.mxu0 0
      %3467 = vmatpush2.bf16.msra.mxu0 0
      %3468 = vmatprep.subr.bf16.mxu0 0
      %3469 = vmatpush2.bf16.msra.mxu0 0
      %3470 = vmatprep.subr.bf16.mxu0 0
      %3471 = vmatpush2.bf16.msra.mxu0 0
      %3472 = vmatprep.subr.bf16.mxu0 0
      %3473 = vmatpush2.bf16.msra.mxu0 0
      %3474 = vmatprep.subr.bf16.mxu0 0
      %3475 = vmatpush2.bf16.msra.mxu0 0
      %3476 = vmatprep.subr.bf16.mxu0 0
      %3477 = vmatpush2.bf16.msra.mxu0 0
      %3478 = vmatprep.mubr.bf16.mxu0 0
      %3479 = vmatmul.mubr.bf16.gmra.mxu0 %v1557
      %v3480 = vpop.f32.mrf.mxu0
      %v3481 = vadd.f32 0.0, %v3480
      %v3482 = vpop.f32.mrf.mxu0
      %v3483 = vpop.f32.mrf.mxu0
      %v3484 = vadd.f32 0.0, %v3483
      %v3485 = vpop.f32.mrf.mxu0
      %3486 = vmatprep.mubr.bf16.mxu0 0
      %3487 = vmatmul.mubr.bf16.gmra.mxu0 %v1559
      %v3488 = vpop.f32.mrf.mxu0
      %v3489 = vpop.f32.mrf.mxu0
      %v3490 = vpop.f32.mrf.mxu0
      %v3491 = vadd.f32 0.0, %v3490
      %v3492 = vpop.f32.mrf.mxu0
      %3493 = vmatprep.mubr.bf16.mxu0 0
      %3494 = vmatmul.mubr.bf16.gmra.mxu0 %v1561
      %v3495 = vpop.f32.mrf.mxu0
      %v3496 = vadd.f32 0.0, %v3495
      %v3497 = vpop.f32.mrf.mxu0
      %v3498 = vpop.f32.mrf.mxu0
      %v3499 = vpop.f32.mrf.mxu0
      %3500 = vmatprep.mubr.bf16.mxu0 0
      %3501 = vmatmul.mubr.bf16.gmra.mxu0 %v1563
      %v3502 = vpop.f32.mrf.mxu0
      %v3503 = vadd.f32 0.0, %v3502
      %v3504 = vpop.f32.mrf.mxu0
      %v3505 = vpop.f32.mrf.mxu0
      %v3506 = vadd.f32 0.0, %v3505
      %v3507 = vpop.f32.mrf.mxu0
      %3508 = vmatprep.mubr.bf16.mxu0 0
      %3509 = vmatmul.mubr.bf16.gmra.mxu0 %v1565
      %v3510 = vpop.f32.mrf.mxu0
      %v3511 = vpop.f32.mrf.mxu0
      %v3512 = vpop.f32.mrf.mxu0
      %v3513 = vadd.f32 0.0, %v3512
      %v3514 = vpop.f32.mrf.mxu0
      %3515 = vmatprep.mubr.bf16.mxu0 0
      %3516 = vmatmul.mubr.bf16.gmra.mxu0 %v1567
      %v3517 = vpop.f32.mrf.mxu0
      %v3518 = vadd.f32 0.0, %v3517
      %v3519 = vpop.f32.mrf.mxu0
      %v3520 = vpop.f32.mrf.mxu0
      %v3521 = vpop.f32.mrf.mxu0
      %3522 = vmatprep.mubr.bf16.mxu0 0
      %3523 = vmatmul.mubr.bf16.gmra.mxu0 %v1569
      %v3524 = vpop.f32.mrf.mxu0
      %v3525 = vadd.f32 0.0, %v3524
      %v3526 = vpop.f32.mrf.mxu0
      %v3527 = vpop.f32.mrf.mxu0
      %v3528 = vadd.f32 0.0, %v3527
      %v3529 = vpop.f32.mrf.mxu0
      %3530 = vmatprep.mubr.bf16.mxu0 0
      %3531 = vmatmul.mubr.bf16.gmra.mxu0 %v1571
      %v3532 = vpop.f32.mrf.mxu0
      %v3533 = vpop.f32.mrf.mxu0
      %v3534 = vpop.f32.mrf.mxu0
      %v3535 = vadd.f32 0.0, %v3534
      %v3536 = vpop.f32.mrf.mxu0
      %3537 = vmatprep.mubr.bf16.mxu0 0
      %3538 = vmatmul.mubr.bf16.gmra.mxu0 %v1573
      %v3539 = vpop.f32.mrf.mxu0
      %v3540 = vadd.f32 0.0, %v3539
      %v3541 = vpop.f32.mrf.mxu0
      %v3542 = vpop.f32.mrf.mxu0
      %v3543 = vpop.f32.mrf.mxu0
      %3544 = vmatprep.mubr.bf16.mxu0 0
      %3545 = vmatmul.mubr.bf16.gmra.mxu0 %v1575
      %v3546 = vpop.f32.mrf.mxu0
      %v3547 = vadd.f32 0.0, %v3546
      %v3548 = vpop.f32.mrf.mxu0
      %v3549 = vpop.f32.mrf.mxu0
      %v3550 = vadd.f32 0.0, %v3549
      %v3551 = vpop.f32.mrf.mxu0
      %3552 = vmatprep.mubr.bf16.mxu0 0
      %3553 = vmatmul.mubr.bf16.gmra.mxu0 %v1577
      %v3554 = vpop.f32.mrf.mxu0
      %v3555 = vpop.f32.mrf.mxu0
      %v3556 = vpop.f32.mrf.mxu0
      %v3557 = vadd.f32 0.0, %v3556
      %v3558 = vpop.f32.mrf.mxu0
      %3559 = vmatprep.mubr.bf16.mxu0 0
      %3560 = vmatmul.mubr.bf16.gmra.mxu0 %v1579
      %v3561 = vpop.f32.mrf.mxu0
      %v3562 = vadd.f32 0.0, %v3561
      %v3563 = vpop.f32.mrf.mxu0
      %v3564 = vpop.f32.mrf.mxu0
      %v3565 = vpop.f32.mrf.mxu0
      %3566 = vmatprep.mubr.bf16.mxu0 0
      %3567 = vmatmul.mubr.bf16.gmra.mxu0 %v1581
      %v3568 = vpop.f32.mrf.mxu0
      %v3569 = vadd.f32 0.0, %v3568
      %v3570 = vpop.f32.mrf.mxu0
      %v3571 = vpop.f32.mrf.mxu0
      %v3572 = vadd.f32 0.0, %v3571
      %v3573 = vpop.f32.mrf.mxu0
      %3574 = vmatprep.mubr.bf16.mxu0 0
      %3575 = vmatmul.mubr.bf16.gmra.mxu0 %v1583
      %v3576 = vpop.f32.mrf.mxu0
      %v3577 = vpop.f32.mrf.mxu0
      %v3578 = vpop.f32.mrf.mxu0
      %v3579 = vadd.f32 0.0, %v3578
      %v3580 = vpop.f32.mrf.mxu0
      %3581 = vmatprep.mubr.bf16.mxu0 0
      %3582 = vmatmul.mubr.bf16.gmra.mxu0 %v1585
      %v3583 = vpop.f32.mrf.mxu0
      %v3584 = vadd.f32 0.0, %v3583
      %v3585 = vpop.f32.mrf.mxu0
      %v3586 = vpop.f32.mrf.mxu0
      %v3587 = vpop.f32.mrf.mxu0
      %3588 = vmatprep.mubr.bf16.mxu0 0
      %3589 = vmatmul.mubr.bf16.gmra.mxu0 %v1587
      %v3590 = vpop.f32.mrf.mxu0
      %v3591 = vadd.f32 0.0, %v3590
      %v3592 = vpop.f32.mrf.mxu0
      %v3593 = vpop.f32.mrf.mxu0
      %v3594 = vadd.f32 0.0, %v3593
      %v3595 = vpop.f32.mrf.mxu0
      %3596 = vmatprep.mubr.bf16.mxu0 0
      %3597 = vmatmul.mubr.bf16.gmra.mxu0 %v1589
      %v3598 = vpop.f32.mrf.mxu0
      %v3599 = vpop.f32.mrf.mxu0
      %v3600 = vpop.f32.mrf.mxu0
      %v3601 = vadd.f32 0.0, %v3600
      %v3602 = vpop.f32.mrf.mxu0
      %3603 = vmatprep.mubr.bf16.mxu0 0
      %3604 = vmatmul.mubr.bf16.gmra.mxu0 %v1591
      %v3605 = vpop.f32.mrf.mxu0
      %v3606 = vadd.f32 0.0, %v3605
      %v3607 = vpop.f32.mrf.mxu0
      %v3608 = vpop.f32.mrf.mxu0
      %v3609 = vpop.f32.mrf.mxu0
      %3610 = vmatprep.mubr.bf16.mxu0 0
      %3611 = vmatmul.mubr.bf16.gmra.mxu0 %v1593
      %v3612 = vpop.f32.mrf.mxu0
      %v3613 = vadd.f32 0.0, %v3612
      %v3614 = vpop.f32.mrf.mxu0
      %v3615 = vpop.f32.mrf.mxu0
      %v3616 = vadd.f32 0.0, %v3615
      %v3617 = vpop.f32.mrf.mxu0
      %3618 = vmatprep.mubr.bf16.mxu0 0
      %3619 = vmatmul.mubr.bf16.gmra.mxu0 %v1595
      %v3620 = vpop.f32.mrf.mxu0
      %v3621 = vpop.f32.mrf.mxu0
      %v3622 = vpop.f32.mrf.mxu0
      %v3623 = vadd.f32 0.0, %v3622
      %v3624 = vpop.f32.mrf.mxu0
      %3625 = vmatprep.mubr.bf16.mxu0 0
      %3626 = vmatmul.mubr.bf16.gmra.mxu0 %v1597
      %v3627 = vpop.f32.mrf.mxu0
      %v3628 = vadd.f32 0.0, %v3627
      %v3629 = vpop.f32.mrf.mxu0
      %v3630 = vpop.f32.mrf.mxu0
      %v3631 = vpop.f32.mrf.mxu0
      %3632 = vmatprep.mubr.bf16.mxu0 0
      %3633 = vmatmul.mubr.bf16.gmra.mxu0 %v3435
      %v3634 = vpop.f32.mrf.mxu0
      %v3635 = vadd.f32 0.0, %v3634
      %v3636 = vpop.f32.mrf.mxu0
      %v3637 = vpop.f32.mrf.mxu0
      %v3638 = vadd.f32 0.0, %v3637
      %v3639 = vpop.f32.mrf.mxu0
      %3640 = vmatprep.mubr.bf16.mxu0 0
      %3641 = vmatmul.mubr.bf16.gmra.mxu0 %v3438
      %v3642 = vpop.f32.mrf.mxu0
      %v3643 = vpop.f32.mrf.mxu0
      %v3644 = vpop.f32.mrf.mxu0
      %v3645 = vadd.f32 0.0, %v3644
      %v3646 = vpop.f32.mrf.mxu0
      %3647 = vmatprep.mubr.bf16.mxu0 0
      %3648 = vmatmul.mubr.bf16.gmra.mxu0 %v3441
      %v3649 = vpop.f32.mrf.mxu0
      %v3650 = vadd.f32 0.0, %v3649
      %v3651 = vpop.f32.mrf.mxu0
      %v3652 = vpop.f32.mrf.mxu0
      %v3653 = vpop.f32.mrf.mxu0
      %3654 = vdwg.mxu0
      %v3655 = vadd.f32 %v3397, %v3481
      %v3656 = vadd.f32 %v3398, %v3484
      %v3657 = vadd.f32 %v3399, %v3491
      %v3658 = vadd.f32 %v3400, %v3496
      %v3659 = vadd.f32 %v3401, %v3503
      %v3660 = vadd.f32 %v3402, %v3506
      %v3661 = vadd.f32 %v3403, %v3513
      %v3662 = vadd.f32 %v3404, %v3518
      %v3663 = vadd.f32 %v3405, %v3525
      %v3664 = vadd.f32 %v3406, %v3528
      %v3665 = vadd.f32 %v3407, %v3535
      %v3666 = vadd.f32 %v3408, %v3540
      %v3667 = vadd.f32 %v3409, %v3547
      %v3668 = vadd.f32 %v3410, %v3550
      %v3669 = vadd.f32 %v3411, %v3557
      %v3670 = vadd.f32 %v3412, %v3562
      %v3671 = vadd.f32 %v3413, %v3569
      %v3672 = vadd.f32 %v3414, %v3572
      %v3673 = vadd.f32 %v3415, %v3579
      %v3674 = vadd.f32 %v3416, %v3584
      %v3675 = vadd.f32 %v3417, %v3591
      %v3676 = vadd.f32 %v3418, %v3594
      %v3677 = vadd.f32 %v3419, %v3601
      %v3678 = vadd.f32 %v3420, %v3606
      %v3679 = vadd.f32 %v3421, %v3613
      %v3680 = vadd.f32 %v3422, %v3616
      %v3681 = vadd.f32 %v3423, %v3623
      %v3682 = vadd.f32 %v3424, %v3628
      %v3683 = vadd.f32 %v3425, %v3635
      %v3684 = vadd.f32 %v3426, %v3638
      %v3685 = vadd.f32 %v3427, %v3645
      %v3686 = vadd.f32 %v3428, %v3650
      %v3687 = vpack.c.bf16 %v1040, %v1040
      %s3688 = scalar_lea.vmem %s3, 14
      %v3689 = vld [vmem:[%s3688] sm:$0x3]
      %v3690 = vshll.u32 %v3429, 16
      %v3692 = vrot.slane %v3690, 1
      %v3693 = vsel %vm1069, %v1260, %v3692
      %v3694 = vshrl.u32 %v3429, 16
      %v3696 = vor.u32 %v3694, %v3692
      %v3697 = vshll.u32 %v3430, 16
      %v3699 = vrot.slane %v3697, 1
      %v3700 = vsel %vm1069, %v3696, %v3699
      %v3701 = vshrl.u32 %v3430, 16
      %v3703 = vor.u32 %v3701, %v3699
      %v3704 = vshll.u32 %v3431, 16
      %v3706 = vrot.slane %v3704, 1
      %v3707 = vsel %vm1069, %v3703, %v3706
      %v3708 = vshrl.u32 %v3431, 16
      %v3710 = vor.u32 %v3708, %v3706
      %v3712 = vshll.u32 %v3687, 16
      %v3714 = vrot.slane %v3712, 1
      %v3715 = vsel %vm1069, %v3710, %v3714
      %v3717 = vsel %vm895, %v3693, 0
      %v3720 = vsel %vm895, %v3700, 0
      %v3723 = vsel %vm895, %v3707, 0
      %v3726 = vsel %vm895, %v3715, 0
      %v3729 = vsel %vm1338, %v3689, 0
      %3731 = vmatprep.subr.bf16.mxu0 0
      %3732 = vmatpush1.bf16.msra.mxu0 0
      %3733 = vmatprep.subr.bf16.mxu0 0
      %3734 = vmatpush1.bf16.msra.mxu0 0
      %3735 = vmatprep.subr.bf16.mxu0 0
      %3736 = vmatpush1.bf16.msra.mxu0 0
      %3737 = vmatprep.subr.bf16.mxu0 0
      %3738 = vmatpush1.bf16.msra.mxu0 0
      %3739 = vmatprep.subr.bf16.mxu0 0
      %3740 = vmatpush1.bf16.msra.mxu0 0
      %3741 = vmatprep.subr.bf16.mxu0 0
      %3742 = vmatpush1.bf16.msra.mxu0 0
      %3743 = vmatprep.subr.bf16.mxu0 0
      %3744 = vmatpush1.bf16.msra.mxu0 0
      %3745 = vmatprep.subr.bf16.mxu0 0
      %3746 = vmatpush1.bf16.msra.mxu0 %v3729
      %3747 = vmatprep.subr.bf16.mxu0 0
      %3748 = vmatpush2.bf16.msra.mxu0 0
      %3749 = vmatprep.subr.bf16.mxu0 0
      %3750 = vmatpush2.bf16.msra.mxu0 0
      %3751 = vmatprep.subr.bf16.mxu0 0
      %3752 = vmatpush2.bf16.msra.mxu0 0
      %3753 = vmatprep.subr.bf16.mxu0 0
      %3754 = vmatpush2.bf16.msra.mxu0 0
      %3755 = vmatprep.subr.bf16.mxu0 0
      %3756 = vmatpush2.bf16.msra.mxu0 0
      %3757 = vmatprep.subr.bf16.mxu0 0
      %3758 = vmatpush2.bf16.msra.mxu0 0
      %3759 = vmatprep.subr.bf16.mxu0 0
      %3760 = vmatpush2.bf16.msra.mxu0 0
      %3761 = vmatprep.subr.bf16.mxu0 0
      %3762 = vmatpush2.bf16.msra.mxu0 0
      %3763 = vmatprep.mubr.bf16.mxu0 0
      %3764 = vmatmul.mubr.bf16.gmra.mxu0 %v1276
      %v3765 = vpop.f32.mrf.mxu0
      %v3766 = vadd.f32 0.0, %v3765
      %v3767 = vpop.f32.mrf.mxu0
      %v3768 = vpop.f32.mrf.mxu0
      %v3769 = vadd.f32 0.0, %v3768
      %v3770 = vpop.f32.mrf.mxu0
      %3771 = vmatprep.mubr.bf16.mxu0 0
      %3772 = vmatmul.mubr.bf16.gmra.mxu0 %v1279
      %v3773 = vpop.f32.mrf.mxu0
      %v3774 = vpop.f32.mrf.mxu0
      %v3775 = vpop.f32.mrf.mxu0
      %v3776 = vadd.f32 0.0, %v3775
      %v3777 = vpop.f32.mrf.mxu0
      %3778 = vmatprep.mubr.bf16.mxu0 0
      %3779 = vmatmul.mubr.bf16.gmra.mxu0 %v1282
      %v3780 = vpop.f32.mrf.mxu0
      %v3781 = vadd.f32 0.0, %v3780
      %v3782 = vpop.f32.mrf.mxu0
      %v3783 = vpop.f32.mrf.mxu0
      %v3784 = vpop.f32.mrf.mxu0
      %3785 = vmatprep.mubr.bf16.mxu0 0
      %3786 = vmatmul.mubr.bf16.gmra.mxu0 %v1285
      %v3787 = vpop.f32.mrf.mxu0
      %v3788 = vadd.f32 0.0, %v3787
      %v3789 = vpop.f32.mrf.mxu0
      %v3790 = vpop.f32.mrf.mxu0
      %v3791 = vadd.f32 0.0, %v3790
      %v3792 = vpop.f32.mrf.mxu0
      %3793 = vmatprep.mubr.bf16.mxu0 0
      %3794 = vmatmul.mubr.bf16.gmra.mxu0 %v1288
      %v3795 = vpop.f32.mrf.mxu0
      %v3796 = vpop.f32.mrf.mxu0
      %v3797 = vpop.f32.mrf.mxu0
      %v3798 = vadd.f32 0.0, %v3797
      %v3799 = vpop.f32.mrf.mxu0
      %3800 = vmatprep.mubr.bf16.mxu0 0
      %3801 = vmatmul.mubr.bf16.gmra.mxu0 %v1291
      %v3802 = vpop.f32.mrf.mxu0
      %v3803 = vadd.f32 0.0, %v3802
      %v3804 = vpop.f32.mrf.mxu0
      %v3805 = vpop.f32.mrf.mxu0
      %v3806 = vpop.f32.mrf.mxu0
      %3807 = vmatprep.mubr.bf16.mxu0 0
      %3808 = vmatmul.mubr.bf16.gmra.mxu0 %v1294
      %v3809 = vpop.f32.mrf.mxu0
      %v3810 = vadd.f32 0.0, %v3809
      %v3811 = vpop.f32.mrf.mxu0
      %v3812 = vpop.f32.mrf.mxu0
      %v3813 = vadd.f32 0.0, %v3812
      %v3814 = vpop.f32.mrf.mxu0
      %3815 = vmatprep.mubr.bf16.mxu0 0
      %3816 = vmatmul.mubr.bf16.gmra.mxu0 %v1297
      %v3817 = vpop.f32.mrf.mxu0
      %v3818 = vpop.f32.mrf.mxu0
      %v3819 = vpop.f32.mrf.mxu0
      %v3820 = vadd.f32 0.0, %v3819
      %v3821 = vpop.f32.mrf.mxu0
      %3822 = vmatprep.mubr.bf16.mxu0 0
      %3823 = vmatmul.mubr.bf16.gmra.mxu0 %v1300
      %v3824 = vpop.f32.mrf.mxu0
      %v3825 = vadd.f32 0.0, %v3824
      %v3826 = vpop.f32.mrf.mxu0
      %v3827 = vpop.f32.mrf.mxu0
      %v3828 = vpop.f32.mrf.mxu0
      %3829 = vmatprep.mubr.bf16.mxu0 0
      %3830 = vmatmul.mubr.bf16.gmra.mxu0 %v1303
      %v3831 = vpop.f32.mrf.mxu0
      %v3832 = vadd.f32 0.0, %v3831
      %v3833 = vpop.f32.mrf.mxu0
      %v3834 = vpop.f32.mrf.mxu0
      %v3835 = vadd.f32 0.0, %v3834
      %v3836 = vpop.f32.mrf.mxu0
      %3837 = vmatprep.mubr.bf16.mxu0 0
      %3838 = vmatmul.mubr.bf16.gmra.mxu0 %v1306
      %v3839 = vpop.f32.mrf.mxu0
      %v3840 = vpop.f32.mrf.mxu0
      %v3841 = vpop.f32.mrf.mxu0
      %v3842 = vadd.f32 0.0, %v3841
      %v3843 = vpop.f32.mrf.mxu0
      %3844 = vmatprep.mubr.bf16.mxu0 0
      %3845 = vmatmul.mubr.bf16.gmra.mxu0 %v1309
      %v3846 = vpop.f32.mrf.mxu0
      %v3847 = vadd.f32 0.0, %v3846
      %v3848 = vpop.f32.mrf.mxu0
      %v3849 = vpop.f32.mrf.mxu0
      %v3850 = vpop.f32.mrf.mxu0
      %3851 = vmatprep.mubr.bf16.mxu0 0
      %3852 = vmatmul.mubr.bf16.gmra.mxu0 %v1312
      %v3853 = vpop.f32.mrf.mxu0
      %v3854 = vadd.f32 0.0, %v3853
      %v3855 = vpop.f32.mrf.mxu0
      %v3856 = vpop.f32.mrf.mxu0
      %v3857 = vadd.f32 0.0, %v3856
      %v3858 = vpop.f32.mrf.mxu0
      %3859 = vmatprep.mubr.bf16.mxu0 0
      %3860 = vmatmul.mubr.bf16.gmra.mxu0 %v1315
      %v3861 = vpop.f32.mrf.mxu0
      %v3862 = vpop.f32.mrf.mxu0
      %v3863 = vpop.f32.mrf.mxu0
      %v3864 = vadd.f32 0.0, %v3863
      %v3865 = vpop.f32.mrf.mxu0
      %3866 = vmatprep.mubr.bf16.mxu0 0
      %3867 = vmatmul.mubr.bf16.gmra.mxu0 %v1318
      %v3868 = vpop.f32.mrf.mxu0
      %v3869 = vadd.f32 0.0, %v3868
      %v3870 = vpop.f32.mrf.mxu0
      %v3871 = vpop.f32.mrf.mxu0
      %v3872 = vpop.f32.mrf.mxu0
      %3873 = vmatprep.mubr.bf16.mxu0 0
      %3874 = vmatmul.mubr.bf16.gmra.mxu0 %v1321
      %v3875 = vpop.f32.mrf.mxu0
      %v3876 = vadd.f32 0.0, %v3875
      %v3877 = vpop.f32.mrf.mxu0
      %v3878 = vpop.f32.mrf.mxu0
      %v3879 = vadd.f32 0.0, %v3878
      %v3880 = vpop.f32.mrf.mxu0
      %3881 = vmatprep.mubr.bf16.mxu0 0
      %3882 = vmatmul.mubr.bf16.gmra.mxu0 %v1324
      %v3883 = vpop.f32.mrf.mxu0
      %v3884 = vpop.f32.mrf.mxu0
      %v3885 = vpop.f32.mrf.mxu0
      %v3886 = vadd.f32 0.0, %v3885
      %v3887 = vpop.f32.mrf.mxu0
      %3888 = vmatprep.mubr.bf16.mxu0 0
      %3889 = vmatmul.mubr.bf16.gmra.mxu0 %v1327
      %v3890 = vpop.f32.mrf.mxu0
      %v3891 = vadd.f32 0.0, %v3890
      %v3892 = vpop.f32.mrf.mxu0
      %v3893 = vpop.f32.mrf.mxu0
      %v3894 = vpop.f32.mrf.mxu0
      %3895 = vmatprep.mubr.bf16.mxu0 0
      %3896 = vmatmul.mubr.bf16.gmra.mxu0 %v1330
      %v3897 = vpop.f32.mrf.mxu0
      %v3898 = vadd.f32 0.0, %v3897
      %v3899 = vpop.f32.mrf.mxu0
      %v3900 = vpop.f32.mrf.mxu0
      %v3901 = vadd.f32 0.0, %v3900
      %v3902 = vpop.f32.mrf.mxu0
      %3903 = vmatprep.mubr.bf16.mxu0 0
      %3904 = vmatmul.mubr.bf16.gmra.mxu0 %v1333
      %v3905 = vpop.f32.mrf.mxu0
      %v3906 = vpop.f32.mrf.mxu0
      %v3907 = vpop.f32.mrf.mxu0
      %v3908 = vadd.f32 0.0, %v3907
      %v3909 = vpop.f32.mrf.mxu0
      %3910 = vmatprep.mubr.bf16.mxu0 0
      %3911 = vmatmul.mubr.bf16.gmra.mxu0 %v3717
      %v3912 = vpop.f32.mrf.mxu0
      %v3913 = vadd.f32 0.0, %v3912
      %v3914 = vpop.f32.mrf.mxu0
      %v3915 = vpop.f32.mrf.mxu0
      %v3916 = vpop.f32.mrf.mxu0
      %3917 = vmatprep.mubr.bf16.mxu0 0
      %3918 = vmatmul.mubr.bf16.gmra.mxu0 %v3720
      %v3919 = vpop.f32.mrf.mxu0
      %v3920 = vadd.f32 0.0, %v3919
      %v3921 = vpop.f32.mrf.mxu0
      %v3922 = vpop.f32.mrf.mxu0
      %v3923 = vadd.f32 0.0, %v3922
      %v3924 = vpop.f32.mrf.mxu0
      %3925 = vmatprep.mubr.bf16.mxu0 0
      %3926 = vmatmul.mubr.bf16.gmra.mxu0 %v3723
      %v3927 = vpop.f32.mrf.mxu0
      %v3928 = vpop.f32.mrf.mxu0
      %v3929 = vpop.f32.mrf.mxu0
      %v3930 = vadd.f32 0.0, %v3929
      %v3931 = vpop.f32.mrf.mxu0
      %3932 = vmatprep.mubr.bf16.mxu0 0
      %3933 = vmatmul.mubr.bf16.gmra.mxu0 %v3726
      %v3934 = vpop.f32.mrf.mxu0
      %v3935 = vadd.f32 0.0, %v3934
      %v3936 = vpop.f32.mrf.mxu0
      %v3937 = vpop.f32.mrf.mxu0
      %v3938 = vpop.f32.mrf.mxu0
      %3939 = vdwg.mxu0
      %v3940 = vadd.f32 %v3655, %v3766
      %v3941 = vadd.f32 %v3656, %v3769
      %v3942 = vadd.f32 %v3657, %v3776
      %v3943 = vadd.f32 %v3658, %v3781
      %v3944 = vadd.f32 %v3659, %v3788
      %v3945 = vadd.f32 %v3660, %v3791
      %v3946 = vadd.f32 %v3661, %v3798
      %v3947 = vadd.f32 %v3662, %v3803
      %v3948 = vadd.f32 %v3663, %v3810
      %v3949 = vadd.f32 %v3664, %v3813
      %v3950 = vadd.f32 %v3665, %v3820
      %v3951 = vadd.f32 %v3666, %v3825
      %v3952 = vadd.f32 %v3667, %v3832
      %v3953 = vadd.f32 %v3668, %v3835
      %v3954 = vadd.f32 %v3669, %v3842
      %v3955 = vadd.f32 %v3670, %v3847
      %v3956 = vadd.f32 %v3671, %v3854
      %v3957 = vadd.f32 %v3672, %v3857
      %v3958 = vadd.f32 %v3673, %v3864
      %v3959 = vadd.f32 %v3674, %v3869
      %v3960 = vadd.f32 %v3675, %v3876
      %v3961 = vadd.f32 %v3676, %v3879
      %v3962 = vadd.f32 %v3677, %v3886
      %v3963 = vadd.f32 %v3678, %v3891
      %v3964 = vadd.f32 %v3679, %v3898
      %v3965 = vadd.f32 %v3680, %v3901
      %v3966 = vadd.f32 %v3681, %v3908
      %v3967 = vadd.f32 %v3682, %v3913
      %v3968 = vadd.f32 %v3683, %v3920
      %v3969 = vadd.f32 %v3684, %v3923
      %v3970 = vadd.f32 %v3685, %v3930
      %v3971 = vadd.f32 %v3686, %v3935
      %s3972 = scalar_lea.vmem %s3, 16
      %v3973 = vld [vmem:[%s3972] sm:$0x3]
      %v3978 = vrot.slane %v3429, 1
      %v3979 = vsel %vm1838, %v1884, %v3978
      %v3980 = vrot.slane %v3430, 1
      %v3981 = vsel %vm1838, %v3978, %v3980
      %v3982 = vrot.slane %v3431, 1
      %v3983 = vsel %vm1838, %v3980, %v3982
      %v3984 = vrot.slane %v3687, 1
      %v3985 = vsel %vm1838, %v3982, %v3984
      %v3987 = vsel %vm895, %v3979, 0
      %v3990 = vsel %vm895, %v3981, 0
      %v3993 = vsel %vm895, %v3983, 0
      %v3996 = vsel %vm895, %v3985, 0
      %v3999 = vsel %vm1338, %v3973, 0
      %4001 = vmatprep.subr.bf16.mxu0 0
      %4002 = vmatpush1.bf16.msra.mxu0 0
      %4003 = vmatprep.subr.bf16.mxu0 0
      %4004 = vmatpush1.bf16.msra.mxu0 0
      %4005 = vmatprep.subr.bf16.mxu0 0
      %4006 = vmatpush1.bf16.msra.mxu0 0
      %4007 = vmatprep.subr.bf16.mxu0 0
      %4008 = vmatpush1.bf16.msra.mxu0 0
      %4009 = vmatprep.subr.bf16.mxu0 0
      %4010 = vmatpush1.bf16.msra.mxu0 0
      %4011 = vmatprep.subr.bf16.mxu0 0
      %4012 = vmatpush1.bf16.msra.mxu0 0
      %4013 = vmatprep.subr.bf16.mxu0 0
      %4014 = vmatpush1.bf16.msra.mxu0 0
      %4015 = vmatprep.subr.bf16.mxu0 0
      %4016 = vmatpush1.bf16.msra.mxu0 %v3999
      %4017 = vmatprep.subr.bf16.mxu0 0
      %4018 = vmatpush2.bf16.msra.mxu0 0
      %4019 = vmatprep.subr.bf16.mxu0 0
      %4020 = vmatpush2.bf16.msra.mxu0 0
      %4021 = vmatprep.subr.bf16.mxu0 0
      %4022 = vmatpush2.bf16.msra.mxu0 0
      %4023 = vmatprep.subr.bf16.mxu0 0
      %4024 = vmatpush2.bf16.msra.mxu0 0
      %4025 = vmatprep.subr.bf16.mxu0 0
      %4026 = vmatpush2.bf16.msra.mxu0 0
      %4027 = vmatprep.subr.bf16.mxu0 0
      %4028 = vmatpush2.bf16.msra.mxu0 0
      %4029 = vmatprep.subr.bf16.mxu0 0
      %4030 = vmatpush2.bf16.msra.mxu0 0
      %4031 = vmatprep.subr.bf16.mxu0 0
      %4032 = vmatpush2.bf16.msra.mxu0 0
      %4033 = vmatprep.mubr.bf16.mxu0 0
      %4034 = vmatmul.mubr.bf16.gmra.mxu0 %v1898
      %v4035 = vpop.f32.mrf.mxu0
      %v4036 = vadd.f32 0.0, %v4035
      %v4037 = vpop.f32.mrf.mxu0
      %v4038 = vpop.f32.mrf.mxu0
      %v4039 = vadd.f32 0.0, %v4038
      %v4040 = vpop.f32.mrf.mxu0
      %4041 = vmatprep.mubr.bf16.mxu0 0
      %4042 = vmatmul.mubr.bf16.gmra.mxu0 %v1901
      %v4043 = vpop.f32.mrf.mxu0
      %v4044 = vpop.f32.mrf.mxu0
      %v4045 = vpop.f32.mrf.mxu0
      %v4046 = vadd.f32 0.0, %v4045
      %v4047 = vpop.f32.mrf.mxu0
      %4048 = vmatprep.mubr.bf16.mxu0 0
      %4049 = vmatmul.mubr.bf16.gmra.mxu0 %v1904
      %v4050 = vpop.f32.mrf.mxu0
      %v4051 = vadd.f32 0.0, %v4050
      %v4052 = vpop.f32.mrf.mxu0
      %v4053 = vpop.f32.mrf.mxu0
      %v4054 = vpop.f32.mrf.mxu0
      %4055 = vmatprep.mubr.bf16.mxu0 0
      %4056 = vmatmul.mubr.bf16.gmra.mxu0 %v1907
      %v4057 = vpop.f32.mrf.mxu0
      %v4058 = vadd.f32 0.0, %v4057
      %v4059 = vpop.f32.mrf.mxu0
      %v4060 = vpop.f32.mrf.mxu0
      %v4061 = vadd.f32 0.0, %v4060
      %v4062 = vpop.f32.mrf.mxu0
      %4063 = vmatprep.mubr.bf16.mxu0 0
      %4064 = vmatmul.mubr.bf16.gmra.mxu0 %v1910
      %v4065 = vpop.f32.mrf.mxu0
      %v4066 = vpop.f32.mrf.mxu0
      %v4067 = vpop.f32.mrf.mxu0
      %v4068 = vadd.f32 0.0, %v4067
      %v4069 = vpop.f32.mrf.mxu0
      %4070 = vmatprep.mubr.bf16.mxu0 0
      %4071 = vmatmul.mubr.bf16.gmra.mxu0 %v1913
      %v4072 = vpop.f32.mrf.mxu0
      %v4073 = vadd.f32 0.0, %v4072
      %v4074 = vpop.f32.mrf.mxu0
      %v4075 = vpop.f32.mrf.mxu0
      %v4076 = vpop.f32.mrf.mxu0
      %4077 = vmatprep.mubr.bf16.mxu0 0
      %4078 = vmatmul.mubr.bf16.gmra.mxu0 %v1916
      %v4079 = vpop.f32.mrf.mxu0
      %v4080 = vadd.f32 0.0, %v4079
      %v4081 = vpop.f32.mrf.mxu0
      %v4082 = vpop.f32.mrf.mxu0
      %v4083 = vadd.f32 0.0, %v4082
      %v4084 = vpop.f32.mrf.mxu0
      %4085 = vmatprep.mubr.bf16.mxu0 0
      %4086 = vmatmul.mubr.bf16.gmra.mxu0 %v1919
      %v4087 = vpop.f32.mrf.mxu0
      %v4088 = vpop.f32.mrf.mxu0
      %v4089 = vpop.f32.mrf.mxu0
      %v4090 = vadd.f32 0.0, %v4089
      %v4091 = vpop.f32.mrf.mxu0
      %4092 = vmatprep.mubr.bf16.mxu0 0
      %4093 = vmatmul.mubr.bf16.gmra.mxu0 %v1922
      %v4094 = vpop.f32.mrf.mxu0
      %v4095 = vadd.f32 0.0, %v4094
      %v4096 = vpop.f32.mrf.mxu0
      %v4097 = vpop.f32.mrf.mxu0
      %v4098 = vpop.f32.mrf.mxu0
      %4099 = vmatprep.mubr.bf16.mxu0 0
      %4100 = vmatmul.mubr.bf16.gmra.mxu0 %v1925
      %v4101 = vpop.f32.mrf.mxu0
      %v4102 = vadd.f32 0.0, %v4101
      %v4103 = vpop.f32.mrf.mxu0
      %v4104 = vpop.f32.mrf.mxu0
      %v4105 = vadd.f32 0.0, %v4104
      %v4106 = vpop.f32.mrf.mxu0
      %4107 = vmatprep.mubr.bf16.mxu0 0
      %4108 = vmatmul.mubr.bf16.gmra.mxu0 %v1928
      %v4109 = vpop.f32.mrf.mxu0
      %v4110 = vpop.f32.mrf.mxu0
      %v4111 = vpop.f32.mrf.mxu0
      %v4112 = vadd.f32 0.0, %v4111
      %v4113 = vpop.f32.mrf.mxu0
      %4114 = vmatprep.mubr.bf16.mxu0 0
      %4115 = vmatmul.mubr.bf16.gmra.mxu0 %v1931
      %v4116 = vpop.f32.mrf.mxu0
      %v4117 = vadd.f32 0.0, %v4116
      %v4118 = vpop.f32.mrf.mxu0
      %v4119 = vpop.f32.mrf.mxu0
      %v4120 = vpop.f32.mrf.mxu0
      %4121 = vmatprep.mubr.bf16.mxu0 0
      %4122 = vmatmul.mubr.bf16.gmra.mxu0 %v1934
      %v4123 = vpop.f32.mrf.mxu0
      %v4124 = vadd.f32 0.0, %v4123
      %v4125 = vpop.f32.mrf.mxu0
      %v4126 = vpop.f32.mrf.mxu0
      %v4127 = vadd.f32 0.0, %v4126
      %v4128 = vpop.f32.mrf.mxu0
      %4129 = vmatprep.mubr.bf16.mxu0 0
      %4130 = vmatmul.mubr.bf16.gmra.mxu0 %v1937
      %v4131 = vpop.f32.mrf.mxu0
      %v4132 = vpop.f32.mrf.mxu0
      %v4133 = vpop.f32.mrf.mxu0
      %v4134 = vadd.f32 0.0, %v4133
      %v4135 = vpop.f32.mrf.mxu0
      %4136 = vmatprep.mubr.bf16.mxu0 0
      %4137 = vmatmul.mubr.bf16.gmra.mxu0 %v1940
      %v4138 = vpop.f32.mrf.mxu0
      %v4139 = vadd.f32 0.0, %v4138
      %v4140 = vpop.f32.mrf.mxu0
      %v4141 = vpop.f32.mrf.mxu0
      %v4142 = vpop.f32.mrf.mxu0
      %4143 = vmatprep.mubr.bf16.mxu0 0
      %4144 = vmatmul.mubr.bf16.gmra.mxu0 %v1943
      %v4145 = vpop.f32.mrf.mxu0
      %v4146 = vadd.f32 0.0, %v4145
      %v4147 = vpop.f32.mrf.mxu0
      %v4148 = vpop.f32.mrf.mxu0
      %v4149 = vadd.f32 0.0, %v4148
      %v4150 = vpop.f32.mrf.mxu0
      %4151 = vmatprep.mubr.bf16.mxu0 0
      %4152 = vmatmul.mubr.bf16.gmra.mxu0 %v1946
      %v4153 = vpop.f32.mrf.mxu0
      %v4154 = vpop.f32.mrf.mxu0
      %v4155 = vpop.f32.mrf.mxu0
      %v4156 = vadd.f32 0.0, %v4155
      %v4157 = vpop.f32.mrf.mxu0
      %4158 = vmatprep.mubr.bf16.mxu0 0
      %4159 = vmatmul.mubr.bf16.gmra.mxu0 %v1949
      %v4160 = vpop.f32.mrf.mxu0
      %v4161 = vadd.f32 0.0, %v4160
      %v4162 = vpop.f32.mrf.mxu0
      %v4163 = vpop.f32.mrf.mxu0
      %v4164 = vpop.f32.mrf.mxu0
      %4165 = vmatprep.mubr.bf16.mxu0 0
      %4166 = vmatmul.mubr.bf16.gmra.mxu0 %v1952
      %v4167 = vpop.f32.mrf.mxu0
      %v4168 = vadd.f32 0.0, %v4167
      %v4169 = vpop.f32.mrf.mxu0
      %v4170 = vpop.f32.mrf.mxu0
      %v4171 = vadd.f32 0.0, %v4170
      %v4172 = vpop.f32.mrf.mxu0
      %4173 = vmatprep.mubr.bf16.mxu0 0
      %4174 = vmatmul.mubr.bf16.gmra.mxu0 %v1955
      %v4175 = vpop.f32.mrf.mxu0
      %v4176 = vpop.f32.mrf.mxu0
      %v4177 = vpop.f32.mrf.mxu0
      %v4178 = vadd.f32 0.0, %v4177
      %v4179 = vpop.f32.mrf.mxu0
      %4180 = vmatprep.mubr.bf16.mxu0 0
      %4181 = vmatmul.mubr.bf16.gmra.mxu0 %v3987
      %v4182 = vpop.f32.mrf.mxu0
      %v4183 = vadd.f32 0.0, %v4182
      %v4184 = vpop.f32.mrf.mxu0
      %v4185 = vpop.f32.mrf.mxu0
      %v4186 = vpop.f32.mrf.mxu0
      %4187 = vmatprep.mubr.bf16.mxu0 0
      %4188 = vmatmul.mubr.bf16.gmra.mxu0 %v3990
      %v4189 = vpop.f32.mrf.mxu0
      %v4190 = vadd.f32 0.0, %v4189
      %v4191 = vpop.f32.mrf.mxu0
      %v4192 = vpop.f32.mrf.mxu0
      %v4193 = vadd.f32 0.0, %v4192
      %v4194 = vpop.f32.mrf.mxu0
      %4195 = vmatprep.mubr.bf16.mxu0 0
      %4196 = vmatmul.mubr.bf16.gmra.mxu0 %v3993
      %v4197 = vpop.f32.mrf.mxu0
      %v4198 = vpop.f32.mrf.mxu0
      %v4199 = vpop.f32.mrf.mxu0
      %v4200 = vadd.f32 0.0, %v4199
      %v4201 = vpop.f32.mrf.mxu0
      %4202 = vmatprep.mubr.bf16.mxu0 0
      %4203 = vmatmul.mubr.bf16.gmra.mxu0 %v3996
      %v4204 = vpop.f32.mrf.mxu0
      %v4205 = vadd.f32 0.0, %v4204
      %v4206 = vpop.f32.mrf.mxu0
      %v4207 = vpop.f32.mrf.mxu0
      %v4208 = vpop.f32.mrf.mxu0
      %4209 = vdwg.mxu0
      %v4210 = vadd.f32 %v3940, %v4036
      %v4211 = vadd.f32 %v3941, %v4039
      %v4212 = vadd.f32 %v3942, %v4046
      %v4213 = vadd.f32 %v3943, %v4051
      %v4214 = vadd.f32 %v3944, %v4058
      %v4215 = vadd.f32 %v3945, %v4061
      %v4216 = vadd.f32 %v3946, %v4068
      %v4217 = vadd.f32 %v3947, %v4073
      %v4218 = vadd.f32 %v3948, %v4080
      %v4219 = vadd.f32 %v3949, %v4083
      %v4220 = vadd.f32 %v3950, %v4090
      %v4221 = vadd.f32 %v3951, %v4095
      %v4222 = vadd.f32 %v3952, %v4102
      %v4223 = vadd.f32 %v3953, %v4105
      %v4224 = vadd.f32 %v3954, %v4112
      %v4225 = vadd.f32 %v3955, %v4117
      %v4226 = vadd.f32 %v3956, %v4124
      %v4227 = vadd.f32 %v3957, %v4127
      %v4228 = vadd.f32 %v3958, %v4134
      %v4229 = vadd.f32 %v3959, %v4139
      %v4230 = vadd.f32 %v3960, %v4146
      %v4231 = vadd.f32 %v3961, %v4149
      %v4232 = vadd.f32 %v3962, %v4156
      %v4233 = vadd.f32 %v3963, %v4161
      %v4234 = vadd.f32 %v3964, %v4168
      %v4235 = vadd.f32 %v3965, %v4171
      %v4236 = vadd.f32 %v3966, %v4178
      %v4237 = vadd.f32 %v3967, %v4183
      %v4238 = vadd.f32 %v3968, %v4190
      %v4239 = vadd.f32 %v3969, %v4193
      %v4240 = vadd.f32 %v3970, %v4200
      %v4241 = vadd.f32 %v3971, %v4205
      %v4242 = vsel %vm895, %v4210, 0.0
      %v4243 = vsel %vm895, %v4211, 0.0
      %v4244 = vadd.f32 %v4242, %v4243
      %v4245 = vsel %vm895, %v4212, 0.0
      %v4246 = vadd.f32 %v4244, %v4245
      %v4247 = vsel %vm895, %v4213, 0.0
      %v4248 = vadd.f32 %v4246, %v4247
      %v4249 = vsel %vm895, %v4214, 0.0
      %v4250 = vadd.f32 %v4248, %v4249
      %v4251 = vsel %vm895, %v4215, 0.0
      %v4252 = vadd.f32 %v4250, %v4251
      %v4253 = vsel %vm895, %v4216, 0.0
      %v4254 = vadd.f32 %v4252, %v4253
      %v4255 = vsel %vm895, %v4217, 0.0
      %v4256 = vadd.f32 %v4254, %v4255
      %v4257 = vsel %vm895, %v4218, 0.0
      %v4258 = vadd.f32 %v4256, %v4257
      %v4259 = vsel %vm895, %v4219, 0.0
      %v4260 = vadd.f32 %v4258, %v4259
      %v4261 = vsel %vm895, %v4220, 0.0
      %v4262 = vadd.f32 %v4260, %v4261
      %v4263 = vsel %vm895, %v4221, 0.0
      %v4264 = vadd.f32 %v4262, %v4263
      %v4265 = vsel %vm895, %v4222, 0.0
      %v4266 = vadd.f32 %v4264, %v4265
      %v4267 = vsel %vm895, %v4223, 0.0
      %v4268 = vadd.f32 %v4266, %v4267
      %v4269 = vsel %vm895, %v4224, 0.0
      %v4270 = vadd.f32 %v4268, %v4269
      %v4271 = vsel %vm895, %v4225, 0.0
      %v4272 = vadd.f32 %v4270, %v4271
      %v4273 = vsel %vm895, %v4226, 0.0
      %v4274 = vadd.f32 %v4272, %v4273
      %v4275 = vsel %vm895, %v4227, 0.0
      %v4276 = vadd.f32 %v4274, %v4275
      %v4277 = vsel %vm895, %v4228, 0.0
      %v4278 = vadd.f32 %v4276, %v4277
      %v4279 = vsel %vm895, %v4229, 0.0
      %v4280 = vadd.f32 %v4278, %v4279
      %v4281 = vsel %vm895, %v4230, 0.0
      %v4282 = vadd.f32 %v4280, %v4281
      %v4283 = vsel %vm895, %v4231, 0.0
      %v4284 = vadd.f32 %v4282, %v4283
      %v4285 = vsel %vm895, %v4232, 0.0
      %v4286 = vadd.f32 %v4284, %v4285
      %v4287 = vsel %vm895, %v4233, 0.0
      %v4288 = vadd.f32 %v4286, %v4287
      %v4289 = vsel %vm895, %v4234, 0.0
      %v4290 = vadd.f32 %v4288, %v4289
      %v4291 = vsel %vm895, %v4235, 0.0
      %v4292 = vadd.f32 %v4290, %v4291
      %v4293 = vsel %vm895, %v4236, 0.0
      %v4294 = vadd.f32 %v4292, %v4293
      %v4295 = vsel %vm895, %v4237, 0.0
      %v4296 = vadd.f32 %v4294, %v4295
      %v4297 = vsel %vm895, %v4238, 0.0
      %v4298 = vadd.f32 %v4296, %v4297
      %v4299 = vsel %vm895, %v4239, 0.0
      %v4300 = vadd.f32 %v4298, %v4299
      %v4301 = vsel %vm895, %v4240, 0.0
      %v4302 = vadd.f32 %v4300, %v4301
      %v4303 = vsel %vm895, %v4241, 0.0
      %v4304 = vadd.f32 %v4302, %v4303
      %v4305 = vrot.slane %v4304, 4
      %v4306 = vadd.f32 %v4304, %v4305
      %v4307 = vrot.slane %v4306, 2
      %v4308 = vadd.f32 %v4306, %v4307
      %v4309 = vrot.slane %v4308, 1
      %v4310 = vadd.f32 %v4308, %v4309
      %v4311 = vmul.f32 %v4310, 0.00390625
      %v4312 = vld [vmem:[%s4] sm:$0xf]
      %v4313 = vld [vmem:[%s5] sm:$0x1]
      %v4315 = vsel %vm895, %v4311, 0
      %vm4317 = vcmask 1043456
      %v4319 = vsel %vm4317, %v4312, 0
      %4321 = vmatprep.subr.mxu0 0.0
      %4322 = vmatpush1.msra.mxu0 0.0
      %4323 = vmatprep.subr.mxu0 0.0
      %4324 = vmatpush1.msra.mxu0 0.0
      %4325 = vmatprep.subr.mxu0 0.0
      %4326 = vmatpush1.msra.mxu0 0.0
      %4327 = vmatprep.subr.mxu0 0.0
      %4328 = vmatpush1.msra.mxu0 0.0
      %4329 = vmatprep.subr.mxu0 0.0
      %4330 = vmatpush1.msra.mxu0 0.0
      %4331 = vmatprep.subr.mxu0 0.0
      %4332 = vmatpush1.msra.mxu0 0.0
      %4333 = vmatprep.subr.mxu0 0.0
      %4334 = vmatpush1.msra.mxu0 0.0
      %4335 = vmatprep.subr.mxu0 0.0
      %4336 = vmatpush1.msra.mxu0 0.0
      %4337 = vmatprep.subr.mxu0 0.0
      %4338 = vmatpush1.msra.mxu0 0.0
      %4339 = vmatprep.subr.mxu0 0.0
      %4340 = vmatpush1.msra.mxu0 0.0
      %4341 = vmatprep.subr.mxu0 0.0
      %4342 = vmatpush1.msra.mxu0 0.0
      %4343 = vmatprep.subr.mxu0 0.0
      %4344 = vmatpush1.msra.mxu0 0.0
      %4345 = vmatprep.subr.mxu0 0.0
      %4346 = vmatpush1.msra.mxu0 0.0
      %4347 = vmatprep.subr.mxu0 0.0
      %4348 = vmatpush1.msra.mxu0 0.0
      %4349 = vmatprep.subr.mxu0 0.0
      %4350 = vmatpush1.msra.mxu0 0.0
      %4351 = vmatprep.subr.mxu0 0.0
      %4352 = vmatpush1.msra.mxu0 %v4319
      %4353 = vmatprep.subr.mxu0 0.0
      %4354 = vmatpush2.msra.mxu0 0.0
      %4355 = vmatprep.subr.mxu0 0.0
      %4356 = vmatpush2.msra.mxu0 0.0
      %4357 = vmatprep.subr.mxu0 0.0
      %4358 = vmatpush2.msra.mxu0 0.0
      %4359 = vmatprep.subr.mxu0 0.0
      %4360 = vmatpush2.msra.mxu0 0.0
      %4361 = vmatprep.subr.mxu0 0.0
      %4362 = vmatpush2.msra.mxu0 0.0
      %4363 = vmatprep.subr.mxu0 0.0
      %4364 = vmatpush2.msra.mxu0 0.0
      %4365 = vmatprep.subr.mxu0 0.0
      %4366 = vmatpush2.msra.mxu0 0.0
      %4367 = vmatprep.subr.mxu0 0.0
      %4368 = vmatpush2.msra.mxu0 0.0
      %4369 = vmatprep.subr.mxu0 0.0
      %4370 = vmatpush2.msra.mxu0 0.0
      %4371 = vmatprep.subr.mxu0 0.0
      %4372 = vmatpush2.msra.mxu0 0.0
      %4373 = vmatprep.subr.mxu0 0.0
      %4374 = vmatpush2.msra.mxu0 0.0
      %4375 = vmatprep.subr.mxu0 0.0
      %4376 = vmatpush2.msra.mxu0 0.0
      %4377 = vmatprep.subr.mxu0 0.0
      %4378 = vmatpush2.msra.mxu0 0.0
      %4379 = vmatprep.subr.mxu0 0.0
      %4380 = vmatpush2.msra.mxu0 0.0
      %4381 = vmatprep.subr.mxu0 0.0
      %4382 = vmatpush2.msra.mxu0 0.0
      %4383 = vmatprep.subr.mxu0 0.0
      %4384 = vmatpush2.msra.mxu0 0.0
      %4385 = vmatprep.mubr.f32.mxu0 0.0
      %4386 = vmatmul.mubr.f32.gmra.mxu0 %v4315
      %v4387 = vpop.f32.mrf.mxu0
      %v4388 = vadd.f32 %v4313, %v4387
      %v4389 = vpop.f32.mrf.mxu0
      %4390 = vdwg.mxu0
      %v4391 = vmax.f32 %v4388, 0.0
      %v4392 = vld [vmem:[%s6] sm:$0xf]
      %v4393 = vld [vmem:[%s7] sm:$0x1]
      %v4395 = vsel %vm895, %v4391, 0
      %v4398 = vsel %vm4317, %v4392, 0
      %4400 = vmatprep.subr.mxu0 0.0
      %4401 = vmatpush1.msra.mxu0 0.0
      %4402 = vmatprep.subr.mxu0 0.0
      %4403 = vmatpush1.msra.mxu0 0.0
      %4404 = vmatprep.subr.mxu0 0.0
      %4405 = vmatpush1.msra.mxu0 0.0
      %4406 = vmatprep.subr.mxu0 0.0
      %4407 = vmatpush1.msra.mxu0 0.0
      %4408 = vmatprep.subr.mxu0 0.0
      %4409 = vmatpush1.msra.mxu0 0.0
      %4410 = vmatprep.subr.mxu0 0.0
      %4411 = vmatpush1.msra.mxu0 0.0
      %4412 = vmatprep.subr.mxu0 0.0
      %4413 = vmatpush1.msra.mxu0 0.0
      %4414 = vmatprep.subr.mxu0 0.0
      %4415 = vmatpush1.msra.mxu0 0.0
      %4416 = vmatprep.subr.mxu0 0.0
      %4417 = vmatpush1.msra.mxu0 0.0
      %4418 = vmatprep.subr.mxu0 0.0
      %4419 = vmatpush1.msra.mxu0 0.0
      %4420 = vmatprep.subr.mxu0 0.0
      %4421 = vmatpush1.msra.mxu0 0.0
      %4422 = vmatprep.subr.mxu0 0.0
      %4423 = vmatpush1.msra.mxu0 0.0
      %4424 = vmatprep.subr.mxu0 0.0
      %4425 = vmatpush1.msra.mxu0 0.0
      %4426 = vmatprep.subr.mxu0 0.0
      %4427 = vmatpush1.msra.mxu0 0.0
      %4428 = vmatprep.subr.mxu0 0.0
      %4429 = vmatpush1.msra.mxu0 0.0
      %4430 = vmatprep.subr.mxu0 0.0
      %4431 = vmatpush1.msra.mxu0 %v4398
      %4432 = vmatprep.subr.mxu0 0.0
      %4433 = vmatpush2.msra.mxu0 0.0
      %4434 = vmatprep.subr.mxu0 0.0
      %4435 = vmatpush2.msra.mxu0 0.0
      %4436 = vmatprep.subr.mxu0 0.0
      %4437 = vmatpush2.msra.mxu0 0.0
      %4438 = vmatprep.subr.mxu0 0.0
      %4439 = vmatpush2.msra.mxu0 0.0
      %4440 = vmatprep.subr.mxu0 0.0
      %4441 = vmatpush2.msra.mxu0 0.0
      %4442 = vmatprep.subr.mxu0 0.0
      %4443 = vmatpush2.msra.mxu0 0.0
      %4444 = vmatprep.subr.mxu0 0.0
      %4445 = vmatpush2.msra.mxu0 0.0
      %4446 = vmatprep.subr.mxu0 0.0
      %4447 = vmatpush2.msra.mxu0 0.0
      %4448 = vmatprep.subr.mxu0 0.0
      %4449 = vmatpush2.msra.mxu0 0.0
      %4450 = vmatprep.subr.mxu0 0.0
      %4451 = vmatpush2.msra.mxu0 0.0
      %4452 = vmatprep.subr.mxu0 0.0
      %4453 = vmatpush2.msra.mxu0 0.0
      %4454 = vmatprep.subr.mxu0 0.0
      %4455 = vmatpush2.msra.mxu0 0.0
      %4456 = vmatprep.subr.mxu0 0.0
      %4457 = vmatpush2.msra.mxu0 0.0
      %4458 = vmatprep.subr.mxu0 0.0
      %4459 = vmatpush2.msra.mxu0 0.0
      %4460 = vmatprep.subr.mxu0 0.0
      %4461 = vmatpush2.msra.mxu0 0.0
      %4462 = vmatprep.subr.mxu0 0.0
      %4463 = vmatpush2.msra.mxu0 0.0
      %4464 = vmatprep.mubr.f32.mxu0 0.0
      %4465 = vmatmul.mubr.f32.gmra.mxu0 %v4395
      %v4466 = vpop.f32.mrf.mxu0
      %v4467 = vadd.f32 %v4393, %v4466
      %v4468 = vpop.f32.mrf.mxu0
      %4469 = vdwg.mxu0
      %v4470 = vld [vmem:[%s8] sm:$0xf]
      %v4471 = vld [vmem:[%s10] sm:$0x1]
      %v4473 = vsel %vm895, %v4467, 0
      %v4476 = vsel %vm4317, %v4470, 0
      %4478 = vmatprep.subr.mxu0 0.0
      %4479 = vmatpush1.msra.mxu0 0.0
      %4480 = vmatprep.subr.mxu0 0.0
      %4481 = vmatpush1.msra.mxu0 0.0
      %4482 = vmatprep.subr.mxu0 0.0
      %4483 = vmatpush1.msra.mxu0 0.0
      %4484 = vmatprep.subr.mxu0 0.0
      %4485 = vmatpush1.msra.mxu0 0.0
      %4486 = vmatprep.subr.mxu0 0.0
      %4487 = vmatpush1.msra.mxu0 0.0
      %4488 = vmatprep.subr.mxu0 0.0
      %4489 = vmatpush1.msra.mxu0 0.0
      %4490 = vmatprep.subr.mxu0 0.0
      %4491 = vmatpush1.msra.mxu0 0.0
      %4492 = vmatprep.subr.mxu0 0.0
      %4493 = vmatpush1.msra.mxu0 0.0
      %4494 = vmatprep.subr.mxu0 0.0
      %4495 = vmatpush1.msra.mxu0 0.0
      %4496 = vmatprep.subr.mxu0 0.0
      %4497 = vmatpush1.msra.mxu0 0.0
      %4498 = vmatprep.subr.mxu0 0.0
      %4499 = vmatpush1.msra.mxu0 0.0
      %4500 = vmatprep.subr.mxu0 0.0
      %4501 = vmatpush1.msra.mxu0 0.0
      %4502 = vmatprep.subr.mxu0 0.0
      %4503 = vmatpush1.msra.mxu0 0.0
      %4504 = vmatprep.subr.mxu0 0.0
      %4505 = vmatpush1.msra.mxu0 0.0
      %4506 = vmatprep.subr.mxu0 0.0
      %4507 = vmatpush1.msra.mxu0 0.0
      %4508 = vmatprep.subr.mxu0 0.0
      %4509 = vmatpush1.msra.mxu0 %v4476
      %4510 = vmatprep.subr.mxu0 0.0
      %4511 = vmatpush2.msra.mxu0 0.0
      %4512 = vmatprep.subr.mxu0 0.0
      %4513 = vmatpush2.msra.mxu0 0.0
      %4514 = vmatprep.subr.mxu0 0.0
      %4515 = vmatpush2.msra.mxu0 0.0
      %4516 = vmatprep.subr.mxu0 0.0
      %4517 = vmatpush2.msra.mxu0 0.0
      %4518 = vmatprep.subr.mxu0 0.0
      %4519 = vmatpush2.msra.mxu0 0.0
      %4520 = vmatprep.subr.mxu0 0.0
      %4521 = vmatpush2.msra.mxu0 0.0
      %4522 = vmatprep.subr.mxu0 0.0
      %4523 = vmatpush2.msra.mxu0 0.0
      %4524 = vmatprep.subr.mxu0 0.0
      %4525 = vmatpush2.msra.mxu0 0.0
      %4526 = vmatprep.subr.mxu0 0.0
      %4527 = vmatpush2.msra.mxu0 0.0
      %4528 = vmatprep.subr.mxu0 0.0
      %4529 = vmatpush2.msra.mxu0 0.0
      %4530 = vmatprep.subr.mxu0 0.0
      %4531 = vmatpush2.msra.mxu0 0.0
      %4532 = vmatprep.subr.mxu0 0.0
      %4533 = vmatpush2.msra.mxu0 0.0
      %4534 = vmatprep.subr.mxu0 0.0
      %4535 = vmatpush2.msra.mxu0 0.0
      %4536 = vmatprep.subr.mxu0 0.0
      %4537 = vmatpush2.msra.mxu0 0.0
      %4538 = vmatprep.subr.mxu0 0.0
      %4539 = vmatpush2.msra.mxu0 0.0
      %4540 = vmatprep.subr.mxu0 0.0
      %4541 = vmatpush2.msra.mxu0 0.0
      %4542 = vmatprep.mubr.f32.mxu0 0.0
      %4543 = vmatmul.mubr.f32.gmra.mxu0 %v4473
      %v4544 = vpop.f32.mrf.mxu0
      %v4545 = vadd.f32 %v4471, %v4544
      %v4546 = vpop.f32.mrf.mxu0
      %4547 = vdwg.mxu0
      %v4548 = vpack.c.bf16 %v4211, %v4210
      %v4549 = vpack.c.bf16 %v4213, %v4212
      %v4550 = vpack.c.bf16 %v4215, %v4214
      %v4551 = vpack.c.bf16 %v4217, %v4216
      %v4552 = vpack.c.bf16 %v4219, %v4218
      %v4553 = vpack.c.bf16 %v4221, %v4220
      %v4554 = vpack.c.bf16 %v4223, %v4222
      %v4555 = vpack.c.bf16 %v4225, %v4224
      %v4556 = vpack.c.bf16 %v4227, %v4226
      %v4557 = vpack.c.bf16 %v4229, %v4228
      %v4558 = vpack.c.bf16 %v4231, %v4230
      %v4559 = vpack.c.bf16 %v4233, %v4232
      %v4560 = vpack.c.bf16 %v4235, %v4234
      %v4561 = vpack.c.bf16 %v4237, %v4236
      %v4562 = vpack.c.bf16 %v4239, %v4238
      %v4563 = vpack.c.bf16 %v4241, %v4240
      %v4564 = vld [vmem:[%s9] sm:$0x3]
      %v4565 = vlaneseq
      %v4566 = vshrl.u32 %v4565, 7
      %v4567 = vsub.s32 0, %v4566
      %v4568 = vrot.slane %v4545, %v4567
      %v4570 = vsel %vm895, %v4548, 0
      %v4573 = vsel %vm895, %v4549, 0
      %v4576 = vsel %vm895, %v4550, 0
      %v4579 = vsel %vm895, %v4551, 0
      %v4582 = vsel %vm895, %v4552, 0
      %v4585 = vsel %vm895, %v4553, 0
      %v4588 = vsel %vm895, %v4554, 0
      %v4591 = vsel %vm895, %v4555, 0
      %v4594 = vsel %vm895, %v4556, 0
      %v4597 = vsel %vm895, %v4557, 0
      %v4600 = vsel %vm895, %v4558, 0
      %v4603 = vsel %vm895, %v4559, 0
      %v4606 = vsel %vm895, %v4560, 0
      %v4609 = vsel %vm895, %v4561, 0
      %v4612 = vsel %vm895, %v4562, 0
      %v4615 = vsel %vm895, %v4563, 0
      %v4618 = vsel %vm1338, %v4564, 0
      %4620 = vmatprep.subr.bf16.mxu0 0
      %4621 = vmatpush1.bf16.msra.mxu0 0
      %4622 = vmatprep.subr.bf16.mxu0 0
      %4623 = vmatpush1.bf16.msra.mxu0 0
      %4624 = vmatprep.subr.bf16.mxu0 0
      %4625 = vmatpush1.bf16.msra.mxu0 0
      %4626 = vmatprep.subr.bf16.mxu0 0
      %4627 = vmatpush1.bf16.msra.mxu0 0
      %4628 = vmatprep.subr.bf16.mxu0 0
      %4629 = vmatpush1.bf16.msra.mxu0 0
      %4630 = vmatprep.subr.bf16.mxu0 0
      %4631 = vmatpush1.bf16.msra.mxu0 0
      %4632 = vmatprep.subr.bf16.mxu0 0
      %4633 = vmatpush1.bf16.msra.mxu0 0
      %4634 = vmatprep.subr.bf16.mxu0 0
      %4635 = vmatpush1.bf16.msra.mxu0 %v4618
      %4636 = vmatprep.subr.bf16.mxu0 0
      %4637 = vmatpush2.bf16.msra.mxu0 0
      %4638 = vmatprep.subr.bf16.mxu0 0
      %4639 = vmatpush2.bf16.msra.mxu0 0
      %4640 = vmatprep.subr.bf16.mxu0 0
      %4641 = vmatpush2.bf16.msra.mxu0 0
      %4642 = vmatprep.subr.bf16.mxu0 0
      %4643 = vmatpush2.bf16.msra.mxu0 0
      %4644 = vmatprep.subr.bf16.mxu0 0
      %4645 = vmatpush2.bf16.msra.mxu0 0
      %4646 = vmatprep.subr.bf16.mxu0 0
      %4647 = vmatpush2.bf16.msra.mxu0 0
      %4648 = vmatprep.subr.bf16.mxu0 0
      %4649 = vmatpush2.bf16.msra.mxu0 0
      %4650 = vmatprep.subr.bf16.mxu0 0
      %4651 = vmatpush2.bf16.msra.mxu0 0
      %4652 = vmatprep.mubr.bf16.mxu0 0
      %4653 = vmatmul.mubr.bf16.gmra.mxu0 %v4570
      %v4654 = vpop.f32.mrf.mxu0
      %v4655 = vadd.f32 %v4568, %v4654
      %v4656 = vpop.f32.mrf.mxu0
      %v4657 = vpop.f32.mrf.mxu0
      %v4658 = vadd.f32 %v4568, %v4657
      %v4659 = vpop.f32.mrf.mxu0
      %4660 = vmatprep.mubr.bf16.mxu0 0
      %4661 = vmatmul.mubr.bf16.gmra.mxu0 %v4573
      %v4662 = vpop.f32.mrf.mxu0
      %v4663 = vadd.f32 %v4568, %v4662
      %v4664 = vpop.f32.mrf.mxu0
      %v4665 = vpop.f32.mrf.mxu0
      %v4666 = vadd.f32 %v4568, %v4665
      %v4667 = vpop.f32.mrf.mxu0
      %4668 = vmatprep.mubr.bf16.mxu0 0
      %4669 = vmatmul.mubr.bf16.gmra.mxu0 %v4576
      %v4670 = vpop.f32.mrf.mxu0
      %v4671 = vadd.f32 %v4568, %v4670
      %v4672 = vpop.f32.mrf.mxu0
      %v4673 = vpop.f32.mrf.mxu0
      %v4674 = vadd.f32 %v4568, %v4673
      %v4675 = vpop.f32.mrf.mxu0
      %4676 = vmatprep.mubr.bf16.mxu0 0
      %4677 = vmatmul.mubr.bf16.gmra.mxu0 %v4579
      %v4678 = vpop.f32.mrf.mxu0
      %v4679 = vadd.f32 %v4568, %v4678
      %v4680 = vpop.f32.mrf.mxu0
      %v4681 = vpop.f32.mrf.mxu0
      %v4682 = vadd.f32 %v4568, %v4681
      %v4683 = vpop.f32.mrf.mxu0
      %4684 = vmatprep.mubr.bf16.mxu0 0
      %4685 = vmatmul.mubr.bf16.gmra.mxu0 %v4582
      %v4686 = vpop.f32.mrf.mxu0
      %v4687 = vadd.f32 %v4568, %v4686
      %v4688 = vpop.f32.mrf.mxu0
      %v4689 = vpop.f32.mrf.mxu0
      %v4690 = vadd.f32 %v4568, %v4689
      %v4691 = vpop.f32.mrf.mxu0
      %4692 = vmatprep.mubr.bf16.mxu0 0
      %4693 = vmatmul.mubr.bf16.gmra.mxu0 %v4585
      %v4694 = vpop.f32.mrf.mxu0
      %v4695 = vadd.f32 %v4568, %v4694
      %v4696 = vpop.f32.mrf.mxu0
      %v4697 = vpop.f32.mrf.mxu0
      %v4698 = vadd.f32 %v4568, %v4697
      %v4699 = vpop.f32.mrf.mxu0
      %4700 = vmatprep.mubr.bf16.mxu0 0
      %4701 = vmatmul.mubr.bf16.gmra.mxu0 %v4588
      %v4702 = vpop.f32.mrf.mxu0
      %v4703 = vadd.f32 %v4568, %v4702
      %v4704 = vpop.f32.mrf.mxu0
      %v4705 = vpop.f32.mrf.mxu0
      %v4706 = vadd.f32 %v4568, %v4705
      %v4707 = vpop.f32.mrf.mxu0
      %4708 = vmatprep.mubr.bf16.mxu0 0
      %4709 = vmatmul.mubr.bf16.gmra.mxu0 %v4591
      %v4710 = vpop.f32.mrf.mxu0
      %v4711 = vadd.f32 %v4568, %v4710
      %v4712 = vpop.f32.mrf.mxu0
      %v4713 = vpop.f32.mrf.mxu0
      %v4714 = vadd.f32 %v4568, %v4713
      %v4715 = vpop.f32.mrf.mxu0
      %4716 = vmatprep.mubr.bf16.mxu0 0
      %4717 = vmatmul.mubr.bf16.gmra.mxu0 %v4594
      %v4718 = vpop.f32.mrf.mxu0
      %v4719 = vadd.f32 %v4568, %v4718
      %v4720 = vpop.f32.mrf.mxu0
      %v4721 = vpop.f32.mrf.mxu0
      %v4722 = vadd.f32 %v4568, %v4721
      %v4723 = vpop.f32.mrf.mxu0
      %4724 = vmatprep.mubr.bf16.mxu0 0
      %4725 = vmatmul.mubr.bf16.gmra.mxu0 %v4597
      %v4726 = vpop.f32.mrf.mxu0
      %v4727 = vadd.f32 %v4568, %v4726
      %v4728 = vpop.f32.mrf.mxu0
      %v4729 = vpop.f32.mrf.mxu0
      %v4730 = vadd.f32 %v4568, %v4729
      %v4731 = vpop.f32.mrf.mxu0
      %4732 = vmatprep.mubr.bf16.mxu0 0
      %4733 = vmatmul.mubr.bf16.gmra.mxu0 %v4600
      %v4734 = vpop.f32.mrf.mxu0
      %v4735 = vadd.f32 %v4568, %v4734
      %v4736 = vpop.f32.mrf.mxu0
      %v4737 = vpop.f32.mrf.mxu0
      %v4738 = vadd.f32 %v4568, %v4737
      %v4739 = vpop.f32.mrf.mxu0
      %4740 = vmatprep.mubr.bf16.mxu0 0
      %4741 = vmatmul.mubr.bf16.gmra.mxu0 %v4603
      %v4742 = vpop.f32.mrf.mxu0
      %v4743 = vadd.f32 %v4568, %v4742
      %v4744 = vpop.f32.mrf.mxu0
      %v4745 = vpop.f32.mrf.mxu0
      %v4746 = vadd.f32 %v4568, %v4745
      %v4747 = vpop.f32.mrf.mxu0
      %4748 = vmatprep.mubr.bf16.mxu0 0
      %4749 = vmatmul.mubr.bf16.gmra.mxu0 %v4606
      %v4750 = vpop.f32.mrf.mxu0
      %v4751 = vadd.f32 %v4568, %v4750
      %v4752 = vpop.f32.mrf.mxu0
      %v4753 = vpop.f32.mrf.mxu0
      %v4754 = vadd.f32 %v4568, %v4753
      %v4755 = vpop.f32.mrf.mxu0
      %4756 = vmatprep.mubr.bf16.mxu0 0
      %4757 = vmatmul.mubr.bf16.gmra.mxu0 %v4609
      %v4758 = vpop.f32.mrf.mxu0
      %v4759 = vadd.f32 %v4568, %v4758
      %v4760 = vpop.f32.mrf.mxu0
      %v4761 = vpop.f32.mrf.mxu0
      %v4762 = vadd.f32 %v4568, %v4761
      %v4763 = vpop.f32.mrf.mxu0
      %4764 = vmatprep.mubr.bf16.mxu0 0
      %4765 = vmatmul.mubr.bf16.gmra.mxu0 %v4612
      %v4766 = vpop.f32.mrf.mxu0
      %v4767 = vadd.f32 %v4568, %v4766
      %v4768 = vpop.f32.mrf.mxu0
      %v4769 = vpop.f32.mrf.mxu0
      %v4770 = vadd.f32 %v4568, %v4769
      %v4771 = vpop.f32.mrf.mxu0
      %4772 = vmatprep.mubr.bf16.mxu0 0
      %4773 = vmatmul.mubr.bf16.gmra.mxu0 %v4615
      %v4774 = vpop.f32.mrf.mxu0
      %v4775 = vadd.f32 %v4568, %v4774
      %v4776 = vpop.f32.mrf.mxu0
      %v4777 = vpop.f32.mrf.mxu0
      %v4778 = vadd.f32 %v4568, %v4777
      %v4779 = vpop.f32.mrf.mxu0
      %4780 = vdwg.mxu0
      %v4781 = vmax.f32 %v4655, 0.0
      %v4782 = vmax.f32 %v4658, 0.0
      %v4783 = vmax.f32 %v4663, 0.0
      %v4784 = vmax.f32 %v4666, 0.0
      %v4785 = vmax.f32 %v4671, 0.0
      %v4786 = vmax.f32 %v4674, 0.0
      %v4787 = vmax.f32 %v4679, 0.0
      %v4788 = vmax.f32 %v4682, 0.0
      %v4789 = vmax.f32 %v4687, 0.0
      %v4790 = vmax.f32 %v4690, 0.0
      %v4791 = vmax.f32 %v4695, 0.0
      %v4792 = vmax.f32 %v4698, 0.0
      %v4793 = vmax.f32 %v4703, 0.0
      %v4794 = vmax.f32 %v4706, 0.0
      %v4795 = vmax.f32 %v4711, 0.0
      %v4796 = vmax.f32 %v4714, 0.0
      %v4797 = vmax.f32 %v4719, 0.0
      %v4798 = vmax.f32 %v4722, 0.0
      %v4799 = vmax.f32 %v4727, 0.0
      %v4800 = vmax.f32 %v4730, 0.0
      %v4801 = vmax.f32 %v4735, 0.0
      %v4802 = vmax.f32 %v4738, 0.0
      %v4803 = vmax.f32 %v4743, 0.0
      %v4804 = vmax.f32 %v4746, 0.0
      %v4805 = vmax.f32 %v4751, 0.0
      %v4806 = vmax.f32 %v4754, 0.0
      %v4807 = vmax.f32 %v4759, 0.0
      %v4808 = vmax.f32 %v4762, 0.0
      %v4809 = vmax.f32 %v4767, 0.0
      %v4810 = vmax.f32 %v4770, 0.0
      %v4811 = vmax.f32 %v4775, 0.0
      %v4812 = vmax.f32 %v4778, 0.0
      %v4813 = vpack.c.bf16 %v4782, %v4781
      %v4814 = vpack.c.bf16 %v4784, %v4783
      %v4815 = vpack.c.bf16 %v4786, %v4785
      %v4816 = vpack.c.bf16 %v4788, %v4787
      %v4817 = vpack.c.bf16 %v4790, %v4789
      %v4818 = vpack.c.bf16 %v4792, %v4791
      %v4819 = vpack.c.bf16 %v4794, %v4793
      %v4820 = vpack.c.bf16 %v4796, %v4795
      %v4821 = vpack.c.bf16 %v4798, %v4797
      %v4822 = vpack.c.bf16 %v4800, %v4799
      %v4823 = vpack.c.bf16 %v4802, %v4801
      %v4824 = vpack.c.bf16 %v4804, %v4803
      %v4825 = vpack.c.bf16 %v4806, %v4805
      %v4826 = vpack.c.bf16 %v4808, %v4807
      %v4827 = vpack.c.bf16 %v4810, %v4809
      %v4828 = vpack.c.bf16 %v4812, %v4811
      %v4829 = vld [vmem:[%s11] sm:$0x3]
      %v4830 = vld [vmem:[%s12] sm:$0x1]
      %v4832 = vlaneseq
      %v4833 = vshrl.u32 %v4832, 7
      %v4834 = vsub.s32 0, %v4833
      %v4835 = vrot.slane %v4830, %v4834
      %v4838 = vsel %vm895, %v4813, 0
      %v4841 = vsel %vm895, %v4814, 0
      %v4844 = vsel %vm895, %v4815, 0
      %v4847 = vsel %vm895, %v4816, 0
      %v4850 = vsel %vm895, %v4817, 0
      %v4853 = vsel %vm895, %v4818, 0
      %v4856 = vsel %vm895, %v4819, 0
      %v4859 = vsel %vm895, %v4820, 0
      %v4862 = vsel %vm895, %v4821, 0
      %v4865 = vsel %vm895, %v4822, 0
      %v4868 = vsel %vm895, %v4823, 0
      %v4871 = vsel %vm895, %v4824, 0
      %v4874 = vsel %vm895, %v4825, 0
      %v4877 = vsel %vm895, %v4826, 0
      %v4880 = vsel %vm895, %v4827, 0
      %v4883 = vsel %vm895, %v4828, 0
      %v4886 = vsel %vm1338, %v4829, 0
      %4888 = vmatprep.subr.bf16.mxu0 0
      %4889 = vmatpush1.bf16.msra.mxu0 0
      %4890 = vmatprep.subr.bf16.mxu0 0
      %4891 = vmatpush1.bf16.msra.mxu0 0
      %4892 = vmatprep.subr.bf16.mxu0 0
      %4893 = vmatpush1.bf16.msra.mxu0 0
      %4894 = vmatprep.subr.bf16.mxu0 0
      %4895 = vmatpush1.bf16.msra.mxu0 0
      %4896 = vmatprep.subr.bf16.mxu0 0
      %4897 = vmatpush1.bf16.msra.mxu0 0
      %4898 = vmatprep.subr.bf16.mxu0 0
      %4899 = vmatpush1.bf16.msra.mxu0 0
      %4900 = vmatprep.subr.bf16.mxu0 0
      %4901 = vmatpush1.bf16.msra.mxu0 0
      %4902 = vmatprep.subr.bf16.mxu0 0
      %4903 = vmatpush1.bf16.msra.mxu0 %v4886
      %4904 = vmatprep.subr.bf16.mxu0 0
      %4905 = vmatpush2.bf16.msra.mxu0 0
      %4906 = vmatprep.subr.bf16.mxu0 0
      %4907 = vmatpush2.bf16.msra.mxu0 0
      %4908 = vmatprep.subr.bf16.mxu0 0
      %4909 = vmatpush2.bf16.msra.mxu0 0
      %4910 = vmatprep.subr.bf16.mxu0 0
      %4911 = vmatpush2.bf16.msra.mxu0 0
      %4912 = vmatprep.subr.bf16.mxu0 0
      %4913 = vmatpush2.bf16.msra.mxu0 0
      %4914 = vmatprep.subr.bf16.mxu0 0
      %4915 = vmatpush2.bf16.msra.mxu0 0
      %4916 = vmatprep.subr.bf16.mxu0 0
      %4917 = vmatpush2.bf16.msra.mxu0 0
      %4918 = vmatprep.subr.bf16.mxu0 0
      %4919 = vmatpush2.bf16.msra.mxu0 0
      %4920 = vmatprep.mubr.bf16.mxu0 0
      %4921 = vmatmul.mubr.bf16.gmra.mxu0 %v4838
      %v4922 = vpop.f32.mrf.mxu0
      %v4923 = vadd.f32 %v4835, %v4922
      %v4924 = vpop.f32.mrf.mxu0
      %v4925 = vpop.f32.mrf.mxu0
      %v4926 = vadd.f32 %v4835, %v4925
      %v4927 = vpop.f32.mrf.mxu0
      %4928 = vmatprep.mubr.bf16.mxu0 0
      %4929 = vmatmul.mubr.bf16.gmra.mxu0 %v4841
      %v4930 = vpop.f32.mrf.mxu0
      %v4931 = vadd.f32 %v4835, %v4930
      %v4932 = vpop.f32.mrf.mxu0
      %v4933 = vpop.f32.mrf.mxu0
      %v4934 = vadd.f32 %v4835, %v4933
      %v4935 = vpop.f32.mrf.mxu0
      %4936 = vmatprep.mubr.bf16.mxu0 0
      %4937 = vmatmul.mubr.bf16.gmra.mxu0 %v4844
      %v4938 = vpop.f32.mrf.mxu0
      %v4939 = vadd.f32 %v4835, %v4938
      %v4940 = vpop.f32.mrf.mxu0
      %v4941 = vpop.f32.mrf.mxu0
      %v4942 = vadd.f32 %v4835, %v4941
      %v4943 = vpop.f32.mrf.mxu0
      %4944 = vmatprep.mubr.bf16.mxu0 0
      %4945 = vmatmul.mubr.bf16.gmra.mxu0 %v4847
      %v4946 = vpop.f32.mrf.mxu0
      %v4947 = vadd.f32 %v4835, %v4946
      %v4948 = vpop.f32.mrf.mxu0
      %v4949 = vpop.f32.mrf.mxu0
      %v4950 = vadd.f32 %v4835, %v4949
      %v4951 = vpop.f32.mrf.mxu0
      %4952 = vmatprep.mubr.bf16.mxu0 0
      %4953 = vmatmul.mubr.bf16.gmra.mxu0 %v4850
      %v4954 = vpop.f32.mrf.mxu0
      %v4955 = vadd.f32 %v4835, %v4954
      %v4956 = vpop.f32.mrf.mxu0
      %v4957 = vpop.f32.mrf.mxu0
      %v4958 = vadd.f32 %v4835, %v4957
      %v4959 = vpop.f32.mrf.mxu0
      %4960 = vmatprep.mubr.bf16.mxu0 0
      %4961 = vmatmul.mubr.bf16.gmra.mxu0 %v4853
      %v4962 = vpop.f32.mrf.mxu0
      %v4963 = vadd.f32 %v4835, %v4962
      %v4964 = vpop.f32.mrf.mxu0
      %v4965 = vpop.f32.mrf.mxu0
      %v4966 = vadd.f32 %v4835, %v4965
      %v4967 = vpop.f32.mrf.mxu0
      %4968 = vmatprep.mubr.bf16.mxu0 0
      %4969 = vmatmul.mubr.bf16.gmra.mxu0 %v4856
      %v4970 = vpop.f32.mrf.mxu0
      %v4971 = vadd.f32 %v4835, %v4970
      %v4972 = vpop.f32.mrf.mxu0
      %v4973 = vpop.f32.mrf.mxu0
      %v4974 = vadd.f32 %v4835, %v4973
      %v4975 = vpop.f32.mrf.mxu0
      %4976 = vmatprep.mubr.bf16.mxu0 0
      %4977 = vmatmul.mubr.bf16.gmra.mxu0 %v4859
      %v4978 = vpop.f32.mrf.mxu0
      %v4979 = vadd.f32 %v4835, %v4978
      %v4980 = vpop.f32.mrf.mxu0
      %v4981 = vpop.f32.mrf.mxu0
      %v4982 = vadd.f32 %v4835, %v4981
      %v4983 = vpop.f32.mrf.mxu0
      %4984 = vmatprep.mubr.bf16.mxu0 0
      %4985 = vmatmul.mubr.bf16.gmra.mxu0 %v4862
      %v4986 = vpop.f32.mrf.mxu0
      %v4987 = vadd.f32 %v4835, %v4986
      %v4988 = vpop.f32.mrf.mxu0
      %v4989 = vpop.f32.mrf.mxu0
      %v4990 = vadd.f32 %v4835, %v4989
      %v4991 = vpop.f32.mrf.mxu0
      %4992 = vmatprep.mubr.bf16.mxu0 0
      %4993 = vmatmul.mubr.bf16.gmra.mxu0 %v4865
      %v4994 = vpop.f32.mrf.mxu0
      %v4995 = vadd.f32 %v4835, %v4994
      %v4996 = vpop.f32.mrf.mxu0
      %v4997 = vpop.f32.mrf.mxu0
      %v4998 = vadd.f32 %v4835, %v4997
      %v4999 = vpop.f32.mrf.mxu0
      %5000 = vmatprep.mubr.bf16.mxu0 0
      %5001 = vmatmul.mubr.bf16.gmra.mxu0 %v4868
      %v5002 = vpop.f32.mrf.mxu0
      %v5003 = vadd.f32 %v4835, %v5002
      %v5004 = vpop.f32.mrf.mxu0
      %v5005 = vpop.f32.mrf.mxu0
      %v5006 = vadd.f32 %v4835, %v5005
      %v5007 = vpop.f32.mrf.mxu0
      %5008 = vmatprep.mubr.bf16.mxu0 0
      %5009 = vmatmul.mubr.bf16.gmra.mxu0 %v4871
      %v5010 = vpop.f32.mrf.mxu0
      %v5011 = vadd.f32 %v4835, %v5010
      %v5012 = vpop.f32.mrf.mxu0
      %v5013 = vpop.f32.mrf.mxu0
      %v5014 = vadd.f32 %v4835, %v5013
      %v5015 = vpop.f32.mrf.mxu0
      %5016 = vmatprep.mubr.bf16.mxu0 0
      %5017 = vmatmul.mubr.bf16.gmra.mxu0 %v4874
      %v5018 = vpop.f32.mrf.mxu0
      %v5019 = vadd.f32 %v4835, %v5018
      %v5020 = vpop.f32.mrf.mxu0
      %v5021 = vpop.f32.mrf.mxu0
      %v5022 = vadd.f32 %v4835, %v5021
      %v5023 = vpop.f32.mrf.mxu0
      %5024 = vmatprep.mubr.bf16.mxu0 0
      %5025 = vmatmul.mubr.bf16.gmra.mxu0 %v4877
      %v5026 = vpop.f32.mrf.mxu0
      %v5027 = vadd.f32 %v4835, %v5026
      %v5028 = vpop.f32.mrf.mxu0
      %v5029 = vpop.f32.mrf.mxu0
      %v5030 = vadd.f32 %v4835, %v5029
      %v5031 = vpop.f32.mrf.mxu0
      %5032 = vmatprep.mubr.bf16.mxu0 0
      %5033 = vmatmul.mubr.bf16.gmra.mxu0 %v4880
      %v5034 = vpop.f32.mrf.mxu0
      %v5035 = vadd.f32 %v4835, %v5034
      %v5036 = vpop.f32.mrf.mxu0
      %v5037 = vpop.f32.mrf.mxu0
      %v5038 = vadd.f32 %v4835, %v5037
      %v5039 = vpop.f32.mrf.mxu0
      %5040 = vmatprep.mubr.bf16.mxu0 0
      %5041 = vmatmul.mubr.bf16.gmra.mxu0 %v4883
      %v5042 = vpop.f32.mrf.mxu0
      %v5043 = vadd.f32 %v4835, %v5042
      %v5044 = vpop.f32.mrf.mxu0
      %v5045 = vpop.f32.mrf.mxu0
      %v5046 = vadd.f32 %v4835, %v5045
      %v5047 = vpop.f32.mrf.mxu0
      %5048 = vdwg.mxu0
      %v5049 = vxor.u32 %v4923, 2147483648
      %v5050 = vxor.u32 %v4926, 2147483648
      %v5051 = vxor.u32 %v4931, 2147483648
      %v5052 = vxor.u32 %v4934, 2147483648
      %v5053 = vxor.u32 %v4939, 2147483648
      %v5054 = vxor.u32 %v4942, 2147483648
      %v5055 = vxor.u32 %v4947, 2147483648
      %v5056 = vxor.u32 %v4950, 2147483648
      %v5057 = vxor.u32 %v4955, 2147483648
      %v5058 = vxor.u32 %v4958, 2147483648
      %v5059 = vxor.u32 %v4963, 2147483648
      %v5060 = vxor.u32 %v4966, 2147483648
      %v5061 = vxor.u32 %v4971, 2147483648
      %v5062 = vxor.u32 %v4974, 2147483648
      %v5063 = vxor.u32 %v4979, 2147483648
      %v5064 = vxor.u32 %v4982, 2147483648
      %v5065 = vxor.u32 %v4987, 2147483648
      %v5066 = vxor.u32 %v4990, 2147483648
      %v5067 = vxor.u32 %v4995, 2147483648
      %v5068 = vxor.u32 %v4998, 2147483648
      %v5069 = vxor.u32 %v5003, 2147483648
      %v5070 = vxor.u32 %v5006, 2147483648
      %v5071 = vxor.u32 %v5011, 2147483648
      %v5072 = vxor.u32 %v5014, 2147483648
      %v5073 = vxor.u32 %v5019, 2147483648
      %v5074 = vxor.u32 %v5022, 2147483648
      %v5075 = vxor.u32 %v5027, 2147483648
      %v5076 = vxor.u32 %v5030, 2147483648
      %v5077 = vxor.u32 %v5035, 2147483648
      %v5078 = vxor.u32 %v5038, 2147483648
      %v5079 = vxor.u32 %v5043, 2147483648
      %v5080 = vxor.u32 %v5046, 2147483648
      %v5081 = vmul.f32 %v5049, 1.442695
      %v5082 = vpow.pop %v5081
      %v5083 = vmul.f32 %v5050, 1.442695
      %v5084 = vpow.pop %v5083
      %v5085 = vmul.f32 %v5051, 1.442695
      %v5086 = vpow.pop %v5085
      %v5087 = vmul.f32 %v5052, 1.442695
      %v5088 = vpow.pop %v5087
      %v5089 = vmul.f32 %v5053, 1.442695
      %v5090 = vpow.pop %v5089
      %v5091 = vmul.f32 %v5054, 1.442695
      %v5092 = vpow.pop %v5091
      %v5093 = vmul.f32 %v5055, 1.442695
      %v5094 = vpow.pop %v5093
      %v5095 = vmul.f32 %v5056, 1.442695
      %v5096 = vpow.pop %v5095
      %v5097 = vmul.f32 %v5057, 1.442695
      %v5098 = vpow.pop %v5097
      %v5099 = vmul.f32 %v5058, 1.442695
      %v5100 = vpow.pop %v5099
      %v5101 = vmul.f32 %v5059, 1.442695
      %v5102 = vpow.pop %v5101
      %v5103 = vmul.f32 %v5060, 1.442695
      %v5104 = vpow.pop %v5103
      %v5105 = vmul.f32 %v5061, 1.442695
      %v5106 = vpow.pop %v5105
      %v5107 = vmul.f32 %v5062, 1.442695
      %v5108 = vpow.pop %v5107
      %v5109 = vmul.f32 %v5063, 1.442695
      %v5110 = vpow.pop %v5109
      %v5111 = vmul.f32 %v5064, 1.442695
      %v5112 = vpow.pop %v5111
      %v5113 = vmul.f32 %v5065, 1.442695
      %v5114 = vpow.pop %v5113
      %v5115 = vmul.f32 %v5066, 1.442695
      %v5116 = vpow.pop %v5115
      %v5117 = vmul.f32 %v5067, 1.442695
      %v5118 = vpow.pop %v5117
      %v5119 = vmul.f32 %v5068, 1.442695
      %v5120 = vpow.pop %v5119
      %v5121 = vmul.f32 %v5069, 1.442695
      %v5122 = vpow.pop %v5121
      %v5123 = vmul.f32 %v5070, 1.442695
      %v5124 = vpow.pop %v5123
      %v5125 = vmul.f32 %v5071, 1.442695
      %v5126 = vpow.pop %v5125
      %v5127 = vmul.f32 %v5072, 1.442695
      %v5128 = vpow.pop %v5127
      %v5129 = vmul.f32 %v5073, 1.442695
      %v5130 = vpow.pop %v5129
      %v5131 = vmul.f32 %v5074, 1.442695
      %v5132 = vpow.pop %v5131
      %v5133 = vmul.f32 %v5075, 1.442695
      %v5134 = vpow.pop %v5133
      %v5135 = vmul.f32 %v5076, 1.442695
      %v5136 = vpow.pop %v5135
      %v5137 = vmul.f32 %v5077, 1.442695
      %v5138 = vpow.pop %v5137
      %v5139 = vmul.f32 %v5078, 1.442695
      %v5140 = vpow.pop %v5139
      %v5141 = vmul.f32 %v5079, 1.442695
      %v5142 = vpow.pop %v5141
      %v5143 = vmul.f32 %v5080, 1.442695
      %v5144 = vpow.pop %v5143
      %v5145 = vadd.f32 %v5082, 1.0
      %v5146 = vadd.f32 %v5084, 1.0
      %v5147 = vadd.f32 %v5086, 1.0
      %v5148 = vadd.f32 %v5088, 1.0
      %v5149 = vadd.f32 %v5090, 1.0
      %v5150 = vadd.f32 %v5092, 1.0
      %v5151 = vadd.f32 %v5094, 1.0
      %v5152 = vadd.f32 %v5096, 1.0
      %v5153 = vadd.f32 %v5098, 1.0
      %v5154 = vadd.f32 %v5100, 1.0
      %v5155 = vadd.f32 %v5102, 1.0
      %v5156 = vadd.f32 %v5104, 1.0
      %v5157 = vadd.f32 %v5106, 1.0
      %v5158 = vadd.f32 %v5108, 1.0
      %v5159 = vadd.f32 %v5110, 1.0
      %v5160 = vadd.f32 %v5112, 1.0
      %v5161 = vadd.f32 %v5114, 1.0
      %v5162 = vadd.f32 %v5116, 1.0
      %v5163 = vadd.f32 %v5118, 1.0
      %v5164 = vadd.f32 %v5120, 1.0
      %v5165 = vadd.f32 %v5122, 1.0
      %v5166 = vadd.f32 %v5124, 1.0
      %v5167 = vadd.f32 %v5126, 1.0
      %v5168 = vadd.f32 %v5128, 1.0
      %v5169 = vadd.f32 %v5130, 1.0
      %v5170 = vadd.f32 %v5132, 1.0
      %v5171 = vadd.f32 %v5134, 1.0
      %v5172 = vadd.f32 %v5136, 1.0
      %v5173 = vadd.f32 %v5138, 1.0
      %v5174 = vadd.f32 %v5140, 1.0
      %v5175 = vadd.f32 %v5142, 1.0
      %v5176 = vadd.f32 %v5144, 1.0
      %v5177 = vrcp.pop %v5145
      %v5178 = vmul.f32 1.0, %v5177
      %v5179 = vrcp.pop %v5146
      %v5180 = vmul.f32 1.0, %v5179
      %v5181 = vrcp.pop %v5147
      %v5182 = vmul.f32 1.0, %v5181
      %v5183 = vrcp.pop %v5148
      %v5184 = vmul.f32 1.0, %v5183
      %v5185 = vrcp.pop %v5149
      %v5186 = vmul.f32 1.0, %v5185
      %v5187 = vrcp.pop %v5150
      %v5188 = vmul.f32 1.0, %v5187
      %v5189 = vrcp.pop %v5151
      %v5190 = vmul.f32 1.0, %v5189
      %v5191 = vrcp.pop %v5152
      %v5192 = vmul.f32 1.0, %v5191
      %v5193 = vrcp.pop %v5153
      %v5194 = vmul.f32 1.0, %v5193
      %v5195 = vrcp.pop %v5154
      %v5196 = vmul.f32 1.0, %v5195
      %v5197 = vrcp.pop %v5155
      %v5198 = vmul.f32 1.0, %v5197
      %v5199 = vrcp.pop %v5156
      %v5200 = vmul.f32 1.0, %v5199
      %v5201 = vrcp.pop %v5157
      %v5202 = vmul.f32 1.0, %v5201
      %v5203 = vrcp.pop %v5158
      %v5204 = vmul.f32 1.0, %v5203
      %v5205 = vrcp.pop %v5159
      %v5206 = vmul.f32 1.0, %v5205
      %v5207 = vrcp.pop %v5160
      %v5208 = vmul.f32 1.0, %v5207
      %v5209 = vrcp.pop %v5161
      %v5210 = vmul.f32 1.0, %v5209
      %v5211 = vrcp.pop %v5162
      %v5212 = vmul.f32 1.0, %v5211
      %v5213 = vrcp.pop %v5163
      %v5214 = vmul.f32 1.0, %v5213
      %v5215 = vrcp.pop %v5164
      %v5216 = vmul.f32 1.0, %v5215
      %v5217 = vrcp.pop %v5165
      %v5218 = vmul.f32 1.0, %v5217
      %v5219 = vrcp.pop %v5166
      %v5220 = vmul.f32 1.0, %v5219
      %v5221 = vrcp.pop %v5167
      %v5222 = vmul.f32 1.0, %v5221
      %v5223 = vrcp.pop %v5168
      %v5224 = vmul.f32 1.0, %v5223
      %v5225 = vrcp.pop %v5169
      %v5226 = vmul.f32 1.0, %v5225
      %v5227 = vrcp.pop %v5170
      %v5228 = vmul.f32 1.0, %v5227
      %v5229 = vrcp.pop %v5171
      %v5230 = vmul.f32 1.0, %v5229
      %v5231 = vrcp.pop %v5172
      %v5232 = vmul.f32 1.0, %v5231
      %v5233 = vrcp.pop %v5173
      %v5234 = vmul.f32 1.0, %v5233
      %v5235 = vrcp.pop %v5174
      %v5236 = vmul.f32 1.0, %v5235
      %v5237 = vrcp.pop %v5175
      %v5238 = vmul.f32 1.0, %v5237
      %v5239 = vrcp.pop %v5176
      %v5240 = vmul.f32 1.0, %v5239
      %v5241 = vlaneseq
      %v5242 = vshrl.u32 %v5241, 7
      %v5243 = vsub.s32 0, %v5242
      %v5244 = vrot.slane %v4467, %v5243
      %v5245 = vmul.f32 %v5244, %v5178
      %v5246 = vmul.f32 %v5244, %v5180
      %v5247 = vmul.f32 %v5244, %v5182
      %v5248 = vmul.f32 %v5244, %v5184
      %v5249 = vmul.f32 %v5244, %v5186
      %v5250 = vmul.f32 %v5244, %v5188
      %v5251 = vmul.f32 %v5244, %v5190
      %v5252 = vmul.f32 %v5244, %v5192
      %v5253 = vmul.f32 %v5244, %v5194
      %v5254 = vmul.f32 %v5244, %v5196
      %v5255 = vmul.f32 %v5244, %v5198
      %v5256 = vmul.f32 %v5244, %v5200
      %v5257 = vmul.f32 %v5244, %v5202
      %v5258 = vmul.f32 %v5244, %v5204
      %v5259 = vmul.f32 %v5244, %v5206
      %v5260 = vmul.f32 %v5244, %v5208
      %v5261 = vmul.f32 %v5244, %v5210
      %v5262 = vmul.f32 %v5244, %v5212
      %v5263 = vmul.f32 %v5244, %v5214
      %v5264 = vmul.f32 %v5244, %v5216
      %v5265 = vmul.f32 %v5244, %v5218
      %v5266 = vmul.f32 %v5244, %v5220
      %v5267 = vmul.f32 %v5244, %v5222
      %v5268 = vmul.f32 %v5244, %v5224
      %v5269 = vmul.f32 %v5244, %v5226
      %v5270 = vmul.f32 %v5244, %v5228
      %v5271 = vmul.f32 %v5244, %v5230
      %v5272 = vmul.f32 %v5244, %v5232
      %v5273 = vmul.f32 %v5244, %v5234
      %v5274 = vmul.f32 %v5244, %v5236
      %v5275 = vmul.f32 %v5244, %v5238
      %v5276 = vmul.f32 %v5244, %v5240
      %v5277 = vadd.f32 %v4210, %v5245
      %v5278 = vadd.f32 %v4211, %v5246
      %v5279 = vadd.f32 %v4212, %v5247
      %v5280 = vadd.f32 %v4213, %v5248
      %v5281 = vadd.f32 %v4214, %v5249
      %v5282 = vadd.f32 %v4215, %v5250
      %v5283 = vadd.f32 %v4216, %v5251
      %v5284 = vadd.f32 %v4217, %v5252
      %v5285 = vadd.f32 %v4218, %v5253
      %v5286 = vadd.f32 %v4219, %v5254
      %v5287 = vadd.f32 %v4220, %v5255
      %v5288 = vadd.f32 %v4221, %v5256
      %v5289 = vadd.f32 %v4222, %v5257
      %v5290 = vadd.f32 %v4223, %v5258
      %v5291 = vadd.f32 %v4224, %v5259
      %v5292 = vadd.f32 %v4225, %v5260
      %v5293 = vadd.f32 %v4226, %v5261
      %v5294 = vadd.f32 %v4227, %v5262
      %v5295 = vadd.f32 %v4228, %v5263
      %v5296 = vadd.f32 %v4229, %v5264
      %v5297 = vadd.f32 %v4230, %v5265
      %v5298 = vadd.f32 %v4231, %v5266
      %v5299 = vadd.f32 %v4232, %v5267
      %v5300 = vadd.f32 %v4233, %v5268
      %v5301 = vadd.f32 %v4234, %v5269
      %v5302 = vadd.f32 %v4235, %v5270
      %v5303 = vadd.f32 %v4236, %v5271
      %v5304 = vadd.f32 %v4237, %v5272
      %v5305 = vadd.f32 %v4238, %v5273
      %v5306 = vadd.f32 %v4239, %v5274
      %v5307 = vadd.f32 %v4240, %v5275
      %v5308 = vadd.f32 %v4241, %v5276
      %v5309 = vld [vmem:[%s14] sm:$0x1]
      %v5310 = vlaneseq
      %v5311 = vshrl.u32 %v5310, 7
      %v5312 = vsub.s32 0, %v5311
      %v5313 = vrot.slane %v5309, %v5312
      %v5314 = vmul.f32 %v5277, %v5313
      %v5315 = vmul.f32 %v5278, %v5313
      %v5316 = vmul.f32 %v5279, %v5313
      %v5317 = vmul.f32 %v5280, %v5313
      %v5318 = vmul.f32 %v5281, %v5313
      %v5319 = vmul.f32 %v5282, %v5313
      %v5320 = vmul.f32 %v5283, %v5313
      %v5321 = vmul.f32 %v5284, %v5313
      %v5322 = vmul.f32 %v5285, %v5313
      %v5323 = vmul.f32 %v5286, %v5313
      %v5324 = vmul.f32 %v5287, %v5313
      %v5325 = vmul.f32 %v5288, %v5313
      %v5326 = vmul.f32 %v5289, %v5313
      %v5327 = vmul.f32 %v5290, %v5313
      %v5328 = vmul.f32 %v5291, %v5313
      %v5329 = vmul.f32 %v5292, %v5313
      %v5330 = vmul.f32 %v5293, %v5313
      %v5331 = vmul.f32 %v5294, %v5313
      %v5332 = vmul.f32 %v5295, %v5313
      %v5333 = vmul.f32 %v5296, %v5313
      %v5334 = vmul.f32 %v5297, %v5313
      %v5335 = vmul.f32 %v5298, %v5313
      %v5336 = vmul.f32 %v5299, %v5313
      %v5337 = vmul.f32 %v5300, %v5313
      %v5338 = vmul.f32 %v5301, %v5313
      %v5339 = vmul.f32 %v5302, %v5313
      %v5340 = vmul.f32 %v5303, %v5313
      %v5341 = vmul.f32 %v5304, %v5313
      %v5342 = vmul.f32 %v5305, %v5313
      %v5343 = vmul.f32 %v5306, %v5313
      %v5344 = vmul.f32 %v5307, %v5313
      %v5345 = vmul.f32 %v5308, %v5313
      %v5346 = vld [vmem:[%s14 + $0x1] sm:$0x1]
      %v5347 = vlaneseq
      %v5348 = vshrl.u32 %v5347, 7
      %v5349 = vsub.s32 0, %v5348
      %v5350 = vrot.slane %v5346, %v5349
      %v5351 = vadd.f32 %v5314, %v5350
      %v5352 = vadd.f32 %v5315, %v5350
      %v5353 = vadd.f32 %v5316, %v5350
      %v5354 = vadd.f32 %v5317, %v5350
      %v5355 = vadd.f32 %v5318, %v5350
      %v5356 = vadd.f32 %v5319, %v5350
      %v5357 = vadd.f32 %v5320, %v5350
      %v5358 = vadd.f32 %v5321, %v5350
      %v5359 = vadd.f32 %v5322, %v5350
      %v5360 = vadd.f32 %v5323, %v5350
      %v5361 = vadd.f32 %v5324, %v5350
      %v5362 = vadd.f32 %v5325, %v5350
      %v5363 = vadd.f32 %v5326, %v5350
      %v5364 = vadd.f32 %v5327, %v5350
      %v5365 = vadd.f32 %v5328, %v5350
      %v5366 = vadd.f32 %v5329, %v5350
      %v5367 = vadd.f32 %v5330, %v5350
      %v5368 = vadd.f32 %v5331, %v5350
      %v5369 = vadd.f32 %v5332, %v5350
      %v5370 = vadd.f32 %v5333, %v5350
      %v5371 = vadd.f32 %v5334, %v5350
      %v5372 = vadd.f32 %v5335, %v5350
      %v5373 = vadd.f32 %v5336, %v5350
      %v5374 = vadd.f32 %v5337, %v5350
      %v5375 = vadd.f32 %v5338, %v5350
      %v5376 = vadd.f32 %v5339, %v5350
      %v5377 = vadd.f32 %v5340, %v5350
      %v5378 = vadd.f32 %v5341, %v5350
      %v5379 = vadd.f32 %v5342, %v5350
      %v5380 = vadd.f32 %v5343, %v5350
      %v5381 = vadd.f32 %v5344, %v5350
      %v5382 = vadd.f32 %v5345, %v5350
      %v5383 = vmax.f32 %v5351, 0.0
      %v5384 = vmax.f32 %v5352, 0.0
      %v5385 = vmax.f32 %v5353, 0.0
      %v5386 = vmax.f32 %v5354, 0.0
      %v5387 = vmax.f32 %v5355, 0.0
      %v5388 = vmax.f32 %v5356, 0.0
      %v5389 = vmax.f32 %v5357, 0.0
      %v5390 = vmax.f32 %v5358, 0.0
      %v5391 = vmax.f32 %v5359, 0.0
      %v5392 = vmax.f32 %v5360, 0.0
      %v5393 = vmax.f32 %v5361, 0.0
      %v5394 = vmax.f32 %v5362, 0.0
      %v5395 = vmax.f32 %v5363, 0.0
      %v5396 = vmax.f32 %v5364, 0.0
      %v5397 = vmax.f32 %v5365, 0.0
      %v5398 = vmax.f32 %v5366, 0.0
      %v5399 = vmax.f32 %v5367, 0.0
      %v5400 = vmax.f32 %v5368, 0.0
      %v5401 = vmax.f32 %v5369, 0.0
      %v5402 = vmax.f32 %v5370, 0.0
      %v5403 = vmax.f32 %v5371, 0.0
      %v5404 = vmax.f32 %v5372, 0.0
      %v5405 = vmax.f32 %v5373, 0.0
      %v5406 = vmax.f32 %v5374, 0.0
      %v5407 = vmax.f32 %v5375, 0.0
      %v5408 = vmax.f32 %v5376, 0.0
      %v5409 = vmax.f32 %v5377, 0.0
      %v5410 = vmax.f32 %v5378, 0.0
      %v5411 = vmax.f32 %v5379, 0.0
      %v5412 = vmax.f32 %v5380, 0.0
      %v5413 = vmax.f32 %v5381, 0.0
      %v5414 = vmax.f32 %v5382, 0.0
      %v5415 = vpack.c.bf16 %v5384, %v5383
      %v5416 = vpack.c.bf16 %v5386, %v5385
      %v5417 = vpack.c.bf16 %v5388, %v5387
      %v5418 = vpack.c.bf16 %v5390, %v5389
      %v5419 = vpack.c.bf16 %v5392, %v5391
      %v5420 = vpack.c.bf16 %v5394, %v5393
      %v5421 = vpack.c.bf16 %v5396, %v5395
      %v5422 = vpack.c.bf16 %v5398, %v5397
      %v5423 = vpack.c.bf16 %v5400, %v5399
      %v5424 = vpack.c.bf16 %v5402, %v5401
      %v5425 = vpack.c.bf16 %v5404, %v5403
      %v5426 = vpack.c.bf16 %v5406, %v5405
      %v5427 = vpack.c.bf16 %v5408, %v5407
      %v5428 = vpack.c.bf16 %v5410, %v5409
      %v5429 = vpack.c.bf16 %v5412, %v5411
      %v5430 = vpack.c.bf16 %v5414, %v5413
      %v5431 = vld [vmem:[%s13] sm:$0x3]
      %v5433 = vsel %vm895, %v5415, 0
      %v5436 = vsel %vm895, %v5416, 0
      %v5439 = vsel %vm895, %v5417, 0
      %v5442 = vsel %vm895, %v5418, 0
      %v5445 = vsel %vm895, %v5419, 0
      %v5448 = vsel %vm895, %v5420, 0
      %v5451 = vsel %vm895, %v5421, 0
      %v5454 = vsel %vm895, %v5422, 0
      %v5457 = vsel %vm895, %v5423, 0
      %v5460 = vsel %vm895, %v5424, 0
      %v5463 = vsel %vm895, %v5425, 0
      %v5466 = vsel %vm895, %v5426, 0
      %v5469 = vsel %vm895, %v5427, 0
      %v5472 = vsel %vm895, %v5428, 0
      %v5475 = vsel %vm895, %v5429, 0
      %v5478 = vsel %vm895, %v5430, 0
      %v5481 = vsel %vm1338, %v5431, 0
      %5483 = vmatprep.subr.bf16.mxu0 0
      %5484 = vmatpush1.bf16.msra.mxu0 0
      %5485 = vmatprep.subr.bf16.mxu0 0
      %5486 = vmatpush1.bf16.msra.mxu0 0
      %5487 = vmatprep.subr.bf16.mxu0 0
      %5488 = vmatpush1.bf16.msra.mxu0 0
      %5489 = vmatprep.subr.bf16.mxu0 0
      %5490 = vmatpush1.bf16.msra.mxu0 0
      %5491 = vmatprep.subr.bf16.mxu0 0
      %5492 = vmatpush1.bf16.msra.mxu0 0
      %5493 = vmatprep.subr.bf16.mxu0 0
      %5494 = vmatpush1.bf16.msra.mxu0 0
      %5495 = vmatprep.subr.bf16.mxu0 0
      %5496 = vmatpush1.bf16.msra.mxu0 0
      %5497 = vmatprep.subr.bf16.mxu0 0
      %5498 = vmatpush1.bf16.msra.mxu0 %v5481
      %5499 = vmatprep.subr.bf16.mxu0 0
      %5500 = vmatpush2.bf16.msra.mxu0 0
      %5501 = vmatprep.subr.bf16.mxu0 0
      %5502 = vmatpush2.bf16.msra.mxu0 0
      %5503 = vmatprep.subr.bf16.mxu0 0
      %5504 = vmatpush2.bf16.msra.mxu0 0
      %5505 = vmatprep.subr.bf16.mxu0 0
      %5506 = vmatpush2.bf16.msra.mxu0 0
      %5507 = vmatprep.subr.bf16.mxu0 0
      %5508 = vmatpush2.bf16.msra.mxu0 0
      %5509 = vmatprep.subr.bf16.mxu0 0
      %5510 = vmatpush2.bf16.msra.mxu0 0
      %5511 = vmatprep.subr.bf16.mxu0 0
      %5512 = vmatpush2.bf16.msra.mxu0 0
      %5513 = vmatprep.subr.bf16.mxu0 0
      %5514 = vmatpush2.bf16.msra.mxu0 0
      %5515 = vmatprep.mubr.bf16.mxu0 0
      %5516 = vmatmul.mubr.bf16.gmra.mxu0 %v5433
      %v5517 = vpop.f32.mrf.mxu0
      %v5518 = vadd.f32 0.0, %v5517
      %v5519 = vpop.f32.mrf.mxu0
      %v5520 = vpop.f32.mrf.mxu0
      %v5521 = vadd.f32 0.0, %v5520
      %v5522 = vpop.f32.mrf.mxu0
      %5523 = vmatprep.mubr.bf16.mxu0 0
      %5524 = vmatmul.mubr.bf16.gmra.mxu0 %v5436
      %v5525 = vpop.f32.mrf.mxu0
      %v5526 = vadd.f32 0.0, %v5525
      %v5527 = vpop.f32.mrf.mxu0
      %v5528 = vpop.f32.mrf.mxu0
      %v5529 = vadd.f32 0.0, %v5528
      %v5530 = vpop.f32.mrf.mxu0
      %5531 = vmatprep.mubr.bf16.mxu0 0
      %5532 = vmatmul.mubr.bf16.gmra.mxu0 %v5439
      %v5533 = vpop.f32.mrf.mxu0
      %v5534 = vadd.f32 0.0, %v5533
      %v5535 = vpop.f32.mrf.mxu0
      %v5536 = vpop.f32.mrf.mxu0
      %v5537 = vadd.f32 0.0, %v5536
      %v5538 = vpop.f32.mrf.mxu0
      %5539 = vmatprep.mubr.bf16.mxu0 0
      %5540 = vmatmul.mubr.bf16.gmra.mxu0 %v5442
      %v5541 = vpop.f32.mrf.mxu0
      %v5542 = vadd.f32 0.0, %v5541
      %v5543 = vpop.f32.mrf.mxu0
      %v5544 = vpop.f32.mrf.mxu0
      %v5545 = vadd.f32 0.0, %v5544
      %v5546 = vpop.f32.mrf.mxu0
      %5547 = vmatprep.mubr.bf16.mxu0 0
      %5548 = vmatmul.mubr.bf16.gmra.mxu0 %v5445
      %v5549 = vpop.f32.mrf.mxu0
      %v5550 = vadd.f32 0.0, %v5549
      %v5551 = vpop.f32.mrf.mxu0
      %v5552 = vpop.f32.mrf.mxu0
      %v5553 = vadd.f32 0.0, %v5552
      %v5554 = vpop.f32.mrf.mxu0
      %5555 = vmatprep.mubr.bf16.mxu0 0
      %5556 = vmatmul.mubr.bf16.gmra.mxu0 %v5448
      %v5557 = vpop.f32.mrf.mxu0
      %v5558 = vadd.f32 0.0, %v5557
      %v5559 = vpop.f32.mrf.mxu0
      %v5560 = vpop.f32.mrf.mxu0
      %v5561 = vadd.f32 0.0, %v5560
      %v5562 = vpop.f32.mrf.mxu0
      %5563 = vmatprep.mubr.bf16.mxu0 0
      %5564 = vmatmul.mubr.bf16.gmra.mxu0 %v5451
      %v5565 = vpop.f32.mrf.mxu0
      %v5566 = vadd.f32 0.0, %v5565
      %v5567 = vpop.f32.mrf.mxu0
      %v5568 = vpop.f32.mrf.mxu0
      %v5569 = vadd.f32 0.0, %v5568
      %v5570 = vpop.f32.mrf.mxu0
      %5571 = vmatprep.mubr.bf16.mxu0 0
      %5572 = vmatmul.mubr.bf16.gmra.mxu0 %v5454
      %v5573 = vpop.f32.mrf.mxu0
      %v5574 = vadd.f32 0.0, %v5573
      %v5575 = vpop.f32.mrf.mxu0
      %v5576 = vpop.f32.mrf.mxu0
      %v5577 = vadd.f32 0.0, %v5576
      %v5578 = vpop.f32.mrf.mxu0
      %5579 = vmatprep.mubr.bf16.mxu0 0
      %5580 = vmatmul.mubr.bf16.gmra.mxu0 %v5457
      %v5581 = vpop.f32.mrf.mxu0
      %v5582 = vadd.f32 0.0, %v5581
      %v5583 = vpop.f32.mrf.mxu0
      %v5584 = vpop.f32.mrf.mxu0
      %v5585 = vadd.f32 0.0, %v5584
      %v5586 = vpop.f32.mrf.mxu0
      %5587 = vmatprep.mubr.bf16.mxu0 0
      %5588 = vmatmul.mubr.bf16.gmra.mxu0 %v5460
      %v5589 = vpop.f32.mrf.mxu0
      %v5590 = vadd.f32 0.0, %v5589
      %v5591 = vpop.f32.mrf.mxu0
      %v5592 = vpop.f32.mrf.mxu0
      %v5593 = vadd.f32 0.0, %v5592
      %v5594 = vpop.f32.mrf.mxu0
      %5595 = vmatprep.mubr.bf16.mxu0 0
      %5596 = vmatmul.mubr.bf16.gmra.mxu0 %v5463
      %v5597 = vpop.f32.mrf.mxu0
      %v5598 = vadd.f32 0.0, %v5597
      %v5599 = vpop.f32.mrf.mxu0
      %v5600 = vpop.f32.mrf.mxu0
      %v5601 = vadd.f32 0.0, %v5600
      %v5602 = vpop.f32.mrf.mxu0
      %5603 = vmatprep.mubr.bf16.mxu0 0
      %5604 = vmatmul.mubr.bf16.gmra.mxu0 %v5466
      %v5605 = vpop.f32.mrf.mxu0
      %v5606 = vadd.f32 0.0, %v5605
      %v5607 = vpop.f32.mrf.mxu0
      %v5608 = vpop.f32.mrf.mxu0
      %v5609 = vadd.f32 0.0, %v5608
      %v5610 = vpop.f32.mrf.mxu0
      %5611 = vmatprep.mubr.bf16.mxu0 0
      %5612 = vmatmul.mubr.bf16.gmra.mxu0 %v5469
      %v5613 = vpop.f32.mrf.mxu0
      %v5614 = vadd.f32 0.0, %v5613
      %v5615 = vpop.f32.mrf.mxu0
      %v5616 = vpop.f32.mrf.mxu0
      %v5617 = vadd.f32 0.0, %v5616
      %v5618 = vpop.f32.mrf.mxu0
      %5619 = vmatprep.mubr.bf16.mxu0 0
      %5620 = vmatmul.mubr.bf16.gmra.mxu0 %v5472
      %v5621 = vpop.f32.mrf.mxu0
      %v5622 = vadd.f32 0.0, %v5621
      %v5623 = vpop.f32.mrf.mxu0
      %v5624 = vpop.f32.mrf.mxu0
      %v5625 = vadd.f32 0.0, %v5624
      %v5626 = vpop.f32.mrf.mxu0
      %5627 = vmatprep.mubr.bf16.mxu0 0
      %5628 = vmatmul.mubr.bf16.gmra.mxu0 %v5475
      %v5629 = vpop.f32.mrf.mxu0
      %v5630 = vadd.f32 0.0, %v5629
      %v5631 = vpop.f32.mrf.mxu0
      %v5632 = vpop.f32.mrf.mxu0
      %v5633 = vadd.f32 0.0, %v5632
      %v5634 = vpop.f32.mrf.mxu0
      %5635 = vmatprep.mubr.bf16.mxu0 0
      %5636 = vmatmul.mubr.bf16.gmra.mxu0 %v5478
      %v5637 = vpop.f32.mrf.mxu0
      %v5638 = vadd.f32 0.0, %v5637
      %v5639 = vpop.f32.mrf.mxu0
      %v5640 = vpop.f32.mrf.mxu0
      %v5641 = vadd.f32 0.0, %v5640
      %v5642 = vpop.f32.mrf.mxu0
      %5643 = vdwg.mxu0
      %v5644 = vld [vmem:[%s15] sm:$0x1]
      %v5645 = vlaneseq
      %v5646 = vshrl.u32 %v5645, 7
      %v5647 = vsub.s32 0, %v5646
      %v5648 = vrot.slane %v5644, %v5647
      %v5649 = vmul.f32 %v5518, %v5648
      %v5650 = vmul.f32 %v5521, %v5648
      %v5651 = vmul.f32 %v5526, %v5648
      %v5652 = vmul.f32 %v5529, %v5648
      %v5653 = vmul.f32 %v5534, %v5648
      %v5654 = vmul.f32 %v5537, %v5648
      %v5655 = vmul.f32 %v5542, %v5648
      %v5656 = vmul.f32 %v5545, %v5648
      %v5657 = vmul.f32 %v5550, %v5648
      %v5658 = vmul.f32 %v5553, %v5648
      %v5659 = vmul.f32 %v5558, %v5648
      %v5660 = vmul.f32 %v5561, %v5648
      %v5661 = vmul.f32 %v5566, %v5648
      %v5662 = vmul.f32 %v5569, %v5648
      %v5663 = vmul.f32 %v5574, %v5648
      %v5664 = vmul.f32 %v5577, %v5648
      %v5665 = vmul.f32 %v5582, %v5648
      %v5666 = vmul.f32 %v5585, %v5648
      %v5667 = vmul.f32 %v5590, %v5648
      %v5668 = vmul.f32 %v5593, %v5648
      %v5669 = vmul.f32 %v5598, %v5648
      %v5670 = vmul.f32 %v5601, %v5648
      %v5671 = vmul.f32 %v5606, %v5648
      %v5672 = vmul.f32 %v5609, %v5648
      %v5673 = vmul.f32 %v5614, %v5648
      %v5674 = vmul.f32 %v5617, %v5648
      %v5675 = vmul.f32 %v5622, %v5648
      %v5676 = vmul.f32 %v5625, %v5648
      %v5677 = vmul.f32 %v5630, %v5648
      %v5678 = vmul.f32 %v5633, %v5648
      %v5679 = vmul.f32 %v5638, %v5648
      %v5680 = vmul.f32 %v5641, %v5648
      %v5681 = vld [vmem:[%s15 + $0x1] sm:$0x1]
      %v5682 = vlaneseq
      %v5683 = vshrl.u32 %v5682, 7
      %v5684 = vsub.s32 0, %v5683
      %v5685 = vrot.slane %v5681, %v5684
      %v5686 = vadd.f32 %v5649, %v5685
      %v5687 = vadd.f32 %v5650, %v5685
      %v5688 = vadd.f32 %v5651, %v5685
      %v5689 = vadd.f32 %v5652, %v5685
      %v5690 = vadd.f32 %v5653, %v5685
      %v5691 = vadd.f32 %v5654, %v5685
      %v5692 = vadd.f32 %v5655, %v5685
      %v5693 = vadd.f32 %v5656, %v5685
      %v5694 = vadd.f32 %v5657, %v5685
      %v5695 = vadd.f32 %v5658, %v5685
      %v5696 = vadd.f32 %v5659, %v5685
      %v5697 = vadd.f32 %v5660, %v5685
      %v5698 = vadd.f32 %v5661, %v5685
      %v5699 = vadd.f32 %v5662, %v5685
      %v5700 = vadd.f32 %v5663, %v5685
      %v5701 = vadd.f32 %v5664, %v5685
      %v5702 = vadd.f32 %v5665, %v5685
      %v5703 = vadd.f32 %v5666, %v5685
      %v5704 = vadd.f32 %v5667, %v5685
      %v5705 = vadd.f32 %v5668, %v5685
      %v5706 = vadd.f32 %v5669, %v5685
      %v5707 = vadd.f32 %v5670, %v5685
      %v5708 = vadd.f32 %v5671, %v5685
      %v5709 = vadd.f32 %v5672, %v5685
      %v5710 = vadd.f32 %v5673, %v5685
      %v5711 = vadd.f32 %v5674, %v5685
      %v5712 = vadd.f32 %v5675, %v5685
      %v5713 = vadd.f32 %v5676, %v5685
      %v5714 = vadd.f32 %v5677, %v5685
      %v5715 = vadd.f32 %v5678, %v5685
      %v5716 = vadd.f32 %v5679, %v5685
      %v5717 = vadd.f32 %v5680, %v5685
      %v5718 = vadd.f32 %v5686, %v523
      %v5719 = vadd.f32 %v5687, %v524
      %v5720 = vadd.f32 %v5688, %v525
      %v5721 = vadd.f32 %v5689, %v526
      %v5722 = vadd.f32 %v5690, %v527
      %v5723 = vadd.f32 %v5691, %v528
      %v5724 = vadd.f32 %v5692, %v529
      %v5725 = vadd.f32 %v5693, %v530
      %v5726 = vadd.f32 %v5694, %v531
      %v5727 = vadd.f32 %v5695, %v532
      %v5728 = vadd.f32 %v5696, %v533
      %v5729 = vadd.f32 %v5697, %v534
      %v5730 = vadd.f32 %v5698, %v535
      %v5731 = vadd.f32 %v5699, %v536
      %v5732 = vadd.f32 %v5700, %v537
      %v5733 = vadd.f32 %v5701, %v538
      %v5734 = vadd.f32 %v5702, %v539
      %v5735 = vadd.f32 %v5703, %v540
      %v5736 = vadd.f32 %v5704, %v541
      %v5737 = vadd.f32 %v5705, %v542
      %v5738 = vadd.f32 %v5706, %v543
      %v5739 = vadd.f32 %v5707, %v544
      %v5740 = vadd.f32 %v5708, %v545
      %v5741 = vadd.f32 %v5709, %v546
      %v5742 = vadd.f32 %v5710, %v547
      %v5743 = vadd.f32 %v5711, %v548
      %v5744 = vadd.f32 %v5712, %v549
      %v5745 = vadd.f32 %v5713, %v550
      %v5746 = vadd.f32 %v5714, %v551
      %v5747 = vadd.f32 %v5715, %v552
      %v5748 = vadd.f32 %v5716, %v553
      %v5749 = vadd.f32 %v5717, %v554
      %v5750 = vmax.f32 %v5718, 0.0
      %v5751 = vmax.f32 %v5719, 0.0
      %v5752 = vmax.f32 %v5720, 0.0
      %v5753 = vmax.f32 %v5721, 0.0
      %v5754 = vmax.f32 %v5722, 0.0
      %v5755 = vmax.f32 %v5723, 0.0
      %v5756 = vmax.f32 %v5724, 0.0
      %v5757 = vmax.f32 %v5725, 0.0
      %v5758 = vmax.f32 %v5726, 0.0
      %v5759 = vmax.f32 %v5727, 0.0
      %v5760 = vmax.f32 %v5728, 0.0
      %v5761 = vmax.f32 %v5729, 0.0
      %v5762 = vmax.f32 %v5730, 0.0
      %v5763 = vmax.f32 %v5731, 0.0
      %v5764 = vmax.f32 %v5732, 0.0
      %v5765 = vmax.f32 %v5733, 0.0
      %v5766 = vmax.f32 %v5734, 0.0
      %v5767 = vmax.f32 %v5735, 0.0
      %v5768 = vmax.f32 %v5736, 0.0
      %v5769 = vmax.f32 %v5737, 0.0
      %v5770 = vmax.f32 %v5738, 0.0
      %v5771 = vmax.f32 %v5739, 0.0
      %v5772 = vmax.f32 %v5740, 0.0
      %v5773 = vmax.f32 %v5741, 0.0
      %v5774 = vmax.f32 %v5742, 0.0
      %v5775 = vmax.f32 %v5743, 0.0
      %v5776 = vmax.f32 %v5744, 0.0
      %v5777 = vmax.f32 %v5745, 0.0
      %v5778 = vmax.f32 %v5746, 0.0
      %v5779 = vmax.f32 %v5747, 0.0
      %v5780 = vmax.f32 %v5748, 0.0
      %v5781 = vmax.f32 %v5749, 0.0
      %5782 = vst.msk [vmem:[%s521] sm:$0xff] %vm579, %v5750
      %5783 = vst.msk [vmem:[%s521 + $0x8] sm:$0xff] %vm579, %v5751
      %5784 = vst.msk [vmem:[%s521 + $0x10] sm:$0xff] %vm579, %v5752
      %5785 = vst.msk [vmem:[%s521 + $0x18] sm:$0xff] %vm579, %v5753
      %5786 = vst.msk [vmem:[%s521 + $0x20] sm:$0xff] %vm579, %v5754
      %5787 = vst.msk [vmem:[%s521 + $0x28] sm:$0xff] %vm579, %v5755
      %5788 = vst.msk [vmem:[%s521 + $0x30] sm:$0xff] %vm579, %v5756
      %5789 = vst.msk [vmem:[%s521 + $0x38] sm:$0xff] %vm579, %v5757
      %5790 = vst.msk [vmem:[%s521 + $0x40] sm:$0xff] %vm579, %v5758
      %5791 = vst.msk [vmem:[%s521 + $0x48] sm:$0xff] %vm579, %v5759
      %5792 = vst.msk [vmem:[%s521 + $0x50] sm:$0xff] %vm579, %v5760
      %5793 = vst.msk [vmem:[%s521 + $0x58] sm:$0xff] %vm579, %v5761
      %5794 = vst.msk [vmem:[%s521 + $0x60] sm:$0xff] %vm579, %v5762
      %5795 = vst.msk [vmem:[%s521 + $0x68] sm:$0xff] %vm579, %v5763
      %5796 = vst.msk [vmem:[%s521 + $0x70] sm:$0xff] %vm579, %v5764
      %5797 = vst.msk [vmem:[%s521 + $0x78] sm:$0xff] %vm579, %v5765
      %5798 = vst.msk [vmem:[%s521 + $0x80] sm:$0xff] %vm579, %v5766
      %5799 = vst.msk [vmem:[%s521 + $0x88] sm:$0xff] %vm579, %v5767
      %5800 = vst.msk [vmem:[%s521 + $0x90] sm:$0xff] %vm579, %v5768
      %5801 = vst.msk [vmem:[%s521 + $0x98] sm:$0xff] %vm579, %v5769
      %5802 = vst.msk [vmem:[%s521 + $0xa0] sm:$0xff] %vm579, %v5770
      %5803 = vst.msk [vmem:[%s521 + $0xa8] sm:$0xff] %vm579, %v5771
      %5804 = vst.msk [vmem:[%s521 + $0xb0] sm:$0xff] %vm579, %v5772
      %5805 = vst.msk [vmem:[%s521 + $0xb8] sm:$0xff] %vm579, %v5773
      %5806 = vst.msk [vmem:[%s521 + $0xc0] sm:$0xff] %vm579, %v5774
      %5807 = vst.msk [vmem:[%s521 + $0xc8] sm:$0xff] %vm579, %v5775
      %5808 = vst.msk [vmem:[%s521 + $0xd0] sm:$0xff] %vm579, %v5776
      %5809 = vst.msk [vmem:[%s521 + $0xd8] sm:$0xff] %vm579, %v5777
      %5810 = vst.msk [vmem:[%s521 + $0xe0] sm:$0xff] %vm579, %v5778
      %5811 = vst.msk [vmem:[%s521 + $0xe8] sm:$0xff] %vm579, %v5779
      %5812 = vst.msk [vmem:[%s521 + $0xf0] sm:$0xff] %vm579, %v5780
      %5813 = vst.msk [vmem:[%s521 + $0xf8] sm:$0xff] %vm579, %v5781
      %p5814 = scmp.lt.s32.totalorder %s27, 1
      %s5815 = scalar_select %p5814, %s27, 1
      %s5816 = smul.addr %s5815, 32
      %s5817 = smul.addr %s5816, 8
      %s5818 = scalar_lea.vmem %s16, %s5817
      // Predicated region
      $region85: #{tpu_custom_call.1} parent=83 // pred_check
        %p5819 = pneg %p386
      $region86: #{tpu_custom_call.1} parent=83 // pred_check_branch
        %5821 = sbr.rel (%p5819) target = $region88
      $region87: #{tpu_custom_call.1} parent=83 // pred_region
        _
      $region88: #{tpu_custom_call.1} parent=83 // pred_fallthru
        _
    $region84: #{tpu_custom_call.1} parent=5 // pred_fallthru
      _
    %p5822 = scmp.le.s32.totalorder 2, %s22
    // Predicated region
    $region89: #{tpu_custom_call.1} parent=5 // pred_check
      %p5823 = pneg %p5822
    $region90: #{tpu_custom_call.1} parent=5 // pred_check_branch
      %5825 = sbr.rel (%p5823) target = $region92
    $region91: #{tpu_custom_call.1} parent=5 // pred_region
      %s5826 = ssub.s32 %s22, 2
      // Predicated region
      $region93: #{tpu_custom_call.1} parent=91 // pred_check
        %p5827 = pneg %p392
      $region94: #{tpu_custom_call.1} parent=91 // pred_check_branch
        %5829 = sbr.rel (%p5827) target = $region96
      $region95: #{tpu_custom_call.1} parent=91 // pred_region
        %p5830 = scmp.lt.s32.totalorder %s28, 1
        %s5831 = scalar_select %p5830, %s28, 1
        %s5832 = smul.addr %s5831, 32
        %s5833 = smul.addr %s5832, 8
        %s5834 = scalar_lea.vmem %s16, %s5833
      $region96: #{tpu_custom_call.1} parent=91 // pred_fallthru
        _
    $region92: #{tpu_custom_call.1} parent=5 // pred_fallthru
      _
  $region6: #{tpu_custom_call.1} parent=0 // loop_footer
    %s26 = sadd.s32 1, %s22
  $region7: #{tpu_custom_call.1} parent=0 // loop_footer_branch
    %21 = sbr.rel target = $region3
  $region8: #{tpu_custom_call.1} parent=0 // loop_exit
    _

</llo_original>
